<compile_context>
chip_gen: v7x
topology: tpu7x:2x2x1
jax: 0.10.0
libtpu: 0.0.40
codegen_flags: <defaults>
</compile_context>

<pallas_src>
import math

import jax
import jax.numpy as jnp
import numpy as np
from jax.experimental import pallas as pl
from jax.experimental.pallas import tpu as pltpu

_S = 28 * 28  # flat lane stride of one zero-padded 24x24 -> 28x28 image


# ----------------------------------------------------------------------------
# The fused kernel
# ----------------------------------------------------------------------------
def _actor_critic_kernel(x_ref, sens_ref,
                         w1_ref, b1_ref, w2_ref, b2_ref,
                         wm_ref, bm_ref, ws_ref, bs_ref, wh_ref, bh_ref,
                         g2_ref,
                         out_ref,
                         xstk_ref, c1_ref, p1_ref, p1stk_ref, c2_ref,
                         p2stk_ref):
    f32 = jnp.float32
    bf16 = jnp.bfloat16

    C = x_ref.shape[0]            # conv1 input channels
    O1 = c1_ref.shape[0]          # 8  conv1 output channels
    O2 = c2_ref.shape[0]          # 16 conv2 output channels
    B = out_ref.shape[1]          # batch
    L_c1 = c1_ref.shape[1]        # lane extents (telescoping slice widths)
    L_p1 = p1_ref.shape[1]
    L_c2 = c2_ref.shape[1]
    L_p2 = g2_ref.shape[0]

    # ---- conv1 5x5 (pad 2): im2col via 25 lane-shifted block copies,
    #      then ONE bf16 MXU matmul (K = C*25).  1/255 is folded into w1. ----
    for p in range(25):
        s = 28 * (p // 5) + (p % 5)
        xstk_ref[p * C:(p + 1) * C, :] = x_ref[:, s:s + L_c1]
    c1 = jnp.dot(w1_ref[...], xstk_ref[...], preferred_element_type=f32)
    c1_ref[...] = jnp.maximum(c1 + b1_ref[...], 0.0).astype(bf16)

    # ---- maxpool1 2x2/2: elementwise max of 4 offset loads from scratch ----
    p1_ref[...] = jnp.maximum(
        jnp.maximum(c1_ref[:, 0:L_p1], c1_ref[:, 1:L_p1 + 1]),
        jnp.maximum(c1_ref[:, 28:L_p1 + 28], c1_ref[:, 29:L_p1 + 29]))

    # ---- conv2 3x3 (valid): im2col (9 taps) + ONE bf16 MXU matmul (K=72) ---
    for p in range(9):
        s = 56 * (p // 3) + 2 * (p % 3)
        p1stk_ref[p * O1:(p + 1) * O1, :] = p1_ref[:, s:s + L_c2]
    c2 = jnp.dot(w2_ref[...], p1stk_ref[...], preferred_element_type=f32)
    c2_ref[...] = jnp.maximum(c2 + b2_ref[...], 0.0)

    # ---- maxpool2 2x2/2 -----------------------------------------------------
    p2 = jnp.maximum(
        jnp.maximum(c2_ref[:, 0:L_p2], c2_ref[:, 2:L_p2 + 2]),
        jnp.maximum(c2_ref[:, 56:L_p2 + 56], c2_ref[:, 58:L_p2 + 58]))

    # ---- flatten: ONE 0/1-gather matmul picks the 25 valid lanes per image,
    #      then 25 aligned (O2, B) block copies build the (400, B) stack. ----
    f2 = jnp.dot(p2, g2_ref[...], preferred_element_type=f32)   # (O2, 25*B)
    for j in range(25):
        p2stk_ref[j * O2:(j + 1) * O2, :] = f2[:, j * B:(j + 1) * B]

    # ---- map_fc / sensor_fc (feature-major), concat, fused heads -----------
    mf = jnp.maximum(
        jnp.dot(wm_ref[...], p2stk_ref[...], preferred_element_type=f32)
        + bm_ref[...], 0.0)                                     # (HID, B)
    sf = jnp.maximum(
        jnp.dot(ws_ref[...], sens_ref[...], preferred_element_type=f32)
        + bs_ref[...], 0.0)                                     # (HID, B)
    comb = jnp.concatenate([mf, sf], axis=0)                    # (2*HID, B)
    out_ref[...] = (jnp.dot(wh_ref[...], comb, preferred_element_type=f32)
                    + bh_ref[...]).astype(out_ref.dtype)        # (n_out, B)


def _full_vmem_spec(shape):
    n = len(shape)
    return pl.BlockSpec(shape, lambda *_: (0,) * n)


# ----------------------------------------------------------------------------
# Forward pass wrapper (mirrors Actor_Critic.forward)
# ----------------------------------------------------------------------------
def actor_critic_forward(packed, s_map, s_sensor):
    B, C, Hm, Wm = s_map.shape
    # The module's 16*5*5 flatten implies 24x24 maps / 5x5 pad-2 conv /
    # 2x2 pool / 3x3 valid conv / 2x2 pool.  The lane-extent derivations below
    # are only valid under exactly those hyper-parameters.
    assert (Hm, Wm) == (24, 24), "flat-lane layout assumes 24x24 input maps"

    # Telescoping lane extents: each stage only needs enough lanes to feed the
    # shifted slices read by the next stage.
    L_p2 = (B - 1) * _S + 112 * 4 + 4 * 4 + 1   # pool2 lanes actually read
    L_c2 = L_p2 + 58                            # conv2 (+ pool2 taps 0/2/56/58)
    L_p1 = L_c2 + 116                           # pool1 (+ conv2 taps 56ki+2kj)
    L_c1 = L_p1 + 29                            # conv1 (+ pool1 taps 0/1/28/29)
    assert L_c1 + 116 == B * _S                 # deepest conv1 slice in bounds

    # uint8 -> bf16 (exact for 0..255), pad 2, (B,C,28,28) -> (C, B*784).
    # TODO(synk): this ~13 KiB cast/pad/relayout is the only XLA glue left;
    # fold it into the kernel via an offset DMA if batch gets large.
    x = s_map.astype(jnp.bfloat16)
    x = jnp.pad(x, ((0, 0), (0, 0), (2, 2), (2, 2)))
    x2d = jnp.transpose(x, (1, 0, 2, 3)).reshape(C, B * _S)
    sens_t = s_sensor.astype(jnp.float32).T                    # (sensor_dim, B)

    # 0/1 gather matrix: pool2 lane b*784 + 112y + 4x -> column j*B + b, j=5y+x
    g2 = np.zeros((L_p2, 25 * B), np.float32)
    for b in range(B):
        for j in range(25):
            g2[b * _S + 112 * (j // 5) + 4 * (j % 5), j * B + b] = 1.0
    g2 = jnp.asarray(g2)

    n_out = packed["wh"].shape[0]               # action_dim + 1 + 2
    o1 = packed["b1"].shape[0]                  # 8
    o2 = packed["b2"].shape[0]                  # 16

    args = (x2d, sens_t, packed["w1"], packed["b1"], packed["w2"],
            packed["b2"], packed["wm"], packed["bm"], packed["ws"],
            packed["bs"], packed["wh"], packed["bh"], g2)

    out_t = pl.pallas_call(
        _actor_critic_kernel,
        out_shape=jax.ShapeDtypeStruct((n_out, B), jnp.float32),
        in_specs=[_full_vmem_spec(a.shape) for a in args],
        out_specs=_full_vmem_spec((n_out, B)),
        scratch_shapes=[
            pltpu.VMEM((25 * C, L_c1), jnp.bfloat16),   # conv1 im2col stack
            pltpu.VMEM((o1, L_c1), jnp.bfloat16),       # conv1 output
            pltpu.VMEM((o1, L_p1), jnp.bfloat16),       # pool1 output
            pltpu.VMEM((9 * o1, L_c2), jnp.bfloat16),   # conv2 im2col stack
            pltpu.VMEM((o2, L_c2), jnp.float32),        # conv2 output
            pltpu.VMEM((25 * o2, B), jnp.float32),      # flattened pool2 (400,B)
        ],
    )(*args)

    out = out_t.T                                       # (B, n_out)
    a_dim = n_out - 3
    action_logits = out[:, :a_dim]
    state_value = out[:, a_dim]                         # critic .squeeze(-1)
    destination = out[:, a_dim + 1:]
    return action_logits, state_value, destination


# ----------------------------------------------------------------------------
# Parameter init (PyTorch layout) + one-time packing for the kernel
# ----------------------------------------------------------------------------
def orthogonal_(key, shape2d, gain):
    rows, cols = shape2d
    a = jax.random.normal(key, (rows, cols) if rows >= cols else (cols, rows),
                          dtype=jnp.float32)
    q, r = jnp.linalg.qr(a)
    d = jnp.sign(jnp.diag(r))
    d = jnp.where(d == 0, 1.0, d)
    q = q * d
    if rows < cols:
        q = q.T
    return gain * q[:rows, :cols]


def init_params(key, c_in, sensor_dim, hidden_dim, action_dim):
    g = math.sqrt(2)
    ks = jax.random.split(key, 7)
    p = {}
    p["conv1_w"] = orthogonal_(ks[0], (8, c_in * 25), g).reshape(8, c_in, 5, 5)
    p["conv1_b"] = jnp.zeros((8,), jnp.float32)
    p["conv2_w"] = orthogonal_(ks[1], (16, 8 * 9), g).reshape(16, 8, 3, 3)
    p["conv2_b"] = jnp.zeros((16,), jnp.float32)
    p["map_fc_w"] = orthogonal_(ks[2], (hidden_dim, 16 * 5 * 5), g)
    p["map_fc_b"] = jnp.zeros((hidden_dim,), jnp.float32)
    p["sensor_fc_w"] = orthogonal_(ks[3], (hidden_dim, sensor_dim), g)
    p["sensor_fc_b"] = jnp.zeros((hidden_dim,), jnp.float32)
    p["actor_w"] = orthogonal_(ks[4], (action_dim, hidden_dim * 2), 0.01)
    p["actor_b"] = jnp.zeros((action_dim,), jnp.float32)
    p["critic_w"] = orthogonal_(ks[5], (1, hidden_dim * 2), 1.0)
    p["critic_b"] = jnp.zeros((1,), jnp.float32)
    p["dest_w"] = orthogonal_(ks[6], (2, hidden_dim * 2), 1.0)
    p["dest_b"] = jnp.zeros((2,), jnp.float32)
    return p


def pack_params(p):
    """One-time weight re-layout (done outside the jitted forward)."""
    hid = p["map_fc_w"].shape[0]
    c_in = p["conv1_w"].shape[1]
    # conv1 taps stacked on the contraction dim; column order (tap, channel).
    w1 = jnp.transpose(p["conv1_w"], (2, 3, 1, 0)).reshape(25 * c_in, 8).T
    w2 = jnp.transpose(p["conv2_w"], (2, 3, 1, 0)).reshape(9 * 8, 16).T
    # map_fc columns reordered to (spatial j, channel c) to match the kernel's
    # (400, B) flatten stack.
    wm = jnp.transpose(p["map_fc_w"].reshape(hid, 16, 5, 5),
                       (0, 2, 3, 1)).reshape(hid, 400)
    return {
        "w1": (w1 * (1.0 / 255.0)).astype(jnp.bfloat16),   # /255 folded in
        "b1": p["conv1_b"].reshape(8, 1),
        "w2": w2.astype(jnp.bfloat16),
        "b2": p["conv2_b"].reshape(16, 1),
        "wm": wm,
        "bm": p["map_fc_b"].reshape(hid, 1),
        "ws": p["sensor_fc_w"],                            # (hid, sensor_dim)
        "bs": p["sensor_fc_b"].reshape(hid, 1),
        "wh": jnp.concatenate([p["actor_w"], p["critic_w"], p["dest_w"]],
                              axis=0),                     # (n_out, 2*hid)
        "bh": jnp.concatenate([p["actor_b"], p["critic_b"], p["dest_b"]]
                              ).reshape(-1, 1),
    }


# ----------------------------------------------------------------------------
# Plain-JAX reference of the PyTorch module (sanity check only)
# ----------------------------------------------------------------------------
def reference_forward(p, s_map, s_sensor):
    dn = ("NCHW", "OIHW", "NCHW")
    x = s_map.astype(jnp.float32) / 255.0
    y = jax.lax.conv_general_dilated(x, p["conv1_w"], (1, 1),
                                     ((2, 2), (2, 2)), dimension_numbers=dn)
    y = jax.nn.relu(y + p["conv1_b"][None, :, None, None])
    y = jax.lax.reduce_window(y, -jnp.inf, jax.lax.max,
                              (1, 1, 2, 2), (1, 1, 2, 2), "VALID")
    y = jax.lax.conv_general_dilated(y, p["conv2_w"], (1, 1),
                                     ((0, 0), (0, 0)), dimension_numbers=dn)
    y = jax.nn.relu(y + p["conv2_b"][None, :, None, None])
    y = jax.lax.reduce_window(y, -jnp.inf, jax.lax.max,
                              (1, 1, 2, 2), (1, 1, 2, 2), "VALID")
    flat = y.reshape(y.shape[0], -1)
    mf = jax.nn.relu(flat @ p["map_fc_w"].T + p["map_fc_b"])
    sf = jax.nn.relu(s_sensor.astype(jnp.float32) @ p["sensor_fc_w"].T
                     + p["sensor_fc_b"])
    comb = jnp.concatenate([mf, sf], axis=-1)
    logits = comb @ p["actor_w"].T + p["actor_b"]
    value = (comb @ p["critic_w"].T + p["critic_b"])[:, 0]
    dest = comb @ p["dest_w"].T + p["dest_b"]
    return logits, value, dest


# ----------------------------------------------------------------------------
# Demo
# ----------------------------------------------------------------------------
if __name__ == "__main__":
    B = 2
    C_IN = 4            # config.s_map_dim[0]
    H = W = 24          # spatial size implied by the 16*5*5 flatten
    SENSOR_DIM = 16     # config.s_sensor_dim[0]
    HIDDEN = 32         # config.hidden_dim
    ACTION_DIM = 6      # config.action_dim

    key = jax.random.PRNGKey(0)
    k_map, k_sensor, k_params = jax.random.split(key, 3)

    s_map = jax.random.randint(k_map, (B, C_IN, H, W), 0, 256,
                               dtype=jnp.int32).astype(jnp.uint8)
    s_sensor = jax.random.normal(k_sensor, (B, SENSOR_DIM), dtype=jnp.float32)

    params = init_params(k_params, C_IN, SENSOR_DIM, HIDDEN, ACTION_DIM)
    packed = pack_params(params)             # one-time weight re-layout

    fwd = jax.jit(actor_critic_forward)
    logits, value, dest = fwd(packed, s_map, s_sensor)
    jax.block_until_ready((logits, value, dest))

    assert logits.shape == (B, ACTION_DIM)
    assert value.shape == (B,)
    assert dest.shape == (B, 2)

    # sanity check against a plain-JAX reference of the PyTorch module
    ref_logits, ref_value, ref_dest = jax.jit(reference_forward)(
        params, s_map, s_sensor)
    np.testing.assert_allclose(np.asarray(logits), np.asarray(ref_logits),
                               rtol=5e-2, atol=5e-2)
    np.testing.assert_allclose(np.asarray(value), np.asarray(ref_value),
                               rtol=5e-2, atol=5e-2)
    np.testing.assert_allclose(np.asarray(dest), np.asarray(ref_dest),
                               rtol=5e-2, atol=5e-2)

    print("KERNEL_OK")
</pallas_src>

<mosaic_0001>
module attributes {stable_mosaic.version = 11 : i64} {
  func.func @_actor_critic_kernel(%arg0: memref<4x1568xbf16, #tpu.memory_space<vmem>>, %arg1: memref<16x2xf32, #tpu.memory_space<vmem>>, %arg2: memref<8x100xbf16, #tpu.memory_space<vmem>>, %arg3: memref<8x1xf32, #tpu.memory_space<vmem>>, %arg4: memref<16x72xbf16, #tpu.memory_space<vmem>>, %arg5: memref<16x1xf32, #tpu.memory_space<vmem>>, %arg6: memref<32x400xf32, #tpu.memory_space<vmem>>, %arg7: memref<32x1xf32, #tpu.memory_space<vmem>>, %arg8: memref<32x16xf32, #tpu.memory_space<vmem>>, %arg9: memref<32x1xf32, #tpu.memory_space<vmem>>, %arg10: memref<9x64xf32, #tpu.memory_space<vmem>>, %arg11: memref<9x1xf32, #tpu.memory_space<vmem>>, %arg12: memref<1249x50xf32, #tpu.memory_space<vmem>>, %arg13: memref<9x2xf32, #tpu.memory_space<vmem>>, %arg14: memref<100x1452xbf16, #tpu.memory_space<vmem>>, %arg15: memref<8x1452xbf16, #tpu.memory_space<vmem>>, %arg16: memref<8x1423xbf16, #tpu.memory_space<vmem>>, %arg17: memref<72x1307xbf16, #tpu.memory_space<vmem>>, %arg18: memref<16x1307xf32, #tpu.memory_space<vmem>>, %arg19: memref<400x2xf32, #tpu.memory_space<vmem>>) attributes {dimension_semantics = [], scalar_prefetch = 0 : i64, scratch_operands = 6 : i64, tpu.core_type = #tpu.core_type<tc>} {
    %c0 = arith.constant 0 : index
    %c0_0 = arith.constant 0 : index
    %0 = vector.load %arg0[%c0, %c0_0] : memref<4x1568xbf16, #tpu.memory_space<vmem>>, vector<4x1452xbf16>
    %c0_1 = arith.constant 0 : index
    %c0_2 = arith.constant 0 : index
    %1 = vector.load %arg14[%c0_1, %c0_2] : memref<100x1452xbf16, #tpu.memory_space<vmem>>, vector<4x1452xbf16>
    tpu.vector_store %arg14[%c0_1, %c0_2], %0 {strides = array<i32>} : memref<100x1452xbf16, #tpu.memory_space<vmem>>, vector<4x1452xbf16>,
    %c0_3 = arith.constant 0 : index
    %c1 = arith.constant 1 : index
    %2 = vector.load %arg0[%c0_3, %c1] : memref<4x1568xbf16, #tpu.memory_space<vmem>>, vector<4x1452xbf16>
    %c4 = arith.constant 4 : index
    %c0_4 = arith.constant 0 : index
    %3 = vector.load %arg14[%c4, %c0_4] : memref<100x1452xbf16, #tpu.memory_space<vmem>>, vector<4x1452xbf16>
    tpu.vector_store %arg14[%c4, %c0_4], %2 {strides = array<i32>} : memref<100x1452xbf16, #tpu.memory_space<vmem>>, vector<4x1452xbf16>,
    %c0_5 = arith.constant 0 : index
    %c2 = arith.constant 2 : index
    %4 = vector.load %arg0[%c0_5, %c2] : memref<4x1568xbf16, #tpu.memory_space<vmem>>, vector<4x1452xbf16>
    %c8 = arith.constant 8 : index
    %c0_6 = arith.constant 0 : index
    %5 = vector.load %arg14[%c8, %c0_6] : memref<100x1452xbf16, #tpu.memory_space<vmem>>, vector<4x1452xbf16>
    tpu.vector_store %arg14[%c8, %c0_6], %4 {strides = array<i32>} : memref<100x1452xbf16, #tpu.memory_space<vmem>>, vector<4x1452xbf16>,
    %c0_7 = arith.constant 0 : index
    %c3 = arith.constant 3 : index
    %6 = vector.load %arg0[%c0_7, %c3] : memref<4x1568xbf16, #tpu.memory_space<vmem>>, vector<4x1452xbf16>
    %c12 = arith.constant 12 : index
    %c0_8 = arith.constant 0 : index
    %7 = vector.load %arg14[%c12, %c0_8] : memref<100x1452xbf16, #tpu.memory_space<vmem>>, vector<4x1452xbf16>
    tpu.vector_store %arg14[%c12, %c0_8], %6 {strides = array<i32>} : memref<100x1452xbf16, #tpu.memory_space<vmem>>, vector<4x1452xbf16>,
    %c0_9 = arith.constant 0 : index
    %c4_10 = arith.constant 4 : index
    %8 = vector.load %arg0[%c0_9, %c4_10] : memref<4x1568xbf16, #tpu.memory_space<vmem>>, vector<4x1452xbf16>
    %c16 = arith.constant 16 : index
    %c0_11 = arith.constant 0 : index
    %9 = vector.load %arg14[%c16, %c0_11] : memref<100x1452xbf16, #tpu.memory_space<vmem>>, vector<4x1452xbf16>
    tpu.vector_store %arg14[%c16, %c0_11], %8 {strides = array<i32>} : memref<100x1452xbf16, #tpu.memory_space<vmem>>, vector<4x1452xbf16>,
    %c0_12 = arith.constant 0 : index
    %c28 = arith.constant 28 : index
    %10 = vector.load %arg0[%c0_12, %c28] : memref<4x1568xbf16, #tpu.memory_space<vmem>>, vector<4x1452xbf16>
    %c20 = arith.constant 20 : index
    %c0_13 = arith.constant 0 : index
    %11 = vector.load %arg14[%c20, %c0_13] : memref<100x1452xbf16, #tpu.memory_space<vmem>>, vector<4x1452xbf16>
    tpu.vector_store %arg14[%c20, %c0_13], %10 {strides = array<i32>} : memref<100x1452xbf16, #tpu.memory_space<vmem>>, vector<4x1452xbf16>,
    %c0_14 = arith.constant 0 : index
    %c29 = arith.constant 29 : index
    %12 = vector.load %arg0[%c0_14, %c29] : memref<4x1568xbf16, #tpu.memory_space<vmem>>, vector<4x1452xbf16>
    %c24 = arith.constant 24 : index
    %c0_15 = arith.constant 0 : index
    %13 = vector.load %arg14[%c24, %c0_15] : memref<100x1452xbf16, #tpu.memory_space<vmem>>, vector<4x1452xbf16>
    tpu.vector_store %arg14[%c24, %c0_15], %12 {strides = array<i32>} : memref<100x1452xbf16, #tpu.memory_space<vmem>>, vector<4x1452xbf16>,
    %c0_16 = arith.constant 0 : index
    %c30 = arith.constant 30 : index
    %14 = vector.load %arg0[%c0_16, %c30] : memref<4x1568xbf16, #tpu.memory_space<vmem>>, vector<4x1452xbf16>
    %c28_17 = arith.constant 28 : index
    %c0_18 = arith.constant 0 : index
    %15 = vector.load %arg14[%c28_17, %c0_18] : memref<100x1452xbf16, #tpu.memory_space<vmem>>, vector<4x1452xbf16>
    tpu.vector_store %arg14[%c28_17, %c0_18], %14 {strides = array<i32>} : memref<100x1452xbf16, #tpu.memory_space<vmem>>, vector<4x1452xbf16>,
    %c0_19 = arith.constant 0 : index
    %c31 = arith.constant 31 : index
    %16 = vector.load %arg0[%c0_19, %c31] : memref<4x1568xbf16, #tpu.memory_space<vmem>>, vector<4x1452xbf16>
    %c32 = arith.constant 32 : index
    %c0_20 = arith.constant 0 : index
    %17 = vector.load %arg14[%c32, %c0_20] : memref<100x1452xbf16, #tpu.memory_space<vmem>>, vector<4x1452xbf16>
    tpu.vector_store %arg14[%c32, %c0_20], %16 {strides = array<i32>} : memref<100x1452xbf16, #tpu.memory_space<vmem>>, vector<4x1452xbf16>,
    %c0_21 = arith.constant 0 : index
    %c32_22 = arith.constant 32 : index
    %18 = vector.load %arg0[%c0_21, %c32_22] : memref<4x1568xbf16, #tpu.memory_space<vmem>>, vector<4x1452xbf16>
    %c36 = arith.constant 36 : index
    %c0_23 = arith.constant 0 : index
    %19 = vector.load %arg14[%c36, %c0_23] : memref<100x1452xbf16, #tpu.memory_space<vmem>>, vector<4x1452xbf16>
    tpu.vector_store %arg14[%c36, %c0_23], %18 {strides = array<i32>} : memref<100x1452xbf16, #tpu.memory_space<vmem>>, vector<4x1452xbf16>,
    %c0_24 = arith.constant 0 : index
    %c56 = arith.constant 56 : index
    %20 = vector.load %arg0[%c0_24, %c56] : memref<4x1568xbf16, #tpu.memory_space<vmem>>, vector<4x1452xbf16>
    %c40 = arith.constant 40 : index
    %c0_25 = arith.constant 0 : index
    %21 = vector.load %arg14[%c40, %c0_25] : memref<100x1452xbf16, #tpu.memory_space<vmem>>, vector<4x1452xbf16>
    tpu.vector_store %arg14[%c40, %c0_25], %20 {strides = array<i32>} : memref<100x1452xbf16, #tpu.memory_space<vmem>>, vector<4x1452xbf16>,
    %c0_26 = arith.constant 0 : index
    %c57 = arith.constant 57 : index
    %22 = vector.load %arg0[%c0_26, %c57] : memref<4x1568xbf16, #tpu.memory_space<vmem>>, vector<4x1452xbf16>
    %c44 = arith.constant 44 : index
    %c0_27 = arith.constant 0 : index
    %23 = vector.load %arg14[%c44, %c0_27] : memref<100x1452xbf16, #tpu.memory_space<vmem>>, vector<4x1452xbf16>
    tpu.vector_store %arg14[%c44, %c0_27], %22 {strides = array<i32>} : memref<100x1452xbf16, #tpu.memory_space<vmem>>, vector<4x1452xbf16>,
    %c0_28 = arith.constant 0 : index
    %c58 = arith.constant 58 : index
    %24 = vector.load %arg0[%c0_28, %c58] : memref<4x1568xbf16, #tpu.memory_space<vmem>>, vector<4x1452xbf16>
    %c48 = arith.constant 48 : index
    %c0_29 = arith.constant 0 : index
    %25 = vector.load %arg14[%c48, %c0_29] : memref<100x1452xbf16, #tpu.memory_space<vmem>>, vector<4x1452xbf16>
    tpu.vector_store %arg14[%c48, %c0_29], %24 {strides = array<i32>} : memref<100x1452xbf16, #tpu.memory_space<vmem>>, vector<4x1452xbf16>,
    %c0_30 = arith.constant 0 : index
    %c59 = arith.constant 59 : index
    %26 = vector.load %arg0[%c0_30, %c59] : memref<4x1568xbf16, #tpu.memory_space<vmem>>, vector<4x1452xbf16>
    %c52 = arith.constant 52 : index
    %c0_31 = arith.constant 0 : index
    %27 = vector.load %arg14[%c52, %c0_31] : memref<100x1452xbf16, #tpu.memory_space<vmem>>, vector<4x1452xbf16>
    tpu.vector_store %arg14[%c52, %c0_31], %26 {strides = array<i32>} : memref<100x1452xbf16, #tpu.memory_space<vmem>>, vector<4x1452xbf16>,
    %c0_32 = arith.constant 0 : index
    %c60 = arith.constant 60 : index
    %28 = vector.load %arg0[%c0_32, %c60] : memref<4x1568xbf16, #tpu.memory_space<vmem>>, vector<4x1452xbf16>
    %c56_33 = arith.constant 56 : index
    %c0_34 = arith.constant 0 : index
    %29 = vector.load %arg14[%c56_33, %c0_34] : memref<100x1452xbf16, #tpu.memory_space<vmem>>, vector<4x1452xbf16>
    tpu.vector_store %arg14[%c56_33, %c0_34], %28 {strides = array<i32>} : memref<100x1452xbf16, #tpu.memory_space<vmem>>, vector<4x1452xbf16>,
    %c0_35 = arith.constant 0 : index
    %c84 = arith.constant 84 : index
    %30 = vector.load %arg0[%c0_35, %c84] : memref<4x1568xbf16, #tpu.memory_space<vmem>>, vector<4x1452xbf16>
    %c60_36 = arith.constant 60 : index
    %c0_37 = arith.constant 0 : index
    %31 = vector.load %arg14[%c60_36, %c0_37] : memref<100x1452xbf16, #tpu.memory_space<vmem>>, vector<4x1452xbf16>
    tpu.vector_store %arg14[%c60_36, %c0_37], %30 {strides = array<i32>} : memref<100x1452xbf16, #tpu.memory_space<vmem>>, vector<4x1452xbf16>,
    %c0_38 = arith.constant 0 : index
    %c85 = arith.constant 85 : index
    %32 = vector.load %arg0[%c0_38, %c85] : memref<4x1568xbf16, #tpu.memory_space<vmem>>, vector<4x1452xbf16>
    %c64 = arith.constant 64 : index
    %c0_39 = arith.constant 0 : index
    %33 = vector.load %arg14[%c64, %c0_39] : memref<100x1452xbf16, #tpu.memory_space<vmem>>, vector<4x1452xbf16>
    tpu.vector_store %arg14[%c64, %c0_39], %32 {strides = array<i32>} : memref<100x1452xbf16, #tpu.memory_space<vmem>>, vector<4x1452xbf16>,
    %c0_40 = arith.constant 0 : index
    %c86 = arith.constant 86 : index
    %34 = vector.load %arg0[%c0_40, %c86] : memref<4x1568xbf16, #tpu.memory_space<vmem>>, vector<4x1452xbf16>
    %c68 = arith.constant 68 : index
    %c0_41 = arith.constant 0 : index
    %35 = vector.load %arg14[%c68, %c0_41] : memref<100x1452xbf16, #tpu.memory_space<vmem>>, vector<4x1452xbf16>
    tpu.vector_store %arg14[%c68, %c0_41], %34 {strides = array<i32>} : memref<100x1452xbf16, #tpu.memory_space<vmem>>, vector<4x1452xbf16>,
    %c0_42 = arith.constant 0 : index
    %c87 = arith.constant 87 : index
    %36 = vector.load %arg0[%c0_42, %c87] : memref<4x1568xbf16, #tpu.memory_space<vmem>>, vector<4x1452xbf16>
    %c72 = arith.constant 72 : index
    %c0_43 = arith.constant 0 : index
    %37 = vector.load %arg14[%c72, %c0_43] : memref<100x1452xbf16, #tpu.memory_space<vmem>>, vector<4x1452xbf16>
    tpu.vector_store %arg14[%c72, %c0_43], %36 {strides = array<i32>} : memref<100x1452xbf16, #tpu.memory_space<vmem>>, vector<4x1452xbf16>,
    %c0_44 = arith.constant 0 : index
    %c88 = arith.constant 88 : index
    %38 = vector.load %arg0[%c0_44, %c88] : memref<4x1568xbf16, #tpu.memory_space<vmem>>, vector<4x1452xbf16>
    %c76 = arith.constant 76 : index
    %c0_45 = arith.constant 0 : index
    %39 = vector.load %arg14[%c76, %c0_45] : memref<100x1452xbf16, #tpu.memory_space<vmem>>, vector<4x1452xbf16>
    tpu.vector_store %arg14[%c76, %c0_45], %38 {strides = array<i32>} : memref<100x1452xbf16, #tpu.memory_space<vmem>>, vector<4x1452xbf16>,
    %c0_46 = arith.constant 0 : index
    %c112 = arith.constant 112 : index
    %40 = vector.load %arg0[%c0_46, %c112] : memref<4x1568xbf16, #tpu.memory_space<vmem>>, vector<4x1452xbf16>
    %c80 = arith.constant 80 : index
    %c0_47 = arith.constant 0 : index
    %41 = vector.load %arg14[%c80, %c0_47] : memref<100x1452xbf16, #tpu.memory_space<vmem>>, vector<4x1452xbf16>
    tpu.vector_store %arg14[%c80, %c0_47], %40 {strides = array<i32>} : memref<100x1452xbf16, #tpu.memory_space<vmem>>, vector<4x1452xbf16>,
    %c0_48 = arith.constant 0 : index
    %c113 = arith.constant 113 : index
    %42 = vector.load %arg0[%c0_48, %c113] : memref<4x1568xbf16, #tpu.memory_space<vmem>>, vector<4x1452xbf16>
    %c84_49 = arith.constant 84 : index
    %c0_50 = arith.constant 0 : index
    %43 = vector.load %arg14[%c84_49, %c0_50] : memref<100x1452xbf16, #tpu.memory_space<vmem>>, vector<4x1452xbf16>
    tpu.vector_store %arg14[%c84_49, %c0_50], %42 {strides = array<i32>} : memref<100x1452xbf16, #tpu.memory_space<vmem>>, vector<4x1452xbf16>,
    %c0_51 = arith.constant 0 : index
    %c114 = arith.constant 114 : index
    %44 = vector.load %arg0[%c0_51, %c114] : memref<4x1568xbf16, #tpu.memory_space<vmem>>, vector<4x1452xbf16>
    %c88_52 = arith.constant 88 : index
    %c0_53 = arith.constant 0 : index
    %45 = vector.load %arg14[%c88_52, %c0_53] : memref<100x1452xbf16, #tpu.memory_space<vmem>>, vector<4x1452xbf16>
    tpu.vector_store %arg14[%c88_52, %c0_53], %44 {strides = array<i32>} : memref<100x1452xbf16, #tpu.memory_space<vmem>>, vector<4x1452xbf16>,
    %c0_54 = arith.constant 0 : index
    %c115 = arith.constant 115 : index
    %46 = vector.load %arg0[%c0_54, %c115] : memref<4x1568xbf16, #tpu.memory_space<vmem>>, vector<4x1452xbf16>
    %c92 = arith.constant 92 : index
    %c0_55 = arith.constant 0 : index
    %47 = vector.load %arg14[%c92, %c0_55] : memref<100x1452xbf16, #tpu.memory_space<vmem>>, vector<4x1452xbf16>
    tpu.vector_store %arg14[%c92, %c0_55], %46 {strides = array<i32>} : memref<100x1452xbf16, #tpu.memory_space<vmem>>, vector<4x1452xbf16>,
    %c0_56 = arith.constant 0 : index
    %c116 = arith.constant 116 : index
    %48 = vector.load %arg0[%c0_56, %c116] : memref<4x1568xbf16, #tpu.memory_space<vmem>>, vector<4x1452xbf16>
    %c96 = arith.constant 96 : index
    %c0_57 = arith.constant 0 : index
    %49 = vector.load %arg14[%c96, %c0_57] : memref<100x1452xbf16, #tpu.memory_space<vmem>>, vector<4x1452xbf16>
    tpu.vector_store %arg14[%c96, %c0_57], %48 {strides = array<i32>} : memref<100x1452xbf16, #tpu.memory_space<vmem>>, vector<4x1452xbf16>,
    %c0_58 = arith.constant 0 : index
    %c0_59 = arith.constant 0 : index
    %50 = vector.load %arg2[%c0_58, %c0_59] : memref<8x100xbf16, #tpu.memory_space<vmem>>, vector<8x100xbf16>
    %c0_60 = arith.constant 0 : index
    %c0_61 = arith.constant 0 : index
    %51 = vector.load %arg14[%c0_60, %c0_61] : memref<100x1452xbf16, #tpu.memory_space<vmem>>, vector<100x1452xbf16>
    %cst = arith.constant dense<0.000000e+00> : vector<8x1452xf32>
    %52 = tpu.matmul %50, %51, %cst {dimension_numbers = #tpu.dot_dimension_numbers<[1], [0], [0], [1], [0, 0, 1, 1], [], []>} : vector<8x100xbf16>, vector<100x1452xbf16>, vector<8x1452xf32> -> vector<8x1452xf32>
    %c0_62 = arith.constant 0 : index
    %c0_63 = arith.constant 0 : index
    %53 = vector.load %arg3[%c0_62, %c0_63] : memref<8x1xf32, #tpu.memory_space<vmem>>, vector<8x1xf32>
    %54 = vector.broadcast %53 : vector<8x1xf32> to vector<8x1452xf32>
    %55 = arith.addf %52, %54 : vector<8x1452xf32>
    %cst_64 = arith.constant 0.000000e+00 : f32
    %56 = vector.broadcast %cst_64 : f32 to vector<8x1452xf32>
    %57 = arith.maximumf %55, %56 : vector<8x1452xf32>
    %58 = arith.truncf %57 : vector<8x1452xf32> to vector<8x1452xbf16>
    %c0_65 = arith.constant 0 : index
    %c0_66 = arith.constant 0 : index
    %59 = vector.load %arg15[%c0_65, %c0_66] : memref<8x1452xbf16, #tpu.memory_space<vmem>>, vector<8x1452xbf16>
    tpu.vector_store %arg15[%c0_65, %c0_66], %58 {strides = array<i32>} : memref<8x1452xbf16, #tpu.memory_space<vmem>>, vector<8x1452xbf16>,
    %c0_67 = arith.constant 0 : index
    %c0_68 = arith.constant 0 : index
    %60 = vector.load %arg15[%c0_67, %c0_68] : memref<8x1452xbf16, #tpu.memory_space<vmem>>, vector<8x1423xbf16>
    %c0_69 = arith.constant 0 : index
    %c1_70 = arith.constant 1 : index
    %61 = vector.load %arg15[%c0_69, %c1_70] : memref<8x1452xbf16, #tpu.memory_space<vmem>>, vector<8x1423xbf16>
    %62 = arith.maximumf %60, %61 : vector<8x1423xbf16>
    %c0_71 = arith.constant 0 : index
    %c28_72 = arith.constant 28 : index
    %63 = vector.load %arg15[%c0_71, %c28_72] : memref<8x1452xbf16, #tpu.memory_space<vmem>>, vector<8x1423xbf16>
    %c0_73 = arith.constant 0 : index
    %c29_74 = arith.constant 29 : index
    %64 = vector.load %arg15[%c0_73, %c29_74] : memref<8x1452xbf16, #tpu.memory_space<vmem>>, vector<8x1423xbf16>
    %65 = arith.maximumf %63, %64 : vector<8x1423xbf16>
    %66 = arith.maximumf %62, %65 : vector<8x1423xbf16>
    %c0_75 = arith.constant 0 : index
    %c0_76 = arith.constant 0 : index
    %67 = vector.load %arg16[%c0_75, %c0_76] : memref<8x1423xbf16, #tpu.memory_space<vmem>>, vector<8x1423xbf16>
    tpu.vector_store %arg16[%c0_75, %c0_76], %66 {strides = array<i32>} : memref<8x1423xbf16, #tpu.memory_space<vmem>>, vector<8x1423xbf16>,
    %c0_77 = arith.constant 0 : index
    %c0_78 = arith.constant 0 : index
    %68 = vector.load %arg16[%c0_77, %c0_78] : memref<8x1423xbf16, #tpu.memory_space<vmem>>, vector<8x1307xbf16>
    %c0_79 = arith.constant 0 : index
    %c0_80 = arith.constant 0 : index
    %69 = vector.load %arg17[%c0_79, %c0_80] : memref<72x1307xbf16, #tpu.memory_space<vmem>>, vector<8x1307xbf16>
    tpu.vector_store %arg17[%c0_79, %c0_80], %68 {strides = array<i32>} : memref<72x1307xbf16, #tpu.memory_space<vmem>>, vector<8x1307xbf16>,
    %c0_81 = arith.constant 0 : index
    %c2_82 = arith.constant 2 : index
    %70 = vector.load %arg16[%c0_81, %c2_82] : memref<8x1423xbf16, #tpu.memory_space<vmem>>, vector<8x1307xbf16>
    %c8_83 = arith.constant 8 : index
    %c0_84 = arith.constant 0 : index
    %71 = vector.load %arg17[%c8_83, %c0_84] : memref<72x1307xbf16, #tpu.memory_space<vmem>>, vector<8x1307xbf16>
    tpu.vector_store %arg17[%c8_83, %c0_84], %70 {strides = array<i32>} : memref<72x1307xbf16, #tpu.memory_space<vmem>>, vector<8x1307xbf16>,
    %c0_85 = arith.constant 0 : index
    %c4_86 = arith.constant 4 : index
    %72 = vector.load %arg16[%c0_85, %c4_86] : memref<8x1423xbf16, #tpu.memory_space<vmem>>, vector<8x1307xbf16>
    %c16_87 = arith.constant 16 : index
    %c0_88 = arith.constant 0 : index
    %73 = vector.load %arg17[%c16_87, %c0_88] : memref<72x1307xbf16, #tpu.memory_space<vmem>>, vector<8x1307xbf16>
    tpu.vector_store %arg17[%c16_87, %c0_88], %72 {strides = array<i32>} : memref<72x1307xbf16, #tpu.memory_space<vmem>>, vector<8x1307xbf16>,
    %c0_89 = arith.constant 0 : index
    %c56_90 = arith.constant 56 : index
    %74 = vector.load %arg16[%c0_89, %c56_90] : memref<8x1423xbf16, #tpu.memory_space<vmem>>, vector<8x1307xbf16>
    %c24_91 = arith.constant 24 : index
    %c0_92 = arith.constant 0 : index
    %75 = vector.load %arg17[%c24_91, %c0_92] : memref<72x1307xbf16, #tpu.memory_space<vmem>>, vector<8x1307xbf16>
    tpu.vector_store %arg17[%c24_91, %c0_92], %74 {strides = array<i32>} : memref<72x1307xbf16, #tpu.memory_space<vmem>>, vector<8x1307xbf16>,
    %c0_93 = arith.constant 0 : index
    %c58_94 = arith.constant 58 : index
    %76 = vector.load %arg16[%c0_93, %c58_94] : memref<8x1423xbf16, #tpu.memory_space<vmem>>, vector<8x1307xbf16>
    %c32_95 = arith.constant 32 : index
    %c0_96 = arith.constant 0 : index
    %77 = vector.load %arg17[%c32_95, %c0_96] : memref<72x1307xbf16, #tpu.memory_space<vmem>>, vector<8x1307xbf16>
    tpu.vector_store %arg17[%c32_95, %c0_96], %76 {strides = array<i32>} : memref<72x1307xbf16, #tpu.memory_space<vmem>>, vector<8x1307xbf16>,
    %c0_97 = arith.constant 0 : index
    %c60_98 = arith.constant 60 : index
    %78 = vector.load %arg16[%c0_97, %c60_98] : memref<8x1423xbf16, #tpu.memory_space<vmem>>, vector<8x1307xbf16>
    %c40_99 = arith.constant 40 : index
    %c0_100 = arith.constant 0 : index
    %79 = vector.load %arg17[%c40_99, %c0_100] : memref<72x1307xbf16, #tpu.memory_space<vmem>>, vector<8x1307xbf16>
    tpu.vector_store %arg17[%c40_99, %c0_100], %78 {strides = array<i32>} : memref<72x1307xbf16, #tpu.memory_space<vmem>>, vector<8x1307xbf16>,
    %c0_101 = arith.constant 0 : index
    %c112_102 = arith.constant 112 : index
    %80 = vector.load %arg16[%c0_101, %c112_102] : memref<8x1423xbf16, #tpu.memory_space<vmem>>, vector<8x1307xbf16>
    %c48_103 = arith.constant 48 : index
    %c0_104 = arith.constant 0 : index
    %81 = vector.load %arg17[%c48_103, %c0_104] : memref<72x1307xbf16, #tpu.memory_space<vmem>>, vector<8x1307xbf16>
    tpu.vector_store %arg17[%c48_103, %c0_104], %80 {strides = array<i32>} : memref<72x1307xbf16, #tpu.memory_space<vmem>>, vector<8x1307xbf16>,
    %c0_105 = arith.constant 0 : index
    %c114_106 = arith.constant 114 : index
    %82 = vector.load %arg16[%c0_105, %c114_106] : memref<8x1423xbf16, #tpu.memory_space<vmem>>, vector<8x1307xbf16>
    %c56_107 = arith.constant 56 : index
    %c0_108 = arith.constant 0 : index
    %83 = vector.load %arg17[%c56_107, %c0_108] : memref<72x1307xbf16, #tpu.memory_space<vmem>>, vector<8x1307xbf16>
    tpu.vector_store %arg17[%c56_107, %c0_108], %82 {strides = array<i32>} : memref<72x1307xbf16, #tpu.memory_space<vmem>>, vector<8x1307xbf16>,
    %c0_109 = arith.constant 0 : index
    %c116_110 = arith.constant 116 : index
    %84 = vector.load %arg16[%c0_109, %c116_110] : memref<8x1423xbf16, #tpu.memory_space<vmem>>, vector<8x1307xbf16>
    %c64_111 = arith.constant 64 : index
    %c0_112 = arith.constant 0 : index
    %85 = vector.load %arg17[%c64_111, %c0_112] : memref<72x1307xbf16, #tpu.memory_space<vmem>>, vector<8x1307xbf16>
    tpu.vector_store %arg17[%c64_111, %c0_112], %84 {strides = array<i32>} : memref<72x1307xbf16, #tpu.memory_space<vmem>>, vector<8x1307xbf16>,
    %c0_113 = arith.constant 0 : index
    %c0_114 = arith.constant 0 : index
    %86 = vector.load %arg4[%c0_113, %c0_114] : memref<16x72xbf16, #tpu.memory_space<vmem>>, vector<16x72xbf16>
    %c0_115 = arith.constant 0 : index
    %c0_116 = arith.constant 0 : index
    %87 = vector.load %arg17[%c0_115, %c0_116] : memref<72x1307xbf16, #tpu.memory_space<vmem>>, vector<72x1307xbf16>
    %cst_117 = arith.constant dense<0.000000e+00> : vector<16x1307xf32>
    %88 = tpu.matmul %86, %87, %cst_117 {dimension_numbers = #tpu.dot_dimension_numbers<[1], [0], [0], [1], [0, 0, 1, 1], [], []>} : vector<16x72xbf16>, vector<72x1307xbf16>, vector<16x1307xf32> -> vector<16x1307xf32>
    %c0_118 = arith.constant 0 : index
    %c0_119 = arith.constant 0 : index
    %89 = vector.load %arg5[%c0_118, %c0_119] : memref<16x1xf32, #tpu.memory_space<vmem>>, vector<16x1xf32>
    %90 = vector.broadcast %89 : vector<16x1xf32> to vector<16x1307xf32>
    %91 = arith.addf %88, %90 : vector<16x1307xf32>
    %cst_120 = arith.constant 0.000000e+00 : f32
    %92 = vector.broadcast %cst_120 : f32 to vector<16x1307xf32>
    %93 = arith.maximumf %91, %92 : vector<16x1307xf32>
    %c0_121 = arith.constant 0 : index
    %c0_122 = arith.constant 0 : index
    %94 = vector.load %arg18[%c0_121, %c0_122] : memref<16x1307xf32, #tpu.memory_space<vmem>>, vector<16x1307xf32>
    tpu.vector_store %arg18[%c0_121, %c0_122], %93 {strides = array<i32>} : memref<16x1307xf32, #tpu.memory_space<vmem>>, vector<16x1307xf32>,
    %c0_123 = arith.constant 0 : index
    %c0_124 = arith.constant 0 : index
    %95 = vector.load %arg18[%c0_123, %c0_124] : memref<16x1307xf32, #tpu.memory_space<vmem>>, vector<16x1249xf32>
    %c0_125 = arith.constant 0 : index
    %c2_126 = arith.constant 2 : index
    %96 = vector.load %arg18[%c0_125, %c2_126] : memref<16x1307xf32, #tpu.memory_space<vmem>>, vector<16x1249xf32>
    %97 = arith.maximumf %95, %96 : vector<16x1249xf32>
    %c0_127 = arith.constant 0 : index
    %c56_128 = arith.constant 56 : index
    %98 = vector.load %arg18[%c0_127, %c56_128] : memref<16x1307xf32, #tpu.memory_space<vmem>>, vector<16x1249xf32>
    %c0_129 = arith.constant 0 : index
    %c58_130 = arith.constant 58 : index
    %99 = vector.load %arg18[%c0_129, %c58_130] : memref<16x1307xf32, #tpu.memory_space<vmem>>, vector<16x1249xf32>
    %100 = arith.maximumf %98, %99 : vector<16x1249xf32>
    %101 = arith.maximumf %97, %100 : vector<16x1249xf32>
    %c0_131 = arith.constant 0 : index
    %c0_132 = arith.constant 0 : index
    %102 = vector.load %arg12[%c0_131, %c0_132] : memref<1249x50xf32, #tpu.memory_space<vmem>>, vector<1249x50xf32>
    %cst_133 = arith.constant dense<0.000000e+00> : vector<16x50xf32>
    %103 = tpu.matmul %101, %102, %cst_133 {dimension_numbers = #tpu.dot_dimension_numbers<[1], [0], [0], [1], [0, 0, 1, 1], [], []>} : vector<16x1249xf32>, vector<1249x50xf32>, vector<16x50xf32> -> vector<16x50xf32>
    %104 = vector.extract_strided_slice %103 {offsets = [0, 0], sizes = [16, 2], strides = [1, 1]} : vector<16x50xf32> to vector<16x2xf32>
    %c0_134 = arith.constant 0 : index
    %c0_135 = arith.constant 0 : index
    %105 = vector.load %arg19[%c0_134, %c0_135] : memref<400x2xf32, #tpu.memory_space<vmem>>, vector<16x2xf32>
    tpu.vector_store %arg19[%c0_134, %c0_135], %104 {strides = array<i32>} : memref<400x2xf32, #tpu.memory_space<vmem>>, vector<16x2xf32>,
    %106 = vector.extract_strided_slice %103 {offsets = [0, 2], sizes = [16, 2], strides = [1, 1]} : vector<16x50xf32> to vector<16x2xf32>
    %c16_136 = arith.constant 16 : index
    %c0_137 = arith.constant 0 : index
    %107 = vector.load %arg19[%c16_136, %c0_137] : memref<400x2xf32, #tpu.memory_space<vmem>>, vector<16x2xf32>
    tpu.vector_store %arg19[%c16_136, %c0_137], %106 {strides = array<i32>} : memref<400x2xf32, #tpu.memory_space<vmem>>, vector<16x2xf32>,
    %108 = vector.extract_strided_slice %103 {offsets = [0, 4], sizes = [16, 2], strides = [1, 1]} : vector<16x50xf32> to vector<16x2xf32>
    %c32_138 = arith.constant 32 : index
    %c0_139 = arith.constant 0 : index
    %109 = vector.load %arg19[%c32_138, %c0_139] : memref<400x2xf32, #tpu.memory_space<vmem>>, vector<16x2xf32>
    tpu.vector_store %arg19[%c32_138, %c0_139], %108 {strides = array<i32>} : memref<400x2xf32, #tpu.memory_space<vmem>>, vector<16x2xf32>,
    %110 = vector.extract_strided_slice %103 {offsets = [0, 6], sizes = [16, 2], strides = [1, 1]} : vector<16x50xf32> to vector<16x2xf32>
    %c48_140 = arith.constant 48 : index
    %c0_141 = arith.constant 0 : index
    %111 = vector.load %arg19[%c48_140, %c0_141] : memref<400x2xf32, #tpu.memory_space<vmem>>, vector<16x2xf32>
    tpu.vector_store %arg19[%c48_140, %c0_141], %110 {strides = array<i32>} : memref<400x2xf32, #tpu.memory_space<vmem>>, vector<16x2xf32>,
    %112 = vector.extract_strided_slice %103 {offsets = [0, 8], sizes = [16, 2], strides = [1, 1]} : vector<16x50xf32> to vector<16x2xf32>
    %c64_142 = arith.constant 64 : index
    %c0_143 = arith.constant 0 : index
    %113 = vector.load %arg19[%c64_142, %c0_143] : memref<400x2xf32, #tpu.memory_space<vmem>>, vector<16x2xf32>
    tpu.vector_store %arg19[%c64_142, %c0_143], %112 {strides = array<i32>} : memref<400x2xf32, #tpu.memory_space<vmem>>, vector<16x2xf32>,
    %114 = vector.extract_strided_slice %103 {offsets = [0, 10], sizes = [16, 2], strides = [1, 1]} : vector<16x50xf32> to vector<16x2xf32>
    %c80_144 = arith.constant 80 : index
    %c0_145 = arith.constant 0 : index
    %115 = vector.load %arg19[%c80_144, %c0_145] : memref<400x2xf32, #tpu.memory_space<vmem>>, vector<16x2xf32>
    tpu.vector_store %arg19[%c80_144, %c0_145], %114 {strides = array<i32>} : memref<400x2xf32, #tpu.memory_space<vmem>>, vector<16x2xf32>,
    %116 = vector.extract_strided_slice %103 {offsets = [0, 12], sizes = [16, 2], strides = [1, 1]} : vector<16x50xf32> to vector<16x2xf32>
    %c96_146 = arith.constant 96 : index
    %c0_147 = arith.constant 0 : index
    %117 = vector.load %arg19[%c96_146, %c0_147] : memref<400x2xf32, #tpu.memory_space<vmem>>, vector<16x2xf32>
    tpu.vector_store %arg19[%c96_146, %c0_147], %116 {strides = array<i32>} : memref<400x2xf32, #tpu.memory_space<vmem>>, vector<16x2xf32>,
    %118 = vector.extract_strided_slice %103 {offsets = [0, 14], sizes = [16, 2], strides = [1, 1]} : vector<16x50xf32> to vector<16x2xf32>
    %c112_148 = arith.constant 112 : index
    %c0_149 = arith.constant 0 : index
    %119 = vector.load %arg19[%c112_148, %c0_149] : memref<400x2xf32, #tpu.memory_space<vmem>>, vector<16x2xf32>
    tpu.vector_store %arg19[%c112_148, %c0_149], %118 {strides = array<i32>} : memref<400x2xf32, #tpu.memory_space<vmem>>, vector<16x2xf32>,
    %120 = vector.extract_strided_slice %103 {offsets = [0, 16], sizes = [16, 2], strides = [1, 1]} : vector<16x50xf32> to vector<16x2xf32>
    %c128 = arith.constant 128 : index
    %c0_150 = arith.constant 0 : index
    %121 = vector.load %arg19[%c128, %c0_150] : memref<400x2xf32, #tpu.memory_space<vmem>>, vector<16x2xf32>
    tpu.vector_store %arg19[%c128, %c0_150], %120 {strides = array<i32>} : memref<400x2xf32, #tpu.memory_space<vmem>>, vector<16x2xf32>,
    %122 = vector.extract_strided_slice %103 {offsets = [0, 18], sizes = [16, 2], strides = [1, 1]} : vector<16x50xf32> to vector<16x2xf32>
    %c144 = arith.constant 144 : index
    %c0_151 = arith.constant 0 : index
    %123 = vector.load %arg19[%c144, %c0_151] : memref<400x2xf32, #tpu.memory_space<vmem>>, vector<16x2xf32>
    tpu.vector_store %arg19[%c144, %c0_151], %122 {strides = array<i32>} : memref<400x2xf32, #tpu.memory_space<vmem>>, vector<16x2xf32>,
    %124 = vector.extract_strided_slice %103 {offsets = [0, 20], sizes = [16, 2], strides = [1, 1]} : vector<16x50xf32> to vector<16x2xf32>
    %c160 = arith.constant 160 : index
    %c0_152 = arith.constant 0 : index
    %125 = vector.load %arg19[%c160, %c0_152] : memref<400x2xf32, #tpu.memory_space<vmem>>, vector<16x2xf32>
    tpu.vector_store %arg19[%c160, %c0_152], %124 {strides = array<i32>} : memref<400x2xf32, #tpu.memory_space<vmem>>, vector<16x2xf32>,
    %126 = vector.extract_strided_slice %103 {offsets = [0, 22], sizes = [16, 2], strides = [1, 1]} : vector<16x50xf32> to vector<16x2xf32>
    %c176 = arith.constant 176 : index
    %c0_153 = arith.constant 0 : index
    %127 = vector.load %arg19[%c176, %c0_153] : memref<400x2xf32, #tpu.memory_space<vmem>>, vector<16x2xf32>
    tpu.vector_store %arg19[%c176, %c0_153], %126 {strides = array<i32>} : memref<400x2xf32, #tpu.memory_space<vmem>>, vector<16x2xf32>,
    %128 = vector.extract_strided_slice %103 {offsets = [0, 24], sizes = [16, 2], strides = [1, 1]} : vector<16x50xf32> to vector<16x2xf32>
    %c192 = arith.constant 192 : index
    %c0_154 = arith.constant 0 : index
    %129 = vector.load %arg19[%c192, %c0_154] : memref<400x2xf32, #tpu.memory_space<vmem>>, vector<16x2xf32>
    tpu.vector_store %arg19[%c192, %c0_154], %128 {strides = array<i32>} : memref<400x2xf32, #tpu.memory_space<vmem>>, vector<16x2xf32>,
    %130 = vector.extract_strided_slice %103 {offsets = [0, 26], sizes = [16, 2], strides = [1, 1]} : vector<16x50xf32> to vector<16x2xf32>
    %c208 = arith.constant 208 : index
    %c0_155 = arith.constant 0 : index
    %131 = vector.load %arg19[%c208, %c0_155] : memref<400x2xf32, #tpu.memory_space<vmem>>, vector<16x2xf32>
    tpu.vector_store %arg19[%c208, %c0_155], %130 {strides = array<i32>} : memref<400x2xf32, #tpu.memory_space<vmem>>, vector<16x2xf32>,
    %132 = vector.extract_strided_slice %103 {offsets = [0, 28], sizes = [16, 2], strides = [1, 1]} : vector<16x50xf32> to vector<16x2xf32>
    %c224 = arith.constant 224 : index
    %c0_156 = arith.constant 0 : index
    %133 = vector.load %arg19[%c224, %c0_156] : memref<400x2xf32, #tpu.memory_space<vmem>>, vector<16x2xf32>
    tpu.vector_store %arg19[%c224, %c0_156], %132 {strides = array<i32>} : memref<400x2xf32, #tpu.memory_space<vmem>>, vector<16x2xf32>,
    %134 = vector.extract_strided_slice %103 {offsets = [0, 30], sizes = [16, 2], strides = [1, 1]} : vector<16x50xf32> to vector<16x2xf32>
    %c240 = arith.constant 240 : index
    %c0_157 = arith.constant 0 : index
    %135 = vector.load %arg19[%c240, %c0_157] : memref<400x2xf32, #tpu.memory_space<vmem>>, vector<16x2xf32>
    tpu.vector_store %arg19[%c240, %c0_157], %134 {strides = array<i32>} : memref<400x2xf32, #tpu.memory_space<vmem>>, vector<16x2xf32>,
    %136 = vector.extract_strided_slice %103 {offsets = [0, 32], sizes = [16, 2], strides = [1, 1]} : vector<16x50xf32> to vector<16x2xf32>
    %c256 = arith.constant 256 : index
    %c0_158 = arith.constant 0 : index
    %137 = vector.load %arg19[%c256, %c0_158] : memref<400x2xf32, #tpu.memory_space<vmem>>, vector<16x2xf32>
    tpu.vector_store %arg19[%c256, %c0_158], %136 {strides = array<i32>} : memref<400x2xf32, #tpu.memory_space<vmem>>, vector<16x2xf32>,
    %138 = vector.extract_strided_slice %103 {offsets = [0, 34], sizes = [16, 2], strides = [1, 1]} : vector<16x50xf32> to vector<16x2xf32>
    %c272 = arith.constant 272 : index
    %c0_159 = arith.constant 0 : index
    %139 = vector.load %arg19[%c272, %c0_159] : memref<400x2xf32, #tpu.memory_space<vmem>>, vector<16x2xf32>
    tpu.vector_store %arg19[%c272, %c0_159], %138 {strides = array<i32>} : memref<400x2xf32, #tpu.memory_space<vmem>>, vector<16x2xf32>,
    %140 = vector.extract_strided_slice %103 {offsets = [0, 36], sizes = [16, 2], strides = [1, 1]} : vector<16x50xf32> to vector<16x2xf32>
    %c288 = arith.constant 288 : index
    %c0_160 = arith.constant 0 : index
    %141 = vector.load %arg19[%c288, %c0_160] : memref<400x2xf32, #tpu.memory_space<vmem>>, vector<16x2xf32>
    tpu.vector_store %arg19[%c288, %c0_160], %140 {strides = array<i32>} : memref<400x2xf32, #tpu.memory_space<vmem>>, vector<16x2xf32>,
    %142 = vector.extract_strided_slice %103 {offsets = [0, 38], sizes = [16, 2], strides = [1, 1]} : vector<16x50xf32> to vector<16x2xf32>
    %c304 = arith.constant 304 : index
    %c0_161 = arith.constant 0 : index
    %143 = vector.load %arg19[%c304, %c0_161] : memref<400x2xf32, #tpu.memory_space<vmem>>, vector<16x2xf32>
    tpu.vector_store %arg19[%c304, %c0_161], %142 {strides = array<i32>} : memref<400x2xf32, #tpu.memory_space<vmem>>, vector<16x2xf32>,
    %144 = vector.extract_strided_slice %103 {offsets = [0, 40], sizes = [16, 2], strides = [1, 1]} : vector<16x50xf32> to vector<16x2xf32>
    %c320 = arith.constant 320 : index
    %c0_162 = arith.constant 0 : index
    %145 = vector.load %arg19[%c320, %c0_162] : memref<400x2xf32, #tpu.memory_space<vmem>>, vector<16x2xf32>
    tpu.vector_store %arg19[%c320, %c0_162], %144 {strides = array<i32>} : memref<400x2xf32, #tpu.memory_space<vmem>>, vector<16x2xf32>,
    %146 = vector.extract_strided_slice %103 {offsets = [0, 42], sizes = [16, 2], strides = [1, 1]} : vector<16x50xf32> to vector<16x2xf32>
    %c336 = arith.constant 336 : index
    %c0_163 = arith.constant 0 : index
    %147 = vector.load %arg19[%c336, %c0_163] : memref<400x2xf32, #tpu.memory_space<vmem>>, vector<16x2xf32>
    tpu.vector_store %arg19[%c336, %c0_163], %146 {strides = array<i32>} : memref<400x2xf32, #tpu.memory_space<vmem>>, vector<16x2xf32>,
    %148 = vector.extract_strided_slice %103 {offsets = [0, 44], sizes = [16, 2], strides = [1, 1]} : vector<16x50xf32> to vector<16x2xf32>
    %c352 = arith.constant 352 : index
    %c0_164 = arith.constant 0 : index
    %149 = vector.load %arg19[%c352, %c0_164] : memref<400x2xf32, #tpu.memory_space<vmem>>, vector<16x2xf32>
    tpu.vector_store %arg19[%c352, %c0_164], %148 {strides = array<i32>} : memref<400x2xf32, #tpu.memory_space<vmem>>, vector<16x2xf32>,
    %150 = vector.extract_strided_slice %103 {offsets = [0, 46], sizes = [16, 2], strides = [1, 1]} : vector<16x50xf32> to vector<16x2xf32>
    %c368 = arith.constant 368 : index
    %c0_165 = arith.constant 0 : index
    %151 = vector.load %arg19[%c368, %c0_165] : memref<400x2xf32, #tpu.memory_space<vmem>>, vector<16x2xf32>
    tpu.vector_store %arg19[%c368, %c0_165], %150 {strides = array<i32>} : memref<400x2xf32, #tpu.memory_space<vmem>>, vector<16x2xf32>,
    %152 = vector.extract_strided_slice %103 {offsets = [0, 48], sizes = [16, 2], strides = [1, 1]} : vector<16x50xf32> to vector<16x2xf32>
    %c384 = arith.constant 384 : index
    %c0_166 = arith.constant 0 : index
    %153 = vector.load %arg19[%c384, %c0_166] : memref<400x2xf32, #tpu.memory_space<vmem>>, vector<16x2xf32>
    tpu.vector_store %arg19[%c384, %c0_166], %152 {strides = array<i32>} : memref<400x2xf32, #tpu.memory_space<vmem>>, vector<16x2xf32>,
    %c0_167 = arith.constant 0 : index
    %c0_168 = arith.constant 0 : index
    %154 = vector.load %arg6[%c0_167, %c0_168] : memref<32x400xf32, #tpu.memory_space<vmem>>, vector<32x400xf32>
    %c0_169 = arith.constant 0 : index
    %c0_170 = arith.constant 0 : index
    %155 = vector.load %arg19[%c0_169, %c0_170] : memref<400x2xf32, #tpu.memory_space<vmem>>, vector<400x2xf32>
    %cst_171 = arith.constant dense<0.000000e+00> : vector<32x2xf32>
    %156 = tpu.matmul %154, %155, %cst_171 {dimension_numbers = #tpu.dot_dimension_numbers<[1], [0], [0], [1], [0, 0, 1, 1], [], []>} : vector<32x400xf32>, vector<400x2xf32>, vector<32x2xf32> -> vector<32x2xf32>
    %c0_172 = arith.constant 0 : index
    %c0_173 = arith.constant 0 : index
    %157 = vector.load %arg7[%c0_172, %c0_173] : memref<32x1xf32, #tpu.memory_space<vmem>>, vector<32x1xf32>
    %158 = vector.broadcast %157 : vector<32x1xf32> to vector<32x2xf32>
    %159 = arith.addf %156, %158 : vector<32x2xf32>
    %cst_174 = arith.constant 0.000000e+00 : f32
    %160 = vector.broadcast %cst_174 : f32 to vector<32x2xf32>
    %161 = arith.maximumf %159, %160 : vector<32x2xf32>
    %c0_175 = arith.constant 0 : index
    %c0_176 = arith.constant 0 : index
    %162 = vector.load %arg8[%c0_175, %c0_176] : memref<32x16xf32, #tpu.memory_space<vmem>>, vector<32x16xf32>
    %c0_177 = arith.constant 0 : index
    %c0_178 = arith.constant 0 : index
    %163 = vector.load %arg1[%c0_177, %c0_178] : memref<16x2xf32, #tpu.memory_space<vmem>>, vector<16x2xf32>
    %cst_179 = arith.constant dense<0.000000e+00> : vector<32x2xf32>
    %164 = tpu.matmul %162, %163, %cst_179 {dimension_numbers = #tpu.dot_dimension_numbers<[1], [0], [0], [1], [0, 0, 1, 1], [], []>} : vector<32x16xf32>, vector<16x2xf32>, vector<32x2xf32> -> vector<32x2xf32>
    %c0_180 = arith.constant 0 : index
    %c0_181 = arith.constant 0 : index
    %165 = vector.load %arg9[%c0_180, %c0_181] : memref<32x1xf32, #tpu.memory_space<vmem>>, vector<32x1xf32>
    %166 = vector.broadcast %165 : vector<32x1xf32> to vector<32x2xf32>
    %167 = arith.addf %164, %166 : vector<32x2xf32>
    %cst_182 = arith.constant 0.000000e+00 : f32
    %168 = vector.broadcast %cst_182 : f32 to vector<32x2xf32>
    %169 = arith.maximumf %167, %168 : vector<32x2xf32>
    %170 = tpu.concatenate %161, %169 in 0 : vector<32x2xf32>, vector<32x2xf32> -> vector<64x2xf32>
    %c0_183 = arith.constant 0 : index
    %c0_184 = arith.constant 0 : index
    %171 = vector.load %arg10[%c0_183, %c0_184] : memref<9x64xf32, #tpu.memory_space<vmem>>, vector<9x64xf32>
    %cst_185 = arith.constant dense<0.000000e+00> : vector<9x2xf32>
    %172 = tpu.matmul %171, %170, %cst_185 {dimension_numbers = #tpu.dot_dimension_numbers<[1], [0], [0], [1], [0, 0, 1, 1], [], []>} : vector<9x64xf32>, vector<64x2xf32>, vector<9x2xf32> -> vector<9x2xf32>
    %c0_186 = arith.constant 0 : index
    %c0_187 = arith.constant 0 : index
    %173 = vector.load %arg11[%c0_186, %c0_187] : memref<9x1xf32, #tpu.memory_space<vmem>>, vector<9x1xf32>
    %174 = vector.broadcast %173 : vector<9x1xf32> to vector<9x2xf32>
    %175 = arith.addf %172, %174 : vector<9x2xf32>
    %c0_188 = arith.constant 0 : index
    %c0_189 = arith.constant 0 : index
    %176 = vector.load %arg13[%c0_188, %c0_189] : memref<9x2xf32, #tpu.memory_space<vmem>>, vector<9x2xf32>
    tpu.vector_store %arg13[%c0_188, %c0_189], %175 {strides = array<i32>} : memref<9x2xf32, #tpu.memory_space<vmem>>, vector<9x2xf32>,
    return
  }
}

</mosaic_0001>

<llo_original>
// kernel: actor_critic_forward.1
$region0: #{actor_critic_forward.1}
  #allocation0 [shape = 'u32[]', space=smem, size = 0x4, offset = 0x4, fixed_abs, tag = 'smem constant byte address 0x4 - core index']
  #allocation1 [shape = 'u32[144,128]{1,0:T(1,128)}', space=vmem, size = 0x12000, scoped, tag = 'internal scratch']
  #allocation2 [shape = 'bf16[100,1452]{1,0:T(8,128)(2,1)}', space=vmem, size = 0x4e000, scoped, tag = 'scratch operand']
  #allocation3 [shape = 'bf16[8,1452]{1,0:T(8,128)(2,1)}', space=vmem, size = 0x6000, scoped, tag = 'scratch operand']
  #allocation4 [shape = 'bf16[8,1423]{1,0:T(8,128)(2,1)}', space=vmem, size = 0x6000, scoped, tag = 'scratch operand']
  #allocation5 [shape = 'bf16[72,1307]{1,0:T(8,128)(2,1)}', space=vmem, size = 0x31800, scoped, tag = 'scratch operand']
  #allocation6 [shape = 'f32[16,1307]{1,0:T(8,128)}', space=vmem, size = 0x16000, scoped, tag = 'scratch operand']
  #allocation7 [shape = 'f32[400,2]{1,0:T(8,128)}', space=vmem, size = 0x32000, scoped, tag = 'scratch operand']
  %s0 = inlined_call_operand.vmem [shape: bf16[4,1568], index: 0, kind: input, shape index: {}]
  %s1 = inlined_call_operand.vmem [shape: f32[16,2], index: 1, kind: input, shape index: {}]
  %s2 = inlined_call_operand.vmem [shape: bf16[8,100], index: 2, kind: input, shape index: {}]
  %s3 = inlined_call_operand.vmem [shape: f32[8,1], index: 3, kind: input, shape index: {}]
  %s4 = inlined_call_operand.vmem [shape: bf16[16,72], index: 4, kind: input, shape index: {}]
  %s5 = inlined_call_operand.vmem [shape: f32[16,1], index: 5, kind: input, shape index: {}]
  %s6 = inlined_call_operand.vmem [shape: f32[32,400], index: 6, kind: input, shape index: {}]
  %s7 = inlined_call_operand.vmem [shape: f32[32,1], index: 7, kind: input, shape index: {}]
  %s8 = inlined_call_operand.vmem [shape: f32[32,16], index: 8, kind: input, shape index: {}]
  %s9 = inlined_call_operand.vmem [shape: f32[32,1], index: 9, kind: input, shape index: {}]
  %s10 = inlined_call_operand.vmem [shape: f32[9,64], index: 10, kind: input, shape index: {}]
  %s11 = inlined_call_operand.vmem [shape: f32[9,1], index: 11, kind: input, shape index: {}]
  %s12 = inlined_call_operand.hbm [shape: f32[1249,50], index: 12, kind: input, shape index: {}]
  %s13 = inlined_call_operand.vmem [shape: f32[9,2], index: 13, kind: output, shape index: {}]
  %s14 = sld [smem:[#allocation0]]
  $region66: #{actor_critic_forward.1} parent=0
    _
  %s16 = ssub.s32 1, %s14
  %s17 = scalar_select 0, %s16, %s14
  $region1: #{actor_critic_forward.1} parent=0
    #allocation8 [shape = 'u8[643072]{0}', space=vmem, size = 0x9d000, scoped, tag = 'input window, operand 12, single buffered']
    #allocation9 [shape = 's32[1]{0}', space=sflag, size = 0x4, scoped, tag = 'scoped memory for actor_critic_forward.1']
    %18 = vsyncpa [#allocation9], 0
    // Predicated region
    $region2: #{actor_critic_forward.1} parent=1 // pred_check
      _
    $region3: #{actor_critic_forward.1} parent=1 // pred_check_branch
      %20 = sbr.rel (0) target = $region5
    $region4: #{actor_critic_forward.1} parent=1 // pred_region
      _
    $region5: #{actor_critic_forward.1} parent=1 // pred_fallthru
      _
    // Predicated region
    $region6: #{actor_critic_forward.1} parent=1 // pred_check
      _
    $region7: #{actor_critic_forward.1} parent=1 // pred_check_branch
      %22 = sbr.rel (0) target = $region9
    $region8: #{actor_critic_forward.1} parent=1 // pred_region
      _
    $region9: #{actor_critic_forward.1} parent=1 // pred_fallthru
      _
    // Predicated region
    $region10: #{actor_critic_forward.1} parent=1 // pred_check
      _
    $region11: #{actor_critic_forward.1} parent=1 // pred_check_branch
      %24 = sbr.rel (0) target = $region13
    $region12: #{actor_critic_forward.1} parent=1 // pred_region
      _
    $region13: #{actor_critic_forward.1} parent=1 // pred_fallthru
      _
    // Predicated region
    $region14: #{actor_critic_forward.1} parent=1 // pred_check
      _
    $region15: #{actor_critic_forward.1} parent=1 // pred_check_branch
      %26 = sbr.rel (0) target = $region17
    $region16: #{actor_critic_forward.1} parent=1 // pred_region
      _
    $region17: #{actor_critic_forward.1} parent=1 // pred_fallthru
      _
    // Predicated region
    $region18: #{actor_critic_forward.1} parent=1 // pred_check
      _
    $region19: #{actor_critic_forward.1} parent=1 // pred_check_branch
      %28 = sbr.rel (0) target = $region21
    $region20: #{actor_critic_forward.1} parent=1 // pred_region
      _
    $region21: #{actor_critic_forward.1} parent=1 // pred_fallthru
      _
    // Predicated region
    $region22: #{actor_critic_forward.1} parent=1 // pred_check
      _
    $region23: #{actor_critic_forward.1} parent=1 // pred_check_branch
      %30 = sbr.rel (0) target = $region25
    $region24: #{actor_critic_forward.1} parent=1 // pred_region
      _
    $region25: #{actor_critic_forward.1} parent=1 // pred_fallthru
      _
    // Predicated region
    $region26: #{actor_critic_forward.1} parent=1 // pred_check
      _
    $region27: #{actor_critic_forward.1} parent=1 // pred_check_branch
      %32 = sbr.rel (0) target = $region29
    $region28: #{actor_critic_forward.1} parent=1 // pred_region
      _
    $region29: #{actor_critic_forward.1} parent=1 // pred_fallthru
      _
    // Predicated region
    $region30: #{actor_critic_forward.1} parent=1 // pred_check
      _
    $region31: #{actor_critic_forward.1} parent=1 // pred_check_branch
      %34 = sbr.rel (0) target = $region33
    $region32: #{actor_critic_forward.1} parent=1 // pred_region
      _
    $region33: #{actor_critic_forward.1} parent=1 // pred_fallthru
      _
    // Predicated region
    $region34: #{actor_critic_forward.1} parent=1 // pred_check
      _
    $region35: #{actor_critic_forward.1} parent=1 // pred_check_branch
      %36 = sbr.rel (0) target = $region37
    $region36: #{actor_critic_forward.1} parent=1 // pred_region
      _
    $region37: #{actor_critic_forward.1} parent=1 // pred_fallthru
      _
    // Predicated region
    $region38: #{actor_critic_forward.1} parent=1 // pred_check
      _
    $region39: #{actor_critic_forward.1} parent=1 // pred_check_branch
      %38 = sbr.rel (0) target = $region41
    $region40: #{actor_critic_forward.1} parent=1 // pred_region
      _
    $region41: #{actor_critic_forward.1} parent=1 // pred_fallthru
      _
    // Predicated region
    $region42: #{actor_critic_forward.1} parent=1 // pred_check
      _
    $region43: #{actor_critic_forward.1} parent=1 // pred_check_branch
      %40 = sbr.rel (0) target = $region45
    $region44: #{actor_critic_forward.1} parent=1 // pred_region
      _
    $region45: #{actor_critic_forward.1} parent=1 // pred_fallthru
      _
    // Predicated region
    $region46: #{actor_critic_forward.1} parent=1 // pred_check
      _
    $region47: #{actor_critic_forward.1} parent=1 // pred_check_branch
      %42 = sbr.rel (0) target = $region49
    $region48: #{actor_critic_forward.1} parent=1 // pred_region
      _
    $region49: #{actor_critic_forward.1} parent=1 // pred_fallthru
      _
    // Predicated region
    $region50: #{actor_critic_forward.1} parent=1 // pred_check
      _
    $region51: #{actor_critic_forward.1} parent=1 // pred_check_branch
      %44 = sbr.rel (0) target = $region53
    $region52: #{actor_critic_forward.1} parent=1 // pred_region
      %s46 = ssub.s32 20096, 20096
      %47 = vsyncadd [#allocation9], %s46
      %s48 = sshll.u32 [#allocation8], 4
      %s49 = int_to_ptr.vmem [resolvable:$true] %s48
      %54 = dma.hbm_to_vmem [thread:$0]  %s12, 20096, %s49, [#allocation9], 128, 128, 8
    $region53: #{actor_critic_forward.1} parent=1 // pred_fallthru
      _
    // Predicated region
    $region54: #{actor_critic_forward.1} parent=1 // pred_check
      _
    $region55: #{actor_critic_forward.1} parent=1 // pred_check_branch
      %56 = sbr.rel (0) target = $region57
    $region56: #{actor_critic_forward.1} parent=1 // pred_region
      %57 = dma.done [#allocation9], 20096
    $region57: #{actor_critic_forward.1} parent=1 // pred_fallthru
      _
    %v59 = vld [vmem:[%s0] sm:$0xff]
    %v60 = vld [vmem:[%s0 + $0x8] sm:$0xff]
    %v61 = vld [vmem:[%s0 + $0x10] sm:$0xff]
    %v65 = vcombine.high %v59, %v59
    %v67 = vunpack.c.l.s4 1983009808
    %v68 = vunpack.c.0.s8 %v67
    %v69 = vlaneseq
    %v70 = vshrl.u32 %v69, 7
    %v71 = vsub.s32 %v68, %v70
    %v72 = vrot.slane %v59, %v71
    %v74 = vunpack.c.l.s4 1983009808
    %v75 = vunpack.c.0.s8 %v74
    %v76 = vlaneseq
    %v77 = vshrl.u32 %v76, 7
    %v78 = vsub.s32 %v75, %v77
    %v79 = vrot.slane %v65, %v78
    %v80 = vcombine.high %v60, %v60
    %v82 = vunpack.c.l.s4 1983009808
    %v83 = vunpack.c.0.s8 %v82
    %v84 = vlaneseq
    %v85 = vshrl.u32 %v84, 7
    %v86 = vsub.s32 %v83, %v85
    %v87 = vrot.slane %v60, %v86
    %v89 = vunpack.c.l.s4 1983009808
    %v90 = vunpack.c.0.s8 %v89
    %v91 = vlaneseq
    %v92 = vshrl.u32 %v91, 7
    %v93 = vsub.s32 %v90, %v92
    %v94 = vrot.slane %v80, %v93
    %v95 = vcombine.high %v61, %v61
    %v97 = vunpack.c.l.s4 1983009808
    %v98 = vunpack.c.0.s8 %v97
    %v99 = vlaneseq
    %v100 = vshrl.u32 %v99, 7
    %v101 = vsub.s32 %v98, %v100
    %v102 = vrot.slane %v61, %v101
    %v104 = vunpack.c.l.s4 1983009808
    %v105 = vunpack.c.0.s8 %v104
    %v106 = vlaneseq
    %v107 = vshrl.u32 %v106, 7
    %v108 = vsub.s32 %v105, %v107
    %v109 = vrot.slane %v95, %v108
    %116 = vst [vmem:[#allocation2] sm:$0x33] %v72
    %117 = vst [vmem:[#allocation2 + $0x8] sm:$0x33] %v79
    %118 = vst [vmem:[#allocation2 + $0x10] sm:$0x33] %v87
    %119 = vst [vmem:[#allocation2 + $0x18] sm:$0x33] %v94
    %120 = vst [vmem:[#allocation2 + $0x20] sm:$0x33] %v102
    %vm121 = vcmask 1041408
    %vm122 = vcmask 357380
    %vm123 = vmor %vm122, %vm121
    %124 = vst.msk [vmem:[#allocation2 + $0x28] sm:$0x33] %vm123, %v109
    %v125 = vld [vmem:[%s0] sm:$0xff]
    %v126 = vld [vmem:[%s0 + $0x8] sm:$0xff]
    %v127 = vld [vmem:[%s0 + $0x10] sm:$0xff]
    %v131 = vcombine.low %v125, %v125
    %v133 = vunpack.c.l.s4 1983009808
    %v134 = vunpack.c.0.s8 %v133
    %v135 = vlaneseq
    %v136 = vshrl.u32 %v135, 7
    %v137 = vsub.s32 %v134, %v136
    %v138 = vrot.slane %v131, %v137
    %v140 = vunpack.c.l.s4 1983009808
    %v141 = vunpack.c.0.s8 %v140
    %v142 = vlaneseq
    %v143 = vshrl.u32 %v142, 7
    %v144 = vsub.s32 %v141, %v143
    %v145 = vrot.slane %v125, %v144
    %v146 = vcombine.low %v126, %v126
    %v148 = vunpack.c.l.s4 1983009808
    %v149 = vunpack.c.0.s8 %v148
    %v150 = vlaneseq
    %v151 = vshrl.u32 %v150, 7
    %v152 = vsub.s32 %v149, %v151
    %v153 = vrot.slane %v146, %v152
    %v155 = vunpack.c.l.s4 1983009808
    %v156 = vunpack.c.0.s8 %v155
    %v157 = vlaneseq
    %v158 = vshrl.u32 %v157, 7
    %v159 = vsub.s32 %v156, %v158
    %v160 = vrot.slane %v126, %v159
    %v161 = vcombine.low %v127, %v127
    %v163 = vunpack.c.l.s4 1983009808
    %v164 = vunpack.c.0.s8 %v163
    %v165 = vlaneseq
    %v166 = vshrl.u32 %v165, 7
    %v167 = vsub.s32 %v164, %v166
    %v168 = vrot.slane %v161, %v167
    %v170 = vunpack.c.l.s4 1983009808
    %v171 = vunpack.c.0.s8 %v170
    %v172 = vlaneseq
    %v173 = vshrl.u32 %v172, 7
    %v174 = vsub.s32 %v171, %v173
    %v175 = vrot.slane %v127, %v174
    %176 = vrot.lane.b32.xlu0 %v138, 127
    %v177 = vpop.permute.xlu0 %176
    %178 = vrot.lane.b32.xlu0 %v145, 127
    %v179 = vpop.permute.xlu0 %178
    %180 = vrot.lane.b32.xlu0 %v153, 127
    %v181 = vpop.permute.xlu0 %180
    %182 = vrot.lane.b32.xlu0 %v160, 127
    %v183 = vpop.permute.xlu0 %182
    %184 = vrot.lane.b32.xlu0 %v168, 127
    %v185 = vpop.permute.xlu0 %184
    %186 = vrot.lane.b32.xlu0 %v175, 127
    %v187 = vpop.permute.xlu0 %186
    %v188 = vrot.slane %v177, 4
    %v189 = vrot.slane %v179, 4
    %v190 = vrot.slane %v181, 4
    %v191 = vrot.slane %v183, 4
    %v192 = vrot.slane %v185, 4
    %v193 = vrot.slane %v187, 4
    %vm194 = vcmask 1043456
    %v195 = vsel %vm194, %v188, %v189
    %vm196 = vcmask 1039360
    %v197 = vsel %vm196, %v177, %v195
    %v198 = vsel %vm194, %v189, %v190
    %v199 = vsel %vm196, %v179, %v198
    %v200 = vsel %vm194, %v190, %v191
    %v201 = vsel %vm196, %v181, %v200
    %v202 = vsel %vm194, %v191, %v192
    %v203 = vsel %vm196, %v183, %v202
    %v204 = vsel %vm194, %v192, %v193
    %v205 = vsel %vm196, %v185, %v204
    %v206 = vsel %vm196, %v187, %v193
    %213 = vst [vmem:[#allocation2] sm:$0xcc] %v197
    %214 = vst [vmem:[#allocation2 + $0x8] sm:$0xcc] %v199
    %215 = vst [vmem:[#allocation2 + $0x10] sm:$0xcc] %v201
    %216 = vst [vmem:[#allocation2 + $0x18] sm:$0xcc] %v203
    %217 = vst [vmem:[#allocation2 + $0x20] sm:$0xcc] %v205
    %vm218 = vcmask 1043458
    %vm219 = vcmask 359430
    %vm220 = vmor %vm219, %vm218
    %221 = vst.msk [vmem:[#allocation2 + $0x28] sm:$0xcc] %vm220, %v206
    %v222 = vld [vmem:[%s0] sm:$0xff]
    %v223 = vld [vmem:[%s0 + $0x8] sm:$0xff]
    %v224 = vld [vmem:[%s0 + $0x10] sm:$0xff]
    %v228 = vcombine.high %v222, %v222
    %v230 = vunpack.c.l.s4 1983009808
    %v231 = vunpack.c.0.s8 %v230
    %v232 = vlaneseq
    %v233 = vshrl.u32 %v232, 7
    %v234 = vsub.s32 %v231, %v233
    %v235 = vrot.slane %v222, %v234
    %v237 = vunpack.c.l.s4 1983009808
    %v238 = vunpack.c.0.s8 %v237
    %v239 = vlaneseq
    %v240 = vshrl.u32 %v239, 7
    %v241 = vsub.s32 %v238, %v240
    %v242 = vrot.slane %v228, %v241
    %v243 = vcombine.high %v223, %v223
    %v245 = vunpack.c.l.s4 1983009808
    %v246 = vunpack.c.0.s8 %v245
    %v247 = vlaneseq
    %v248 = vshrl.u32 %v247, 7
    %v249 = vsub.s32 %v246, %v248
    %v250 = vrot.slane %v223, %v249
    %v252 = vunpack.c.l.s4 1983009808
    %v253 = vunpack.c.0.s8 %v252
    %v254 = vlaneseq
    %v255 = vshrl.u32 %v254, 7
    %v256 = vsub.s32 %v253, %v255
    %v257 = vrot.slane %v243, %v256
    %v258 = vcombine.high %v224, %v224
    %v260 = vunpack.c.l.s4 1983009808
    %v261 = vunpack.c.0.s8 %v260
    %v262 = vlaneseq
    %v263 = vshrl.u32 %v262, 7
    %v264 = vsub.s32 %v261, %v263
    %v265 = vrot.slane %v224, %v264
    %v267 = vunpack.c.l.s4 1983009808
    %v268 = vunpack.c.0.s8 %v267
    %v269 = vlaneseq
    %v270 = vshrl.u32 %v269, 7
    %v271 = vsub.s32 %v268, %v270
    %v272 = vrot.slane %v258, %v271
    %273 = vrot.lane.b32.xlu0 %v235, 126
    %v274 = vpop.permute.xlu0 %273
    %275 = vrot.lane.b32.xlu0 %v242, 126
    %v276 = vpop.permute.xlu0 %275
    %277 = vrot.lane.b32.xlu0 %v250, 126
    %v278 = vpop.permute.xlu0 %277
    %279 = vrot.lane.b32.xlu0 %v257, 126
    %v280 = vpop.permute.xlu0 %279
    %281 = vrot.lane.b32.xlu0 %v265, 126
    %v282 = vpop.permute.xlu0 %281
    %283 = vrot.lane.b32.xlu0 %v272, 126
    %v284 = vpop.permute.xlu0 %283
    %v285 = vrot.slane %v274, 4
    %v286 = vrot.slane %v276, 4
    %v287 = vrot.slane %v278, 4
    %v288 = vrot.slane %v280, 4
    %v289 = vrot.slane %v282, 4
    %v290 = vrot.slane %v284, 4
    %v291 = vsel %vm194, %v285, %v286
    %vm292 = vcmask 1031168
    %v293 = vsel %vm292, %v274, %v291
    %v294 = vsel %vm194, %v286, %v287
    %v295 = vsel %vm292, %v276, %v294
    %v296 = vsel %vm194, %v287, %v288
    %v297 = vsel %vm292, %v278, %v296
    %v298 = vsel %vm194, %v288, %v289
    %v299 = vsel %vm292, %v280, %v298
    %v300 = vsel %vm194, %v289, %v290
    %v301 = vsel %vm292, %v282, %v300
    %v302 = vsel %vm292, %v284, %v290
    %309 = vst [vmem:[#allocation2 + $0x30] sm:$0x33] %v293
    %310 = vst [vmem:[#allocation2 + $0x38] sm:$0x33] %v295
    %311 = vst [vmem:[#allocation2 + $0x40] sm:$0x33] %v297
    %312 = vst [vmem:[#allocation2 + $0x48] sm:$0x33] %v299
    %313 = vst [vmem:[#allocation2 + $0x50] sm:$0x33] %v301
    %314 = vst.msk [vmem:[#allocation2 + $0x58] sm:$0x33] %vm123, %v302
    %v315 = vld [vmem:[%s0] sm:$0xff]
    %v316 = vld [vmem:[%s0 + $0x8] sm:$0xff]
    %v317 = vld [vmem:[%s0 + $0x10] sm:$0xff]
    %v321 = vcombine.low %v315, %v315
    %v323 = vunpack.c.l.s4 1983009808
    %v324 = vunpack.c.0.s8 %v323
    %v325 = vlaneseq
    %v326 = vshrl.u32 %v325, 7
    %v327 = vsub.s32 %v324, %v326
    %v328 = vrot.slane %v321, %v327
    %v330 = vunpack.c.l.s4 1983009808
    %v331 = vunpack.c.0.s8 %v330
    %v332 = vlaneseq
    %v333 = vshrl.u32 %v332, 7
    %v334 = vsub.s32 %v331, %v333
    %v335 = vrot.slane %v315, %v334
    %v336 = vcombine.low %v316, %v316
    %v338 = vunpack.c.l.s4 1983009808
    %v339 = vunpack.c.0.s8 %v338
    %v340 = vlaneseq
    %v341 = vshrl.u32 %v340, 7
    %v342 = vsub.s32 %v339, %v341
    %v343 = vrot.slane %v336, %v342
    %v345 = vunpack.c.l.s4 1983009808
    %v346 = vunpack.c.0.s8 %v345
    %v347 = vlaneseq
    %v348 = vshrl.u32 %v347, 7
    %v349 = vsub.s32 %v346, %v348
    %v350 = vrot.slane %v316, %v349
    %v351 = vcombine.low %v317, %v317
    %v353 = vunpack.c.l.s4 1983009808
    %v354 = vunpack.c.0.s8 %v353
    %v355 = vlaneseq
    %v356 = vshrl.u32 %v355, 7
    %v357 = vsub.s32 %v354, %v356
    %v358 = vrot.slane %v351, %v357
    %v360 = vunpack.c.l.s4 1983009808
    %v361 = vunpack.c.0.s8 %v360
    %v362 = vlaneseq
    %v363 = vshrl.u32 %v362, 7
    %v364 = vsub.s32 %v361, %v363
    %v365 = vrot.slane %v317, %v364
    %366 = vrot.lane.b32.xlu0 %v328, 125
    %v367 = vpop.permute.xlu0 %366
    %368 = vrot.lane.b32.xlu0 %v335, 125
    %v369 = vpop.permute.xlu0 %368
    %370 = vrot.lane.b32.xlu0 %v343, 125
    %v371 = vpop.permute.xlu0 %370
    %372 = vrot.lane.b32.xlu0 %v350, 125
    %v373 = vpop.permute.xlu0 %372
    %374 = vrot.lane.b32.xlu0 %v358, 125
    %v375 = vpop.permute.xlu0 %374
    %376 = vrot.lane.b32.xlu0 %v365, 125
    %v377 = vpop.permute.xlu0 %376
    %v378 = vrot.slane %v367, 4
    %v379 = vrot.slane %v369, 4
    %v380 = vrot.slane %v371, 4
    %v381 = vrot.slane %v373, 4
    %v382 = vrot.slane %v375, 4
    %v383 = vrot.slane %v377, 4
    %v384 = vsel %vm194, %v378, %v379
    %vm385 = vcmask 1022976
    %v386 = vsel %vm385, %v367, %v384
    %v387 = vsel %vm194, %v379, %v380
    %v388 = vsel %vm385, %v369, %v387
    %v389 = vsel %vm194, %v380, %v381
    %v390 = vsel %vm385, %v371, %v389
    %v391 = vsel %vm194, %v381, %v382
    %v392 = vsel %vm385, %v373, %v391
    %v393 = vsel %vm194, %v382, %v383
    %v394 = vsel %vm385, %v375, %v393
    %v395 = vsel %vm385, %v377, %v383
    %402 = vst [vmem:[#allocation2 + $0x30] sm:$0xcc] %v386
    %403 = vst [vmem:[#allocation2 + $0x38] sm:$0xcc] %v388
    %404 = vst [vmem:[#allocation2 + $0x40] sm:$0xcc] %v390
    %405 = vst [vmem:[#allocation2 + $0x48] sm:$0xcc] %v392
    %406 = vst [vmem:[#allocation2 + $0x50] sm:$0xcc] %v394
    %407 = vst.msk [vmem:[#allocation2 + $0x58] sm:$0xcc] %vm220, %v395
    %v408 = vld [vmem:[%s0] sm:$0xff]
    %v409 = vld [vmem:[%s0 + $0x8] sm:$0xff]
    %v410 = vld [vmem:[%s0 + $0x10] sm:$0xff]
    %v414 = vcombine.high %v408, %v408
    %v416 = vunpack.c.l.s4 1983009808
    %v417 = vunpack.c.0.s8 %v416
    %v418 = vlaneseq
    %v419 = vshrl.u32 %v418, 7
    %v420 = vsub.s32 %v417, %v419
    %v421 = vrot.slane %v408, %v420
    %v423 = vunpack.c.l.s4 1983009808
    %v424 = vunpack.c.0.s8 %v423
    %v425 = vlaneseq
    %v426 = vshrl.u32 %v425, 7
    %v427 = vsub.s32 %v424, %v426
    %v428 = vrot.slane %v414, %v427
    %v429 = vcombine.high %v409, %v409
    %v431 = vunpack.c.l.s4 1983009808
    %v432 = vunpack.c.0.s8 %v431
    %v433 = vlaneseq
    %v434 = vshrl.u32 %v433, 7
    %v435 = vsub.s32 %v432, %v434
    %v436 = vrot.slane %v409, %v435
    %v438 = vunpack.c.l.s4 1983009808
    %v439 = vunpack.c.0.s8 %v438
    %v440 = vlaneseq
    %v441 = vshrl.u32 %v440, 7
    %v442 = vsub.s32 %v439, %v441
    %v443 = vrot.slane %v429, %v442
    %v444 = vcombine.high %v410, %v410
    %v446 = vunpack.c.l.s4 1983009808
    %v447 = vunpack.c.0.s8 %v446
    %v448 = vlaneseq
    %v449 = vshrl.u32 %v448, 7
    %v450 = vsub.s32 %v447, %v449
    %v451 = vrot.slane %v410, %v450
    %v453 = vunpack.c.l.s4 1983009808
    %v454 = vunpack.c.0.s8 %v453
    %v455 = vlaneseq
    %v456 = vshrl.u32 %v455, 7
    %v457 = vsub.s32 %v454, %v456
    %v458 = vrot.slane %v444, %v457
    %459 = vrot.lane.b32.xlu0 %v421, 124
    %v460 = vpop.permute.xlu0 %459
    %461 = vrot.lane.b32.xlu0 %v428, 124
    %v462 = vpop.permute.xlu0 %461
    %463 = vrot.lane.b32.xlu0 %v436, 124
    %v464 = vpop.permute.xlu0 %463
    %465 = vrot.lane.b32.xlu0 %v443, 124
    %v466 = vpop.permute.xlu0 %465
    %467 = vrot.lane.b32.xlu0 %v451, 124
    %v468 = vpop.permute.xlu0 %467
    %469 = vrot.lane.b32.xlu0 %v458, 124
    %v470 = vpop.permute.xlu0 %469
    %v471 = vrot.slane %v460, 4
    %v472 = vrot.slane %v462, 4
    %v473 = vrot.slane %v464, 4
    %v474 = vrot.slane %v466, 4
    %v475 = vrot.slane %v468, 4
    %v476 = vrot.slane %v470, 4
    %v477 = vsel %vm194, %v471, %v472
    %vm478 = vcmask 1014784
    %v479 = vsel %vm478, %v460, %v477
    %v480 = vsel %vm194, %v472, %v473
    %v481 = vsel %vm478, %v462, %v480
    %v482 = vsel %vm194, %v473, %v474
    %v483 = vsel %vm478, %v464, %v482
    %v484 = vsel %vm194, %v474, %v475
    %v485 = vsel %vm478, %v466, %v484
    %v486 = vsel %vm194, %v475, %v476
    %v487 = vsel %vm478, %v468, %v486
    %v488 = vsel %vm478, %v470, %v476
    %495 = vst [vmem:[#allocation2 + $0x60] sm:$0x33] %v479
    %496 = vst [vmem:[#allocation2 + $0x68] sm:$0x33] %v481
    %497 = vst [vmem:[#allocation2 + $0x70] sm:$0x33] %v483
    %498 = vst [vmem:[#allocation2 + $0x78] sm:$0x33] %v485
    %499 = vst [vmem:[#allocation2 + $0x80] sm:$0x33] %v487
    %500 = vst.msk [vmem:[#allocation2 + $0x88] sm:$0x33] %vm123, %v488
    %v501 = vld [vmem:[%s0] sm:$0xff]
    %v502 = vld [vmem:[%s0 + $0x8] sm:$0xff]
    %v503 = vld [vmem:[%s0 + $0x10] sm:$0xff]
    %v507 = vcombine.low %v501, %v501
    %v509 = vunpack.c.l.s4 1983009808
    %v510 = vunpack.c.0.s8 %v509
    %v511 = vlaneseq
    %v512 = vshrl.u32 %v511, 7
    %v513 = vsub.s32 %v510, %v512
    %v514 = vrot.slane %v507, %v513
    %v516 = vunpack.c.l.s4 1983009808
    %v517 = vunpack.c.0.s8 %v516
    %v518 = vlaneseq
    %v519 = vshrl.u32 %v518, 7
    %v520 = vsub.s32 %v517, %v519
    %v521 = vrot.slane %v501, %v520
    %v522 = vcombine.low %v502, %v502
    %v524 = vunpack.c.l.s4 1983009808
    %v525 = vunpack.c.0.s8 %v524
    %v526 = vlaneseq
    %v527 = vshrl.u32 %v526, 7
    %v528 = vsub.s32 %v525, %v527
    %v529 = vrot.slane %v522, %v528
    %v531 = vunpack.c.l.s4 1983009808
    %v532 = vunpack.c.0.s8 %v531
    %v533 = vlaneseq
    %v534 = vshrl.u32 %v533, 7
    %v535 = vsub.s32 %v532, %v534
    %v536 = vrot.slane %v502, %v535
    %v537 = vcombine.low %v503, %v503
    %v539 = vunpack.c.l.s4 1983009808
    %v540 = vunpack.c.0.s8 %v539
    %v541 = vlaneseq
    %v542 = vshrl.u32 %v541, 7
    %v543 = vsub.s32 %v540, %v542
    %v544 = vrot.slane %v537, %v543
    %v546 = vunpack.c.l.s4 1983009808
    %v547 = vunpack.c.0.s8 %v546
    %v548 = vlaneseq
    %v549 = vshrl.u32 %v548, 7
    %v550 = vsub.s32 %v547, %v549
    %v551 = vrot.slane %v503, %v550
    %552 = vrot.lane.b32.xlu0 %v514, 100
    %v553 = vpop.permute.xlu0 %552
    %554 = vrot.lane.b32.xlu0 %v521, 100
    %v555 = vpop.permute.xlu0 %554
    %556 = vrot.lane.b32.xlu0 %v529, 100
    %v557 = vpop.permute.xlu0 %556
    %558 = vrot.lane.b32.xlu0 %v536, 100
    %v559 = vpop.permute.xlu0 %558
    %560 = vrot.lane.b32.xlu0 %v544, 100
    %v561 = vpop.permute.xlu0 %560
    %562 = vrot.lane.b32.xlu0 %v551, 100
    %v563 = vpop.permute.xlu0 %562
    %v564 = vrot.slane %v553, 4
    %v565 = vrot.slane %v555, 4
    %v566 = vrot.slane %v557, 4
    %v567 = vrot.slane %v559, 4
    %v568 = vrot.slane %v561, 4
    %v569 = vrot.slane %v563, 4
    %v570 = vsel %vm194, %v564, %v565
    %vm571 = vcmask 818176
    %v572 = vsel %vm571, %v553, %v570
    %v573 = vsel %vm194, %v565, %v566
    %v574 = vsel %vm571, %v555, %v573
    %v575 = vsel %vm194, %v566, %v567
    %v576 = vsel %vm571, %v557, %v575
    %v577 = vsel %vm194, %v567, %v568
    %v578 = vsel %vm571, %v559, %v577
    %v579 = vsel %vm194, %v568, %v569
    %v580 = vsel %vm571, %v561, %v579
    %v581 = vsel %vm571, %v563, %v569
    %588 = vst [vmem:[#allocation2 + $0x60] sm:$0xcc] %v572
    %589 = vst [vmem:[#allocation2 + $0x68] sm:$0xcc] %v574
    %590 = vst [vmem:[#allocation2 + $0x70] sm:$0xcc] %v576
    %591 = vst [vmem:[#allocation2 + $0x78] sm:$0xcc] %v578
    %592 = vst [vmem:[#allocation2 + $0x80] sm:$0xcc] %v580
    %593 = vst.msk [vmem:[#allocation2 + $0x88] sm:$0xcc] %vm220, %v581
    %v594 = vld [vmem:[%s0] sm:$0xff]
    %v595 = vld [vmem:[%s0 + $0x8] sm:$0xff]
    %v596 = vld [vmem:[%s0 + $0x10] sm:$0xff]
    %v600 = vcombine.high %v594, %v594
    %v602 = vunpack.c.l.s4 1983009808
    %v603 = vunpack.c.0.s8 %v602
    %v604 = vlaneseq
    %v605 = vshrl.u32 %v604, 7
    %v606 = vsub.s32 %v603, %v605
    %v607 = vrot.slane %v594, %v606
    %v609 = vunpack.c.l.s4 1983009808
    %v610 = vunpack.c.0.s8 %v609
    %v611 = vlaneseq
    %v612 = vshrl.u32 %v611, 7
    %v613 = vsub.s32 %v610, %v612
    %v614 = vrot.slane %v600, %v613
    %v615 = vcombine.high %v595, %v595
    %v617 = vunpack.c.l.s4 1983009808
    %v618 = vunpack.c.0.s8 %v617
    %v619 = vlaneseq
    %v620 = vshrl.u32 %v619, 7
    %v621 = vsub.s32 %v618, %v620
    %v622 = vrot.slane %v595, %v621
    %v624 = vunpack.c.l.s4 1983009808
    %v625 = vunpack.c.0.s8 %v624
    %v626 = vlaneseq
    %v627 = vshrl.u32 %v626, 7
    %v628 = vsub.s32 %v625, %v627
    %v629 = vrot.slane %v615, %v628
    %v630 = vcombine.high %v596, %v596
    %v632 = vunpack.c.l.s4 1983009808
    %v633 = vunpack.c.0.s8 %v632
    %v634 = vlaneseq
    %v635 = vshrl.u32 %v634, 7
    %v636 = vsub.s32 %v633, %v635
    %v637 = vrot.slane %v596, %v636
    %v639 = vunpack.c.l.s4 1983009808
    %v640 = vunpack.c.0.s8 %v639
    %v641 = vlaneseq
    %v642 = vshrl.u32 %v641, 7
    %v643 = vsub.s32 %v640, %v642
    %v644 = vrot.slane %v630, %v643
    %645 = vrot.lane.b32.xlu0 %v607, 99
    %v646 = vpop.permute.xlu0 %645
    %647 = vrot.lane.b32.xlu0 %v614, 99
    %v648 = vpop.permute.xlu0 %647
    %649 = vrot.lane.b32.xlu0 %v622, 99
    %v650 = vpop.permute.xlu0 %649
    %651 = vrot.lane.b32.xlu0 %v629, 99
    %v652 = vpop.permute.xlu0 %651
    %653 = vrot.lane.b32.xlu0 %v637, 99
    %v654 = vpop.permute.xlu0 %653
    %655 = vrot.lane.b32.xlu0 %v644, 99
    %v656 = vpop.permute.xlu0 %655
    %v657 = vrot.slane %v646, 4
    %v658 = vrot.slane %v648, 4
    %v659 = vrot.slane %v650, 4
    %v660 = vrot.slane %v652, 4
    %v661 = vrot.slane %v654, 4
    %v662 = vrot.slane %v656, 4
    %v663 = vsel %vm194, %v657, %v658
    %vm664 = vcmask 809984
    %v665 = vsel %vm664, %v646, %v663
    %v666 = vsel %vm194, %v658, %v659
    %v667 = vsel %vm664, %v648, %v666
    %v668 = vsel %vm194, %v659, %v660
    %v669 = vsel %vm664, %v650, %v668
    %v670 = vsel %vm194, %v660, %v661
    %v671 = vsel %vm664, %v652, %v670
    %v672 = vsel %vm194, %v661, %v662
    %v673 = vsel %vm664, %v654, %v672
    %v674 = vsel %vm664, %v656, %v662
    %681 = vst [vmem:[#allocation2 + $0x90] sm:$0x33] %v665
    %682 = vst [vmem:[#allocation2 + $0x98] sm:$0x33] %v667
    %683 = vst [vmem:[#allocation2 + $0xa0] sm:$0x33] %v669
    %684 = vst [vmem:[#allocation2 + $0xa8] sm:$0x33] %v671
    %685 = vst [vmem:[#allocation2 + $0xb0] sm:$0x33] %v673
    %686 = vst.msk [vmem:[#allocation2 + $0xb8] sm:$0x33] %vm123, %v674
    %v687 = vld [vmem:[%s0] sm:$0xff]
    %v688 = vld [vmem:[%s0 + $0x8] sm:$0xff]
    %v689 = vld [vmem:[%s0 + $0x10] sm:$0xff]
    %v693 = vcombine.low %v687, %v687
    %v695 = vunpack.c.l.s4 1983009808
    %v696 = vunpack.c.0.s8 %v695
    %v697 = vlaneseq
    %v698 = vshrl.u32 %v697, 7
    %v699 = vsub.s32 %v696, %v698
    %v700 = vrot.slane %v693, %v699
    %v702 = vunpack.c.l.s4 1983009808
    %v703 = vunpack.c.0.s8 %v702
    %v704 = vlaneseq
    %v705 = vshrl.u32 %v704, 7
    %v706 = vsub.s32 %v703, %v705
    %v707 = vrot.slane %v687, %v706
    %v708 = vcombine.low %v688, %v688
    %v710 = vunpack.c.l.s4 1983009808
    %v711 = vunpack.c.0.s8 %v710
    %v712 = vlaneseq
    %v713 = vshrl.u32 %v712, 7
    %v714 = vsub.s32 %v711, %v713
    %v715 = vrot.slane %v708, %v714
    %v717 = vunpack.c.l.s4 1983009808
    %v718 = vunpack.c.0.s8 %v717
    %v719 = vlaneseq
    %v720 = vshrl.u32 %v719, 7
    %v721 = vsub.s32 %v718, %v720
    %v722 = vrot.slane %v688, %v721
    %v723 = vcombine.low %v689, %v689
    %v725 = vunpack.c.l.s4 1983009808
    %v726 = vunpack.c.0.s8 %v725
    %v727 = vlaneseq
    %v728 = vshrl.u32 %v727, 7
    %v729 = vsub.s32 %v726, %v728
    %v730 = vrot.slane %v723, %v729
    %v732 = vunpack.c.l.s4 1983009808
    %v733 = vunpack.c.0.s8 %v732
    %v734 = vlaneseq
    %v735 = vshrl.u32 %v734, 7
    %v736 = vsub.s32 %v733, %v735
    %v737 = vrot.slane %v689, %v736
    %738 = vrot.lane.b32.xlu0 %v700, 98
    %v739 = vpop.permute.xlu0 %738
    %740 = vrot.lane.b32.xlu0 %v707, 98
    %v741 = vpop.permute.xlu0 %740
    %742 = vrot.lane.b32.xlu0 %v715, 98
    %v743 = vpop.permute.xlu0 %742
    %744 = vrot.lane.b32.xlu0 %v722, 98
    %v745 = vpop.permute.xlu0 %744
    %746 = vrot.lane.b32.xlu0 %v730, 98
    %v747 = vpop.permute.xlu0 %746
    %748 = vrot.lane.b32.xlu0 %v737, 98
    %v749 = vpop.permute.xlu0 %748
    %v750 = vrot.slane %v739, 4
    %v751 = vrot.slane %v741, 4
    %v752 = vrot.slane %v743, 4
    %v753 = vrot.slane %v745, 4
    %v754 = vrot.slane %v747, 4
    %v755 = vrot.slane %v749, 4
    %v756 = vsel %vm194, %v750, %v751
    %vm757 = vcmask 801792
    %v758 = vsel %vm757, %v739, %v756
    %v759 = vsel %vm194, %v751, %v752
    %v760 = vsel %vm757, %v741, %v759
    %v761 = vsel %vm194, %v752, %v753
    %v762 = vsel %vm757, %v743, %v761
    %v763 = vsel %vm194, %v753, %v754
    %v764 = vsel %vm757, %v745, %v763
    %v765 = vsel %vm194, %v754, %v755
    %v766 = vsel %vm757, %v747, %v765
    %v767 = vsel %vm757, %v749, %v755
    %774 = vst [vmem:[#allocation2 + $0x90] sm:$0xcc] %v758
    %775 = vst [vmem:[#allocation2 + $0x98] sm:$0xcc] %v760
    %776 = vst [vmem:[#allocation2 + $0xa0] sm:$0xcc] %v762
    %777 = vst [vmem:[#allocation2 + $0xa8] sm:$0xcc] %v764
    %778 = vst [vmem:[#allocation2 + $0xb0] sm:$0xcc] %v766
    %779 = vst.msk [vmem:[#allocation2 + $0xb8] sm:$0xcc] %vm220, %v767
    %v780 = vld [vmem:[%s0] sm:$0xff]
    %v781 = vld [vmem:[%s0 + $0x8] sm:$0xff]
    %v782 = vld [vmem:[%s0 + $0x10] sm:$0xff]
    %v786 = vcombine.high %v780, %v780
    %v788 = vunpack.c.l.s4 1983009808
    %v789 = vunpack.c.0.s8 %v788
    %v790 = vlaneseq
    %v791 = vshrl.u32 %v790, 7
    %v792 = vsub.s32 %v789, %v791
    %v793 = vrot.slane %v780, %v792
    %v795 = vunpack.c.l.s4 1983009808
    %v796 = vunpack.c.0.s8 %v795
    %v797 = vlaneseq
    %v798 = vshrl.u32 %v797, 7
    %v799 = vsub.s32 %v796, %v798
    %v800 = vrot.slane %v786, %v799
    %v801 = vcombine.high %v781, %v781
    %v803 = vunpack.c.l.s4 1983009808
    %v804 = vunpack.c.0.s8 %v803
    %v805 = vlaneseq
    %v806 = vshrl.u32 %v805, 7
    %v807 = vsub.s32 %v804, %v806
    %v808 = vrot.slane %v781, %v807
    %v810 = vunpack.c.l.s4 1983009808
    %v811 = vunpack.c.0.s8 %v810
    %v812 = vlaneseq
    %v813 = vshrl.u32 %v812, 7
    %v814 = vsub.s32 %v811, %v813
    %v815 = vrot.slane %v801, %v814
    %v816 = vcombine.high %v782, %v782
    %v818 = vunpack.c.l.s4 1983009808
    %v819 = vunpack.c.0.s8 %v818
    %v820 = vlaneseq
    %v821 = vshrl.u32 %v820, 7
    %v822 = vsub.s32 %v819, %v821
    %v823 = vrot.slane %v782, %v822
    %v825 = vunpack.c.l.s4 1983009808
    %v826 = vunpack.c.0.s8 %v825
    %v827 = vlaneseq
    %v828 = vshrl.u32 %v827, 7
    %v829 = vsub.s32 %v826, %v828
    %v830 = vrot.slane %v816, %v829
    %831 = vrot.lane.b32.xlu0 %v793, 97
    %v832 = vpop.permute.xlu0 %831
    %833 = vrot.lane.b32.xlu0 %v800, 97
    %v834 = vpop.permute.xlu0 %833
    %835 = vrot.lane.b32.xlu0 %v808, 97
    %v836 = vpop.permute.xlu0 %835
    %837 = vrot.lane.b32.xlu0 %v815, 97
    %v838 = vpop.permute.xlu0 %837
    %839 = vrot.lane.b32.xlu0 %v823, 97
    %v840 = vpop.permute.xlu0 %839
    %841 = vrot.lane.b32.xlu0 %v830, 97
    %v842 = vpop.permute.xlu0 %841
    %v843 = vrot.slane %v832, 4
    %v844 = vrot.slane %v834, 4
    %v845 = vrot.slane %v836, 4
    %v846 = vrot.slane %v838, 4
    %v847 = vrot.slane %v840, 4
    %v848 = vrot.slane %v842, 4
    %v849 = vsel %vm194, %v843, %v844
    %vm850 = vcmask 793600
    %v851 = vsel %vm850, %v832, %v849
    %v852 = vsel %vm194, %v844, %v845
    %v853 = vsel %vm850, %v834, %v852
    %v854 = vsel %vm194, %v845, %v846
    %v855 = vsel %vm850, %v836, %v854
    %v856 = vsel %vm194, %v846, %v847
    %v857 = vsel %vm850, %v838, %v856
    %v858 = vsel %vm194, %v847, %v848
    %v859 = vsel %vm850, %v840, %v858
    %v860 = vsel %vm850, %v842, %v848
    %867 = vst [vmem:[#allocation2 + $0xc0] sm:$0x33] %v851
    %868 = vst [vmem:[#allocation2 + $0xc8] sm:$0x33] %v853
    %869 = vst [vmem:[#allocation2 + $0xd0] sm:$0x33] %v855
    %870 = vst [vmem:[#allocation2 + $0xd8] sm:$0x33] %v857
    %871 = vst [vmem:[#allocation2 + $0xe0] sm:$0x33] %v859
    %872 = vst.msk [vmem:[#allocation2 + $0xe8] sm:$0x33] %vm123, %v860
    %v873 = vld [vmem:[%s0] sm:$0xff]
    %v874 = vld [vmem:[%s0 + $0x8] sm:$0xff]
    %v875 = vld [vmem:[%s0 + $0x10] sm:$0xff]
    %v879 = vcombine.low %v873, %v873
    %v881 = vunpack.c.l.s4 1983009808
    %v882 = vunpack.c.0.s8 %v881
    %v883 = vlaneseq
    %v884 = vshrl.u32 %v883, 7
    %v885 = vsub.s32 %v882, %v884
    %v886 = vrot.slane %v879, %v885
    %v888 = vunpack.c.l.s4 1983009808
    %v889 = vunpack.c.0.s8 %v888
    %v890 = vlaneseq
    %v891 = vshrl.u32 %v890, 7
    %v892 = vsub.s32 %v889, %v891
    %v893 = vrot.slane %v873, %v892
    %v894 = vcombine.low %v874, %v874
    %v896 = vunpack.c.l.s4 1983009808
    %v897 = vunpack.c.0.s8 %v896
    %v898 = vlaneseq
    %v899 = vshrl.u32 %v898, 7
    %v900 = vsub.s32 %v897, %v899
    %v901 = vrot.slane %v894, %v900
    %v903 = vunpack.c.l.s4 1983009808
    %v904 = vunpack.c.0.s8 %v903
    %v905 = vlaneseq
    %v906 = vshrl.u32 %v905, 7
    %v907 = vsub.s32 %v904, %v906
    %v908 = vrot.slane %v874, %v907
    %v909 = vcombine.low %v875, %v875
    %v911 = vunpack.c.l.s4 1983009808
    %v912 = vunpack.c.0.s8 %v911
    %v913 = vlaneseq
    %v914 = vshrl.u32 %v913, 7
    %v915 = vsub.s32 %v912, %v914
    %v916 = vrot.slane %v909, %v915
    %v918 = vunpack.c.l.s4 1983009808
    %v919 = vunpack.c.0.s8 %v918
    %v920 = vlaneseq
    %v921 = vshrl.u32 %v920, 7
    %v922 = vsub.s32 %v919, %v921
    %v923 = vrot.slane %v875, %v922
    %924 = vrot.lane.b32.xlu0 %v886, 96
    %v925 = vpop.permute.xlu0 %924
    %926 = vrot.lane.b32.xlu0 %v893, 96
    %v927 = vpop.permute.xlu0 %926
    %928 = vrot.lane.b32.xlu0 %v901, 96
    %v929 = vpop.permute.xlu0 %928
    %930 = vrot.lane.b32.xlu0 %v908, 96
    %v931 = vpop.permute.xlu0 %930
    %932 = vrot.lane.b32.xlu0 %v916, 96
    %v933 = vpop.permute.xlu0 %932
    %934 = vrot.lane.b32.xlu0 %v923, 96
    %v935 = vpop.permute.xlu0 %934
    %v936 = vrot.slane %v925, 4
    %v937 = vrot.slane %v927, 4
    %v938 = vrot.slane %v929, 4
    %v939 = vrot.slane %v931, 4
    %v940 = vrot.slane %v933, 4
    %v941 = vrot.slane %v935, 4
    %v942 = vsel %vm194, %v936, %v937
    %vm943 = vcmask 785408
    %v944 = vsel %vm943, %v925, %v942
    %v945 = vsel %vm194, %v937, %v938
    %v946 = vsel %vm943, %v927, %v945
    %v947 = vsel %vm194, %v938, %v939
    %v948 = vsel %vm943, %v929, %v947
    %v949 = vsel %vm194, %v939, %v940
    %v950 = vsel %vm943, %v931, %v949
    %v951 = vsel %vm194, %v940, %v941
    %v952 = vsel %vm943, %v933, %v951
    %v953 = vsel %vm943, %v935, %v941
    %960 = vst [vmem:[#allocation2 + $0xc0] sm:$0xcc] %v944
    %961 = vst [vmem:[#allocation2 + $0xc8] sm:$0xcc] %v946
    %962 = vst [vmem:[#allocation2 + $0xd0] sm:$0xcc] %v948
    %963 = vst [vmem:[#allocation2 + $0xd8] sm:$0xcc] %v950
    %964 = vst [vmem:[#allocation2 + $0xe0] sm:$0xcc] %v952
    %965 = vst.msk [vmem:[#allocation2 + $0xe8] sm:$0xcc] %vm220, %v953
    %v966 = vld [vmem:[%s0] sm:$0xff]
    %v967 = vld [vmem:[%s0 + $0x8] sm:$0xff]
    %v968 = vld [vmem:[%s0 + $0x10] sm:$0xff]
    %v972 = vcombine.high %v966, %v966
    %v974 = vunpack.c.l.s4 1983009808
    %v975 = vunpack.c.0.s8 %v974
    %v976 = vlaneseq
    %v977 = vshrl.u32 %v976, 7
    %v978 = vsub.s32 %v975, %v977
    %v979 = vrot.slane %v966, %v978
    %v981 = vunpack.c.l.s4 1983009808
    %v982 = vunpack.c.0.s8 %v981
    %v983 = vlaneseq
    %v984 = vshrl.u32 %v983, 7
    %v985 = vsub.s32 %v982, %v984
    %v986 = vrot.slane %v972, %v985
    %v987 = vcombine.high %v967, %v967
    %v989 = vunpack.c.l.s4 1983009808
    %v990 = vunpack.c.0.s8 %v989
    %v991 = vlaneseq
    %v992 = vshrl.u32 %v991, 7
    %v993 = vsub.s32 %v990, %v992
    %v994 = vrot.slane %v967, %v993
    %v996 = vunpack.c.l.s4 1983009808
    %v997 = vunpack.c.0.s8 %v996
    %v998 = vlaneseq
    %v999 = vshrl.u32 %v998, 7
    %v1000 = vsub.s32 %v997, %v999
    %v1001 = vrot.slane %v987, %v1000
    %v1002 = vcombine.high %v968, %v968
    %v1004 = vunpack.c.l.s4 1983009808
    %v1005 = vunpack.c.0.s8 %v1004
    %v1006 = vlaneseq
    %v1007 = vshrl.u32 %v1006, 7
    %v1008 = vsub.s32 %v1005, %v1007
    %v1009 = vrot.slane %v968, %v1008
    %v1011 = vunpack.c.l.s4 1983009808
    %v1012 = vunpack.c.0.s8 %v1011
    %v1013 = vlaneseq
    %v1014 = vshrl.u32 %v1013, 7
    %v1015 = vsub.s32 %v1012, %v1014
    %v1016 = vrot.slane %v1002, %v1015
    %1017 = vrot.lane.b32.xlu0 %v979, 72
    %v1018 = vpop.permute.xlu0 %1017
    %1019 = vrot.lane.b32.xlu0 %v986, 72
    %v1020 = vpop.permute.xlu0 %1019
    %1021 = vrot.lane.b32.xlu0 %v994, 72
    %v1022 = vpop.permute.xlu0 %1021
    %1023 = vrot.lane.b32.xlu0 %v1001, 72
    %v1024 = vpop.permute.xlu0 %1023
    %1025 = vrot.lane.b32.xlu0 %v1009, 72
    %v1026 = vpop.permute.xlu0 %1025
    %1027 = vrot.lane.b32.xlu0 %v1016, 72
    %v1028 = vpop.permute.xlu0 %1027
    %v1029 = vrot.slane %v1018, 4
    %v1030 = vrot.slane %v1020, 4
    %v1031 = vrot.slane %v1022, 4
    %v1032 = vrot.slane %v1024, 4
    %v1033 = vrot.slane %v1026, 4
    %v1034 = vrot.slane %v1028, 4
    %v1035 = vsel %vm194, %v1029, %v1030
    %vm1036 = vcmask 588800
    %v1037 = vsel %vm1036, %v1018, %v1035
    %v1038 = vsel %vm194, %v1030, %v1031
    %v1039 = vsel %vm1036, %v1020, %v1038
    %v1040 = vsel %vm194, %v1031, %v1032
    %v1041 = vsel %vm1036, %v1022, %v1040
    %v1042 = vsel %vm194, %v1032, %v1033
    %v1043 = vsel %vm1036, %v1024, %v1042
    %v1044 = vsel %vm194, %v1033, %v1034
    %v1045 = vsel %vm1036, %v1026, %v1044
    %v1046 = vsel %vm1036, %v1028, %v1034
    %1053 = vst [vmem:[#allocation2 + $0xf0] sm:$0x33] %v1037
    %1054 = vst [vmem:[#allocation2 + $0xf8] sm:$0x33] %v1039
    %1055 = vst [vmem:[#allocation2 + $0x100] sm:$0x33] %v1041
    %1056 = vst [vmem:[#allocation2 + $0x108] sm:$0x33] %v1043
    %1057 = vst [vmem:[#allocation2 + $0x110] sm:$0x33] %v1045
    %1058 = vst.msk [vmem:[#allocation2 + $0x118] sm:$0x33] %vm123, %v1046
    %v1059 = vld [vmem:[%s0] sm:$0xff]
    %v1060 = vld [vmem:[%s0 + $0x8] sm:$0xff]
    %v1061 = vld [vmem:[%s0 + $0x10] sm:$0xff]
    %v1065 = vcombine.low %v1059, %v1059
    %v1067 = vunpack.c.l.s4 1983009808
    %v1068 = vunpack.c.0.s8 %v1067
    %v1069 = vlaneseq
    %v1070 = vshrl.u32 %v1069, 7
    %v1071 = vsub.s32 %v1068, %v1070
    %v1072 = vrot.slane %v1065, %v1071
    %v1074 = vunpack.c.l.s4 1983009808
    %v1075 = vunpack.c.0.s8 %v1074
    %v1076 = vlaneseq
    %v1077 = vshrl.u32 %v1076, 7
    %v1078 = vsub.s32 %v1075, %v1077
    %v1079 = vrot.slane %v1059, %v1078
    %v1080 = vcombine.low %v1060, %v1060
    %v1082 = vunpack.c.l.s4 1983009808
    %v1083 = vunpack.c.0.s8 %v1082
    %v1084 = vlaneseq
    %v1085 = vshrl.u32 %v1084, 7
    %v1086 = vsub.s32 %v1083, %v1085
    %v1087 = vrot.slane %v1080, %v1086
    %v1089 = vunpack.c.l.s4 1983009808
    %v1090 = vunpack.c.0.s8 %v1089
    %v1091 = vlaneseq
    %v1092 = vshrl.u32 %v1091, 7
    %v1093 = vsub.s32 %v1090, %v1092
    %v1094 = vrot.slane %v1060, %v1093
    %v1095 = vcombine.low %v1061, %v1061
    %v1097 = vunpack.c.l.s4 1983009808
    %v1098 = vunpack.c.0.s8 %v1097
    %v1099 = vlaneseq
    %v1100 = vshrl.u32 %v1099, 7
    %v1101 = vsub.s32 %v1098, %v1100
    %v1102 = vrot.slane %v1095, %v1101
    %v1104 = vunpack.c.l.s4 1983009808
    %v1105 = vunpack.c.0.s8 %v1104
    %v1106 = vlaneseq
    %v1107 = vshrl.u32 %v1106, 7
    %v1108 = vsub.s32 %v1105, %v1107
    %v1109 = vrot.slane %v1061, %v1108
    %1110 = vrot.lane.b32.xlu0 %v1072, 71
    %v1111 = vpop.permute.xlu0 %1110
    %1112 = vrot.lane.b32.xlu0 %v1079, 71
    %v1113 = vpop.permute.xlu0 %1112
    %1114 = vrot.lane.b32.xlu0 %v1087, 71
    %v1115 = vpop.permute.xlu0 %1114
    %1116 = vrot.lane.b32.xlu0 %v1094, 71
    %v1117 = vpop.permute.xlu0 %1116
    %1118 = vrot.lane.b32.xlu0 %v1102, 71
    %v1119 = vpop.permute.xlu0 %1118
    %1120 = vrot.lane.b32.xlu0 %v1109, 71
    %v1121 = vpop.permute.xlu0 %1120
    %v1122 = vrot.slane %v1111, 4
    %v1123 = vrot.slane %v1113, 4
    %v1124 = vrot.slane %v1115, 4
    %v1125 = vrot.slane %v1117, 4
    %v1126 = vrot.slane %v1119, 4
    %v1127 = vrot.slane %v1121, 4
    %v1128 = vsel %vm194, %v1122, %v1123
    %vm1129 = vcmask 580608
    %v1130 = vsel %vm1129, %v1111, %v1128
    %v1131 = vsel %vm194, %v1123, %v1124
    %v1132 = vsel %vm1129, %v1113, %v1131
    %v1133 = vsel %vm194, %v1124, %v1125
    %v1134 = vsel %vm1129, %v1115, %v1133
    %v1135 = vsel %vm194, %v1125, %v1126
    %v1136 = vsel %vm1129, %v1117, %v1135
    %v1137 = vsel %vm194, %v1126, %v1127
    %v1138 = vsel %vm1129, %v1119, %v1137
    %v1139 = vsel %vm1129, %v1121, %v1127
    %1146 = vst [vmem:[#allocation2 + $0xf0] sm:$0xcc] %v1130
    %1147 = vst [vmem:[#allocation2 + $0xf8] sm:$0xcc] %v1132
    %1148 = vst [vmem:[#allocation2 + $0x100] sm:$0xcc] %v1134
    %1149 = vst [vmem:[#allocation2 + $0x108] sm:$0xcc] %v1136
    %1150 = vst [vmem:[#allocation2 + $0x110] sm:$0xcc] %v1138
    %1151 = vst.msk [vmem:[#allocation2 + $0x118] sm:$0xcc] %vm220, %v1139
    %v1152 = vld [vmem:[%s0] sm:$0xff]
    %v1153 = vld [vmem:[%s0 + $0x8] sm:$0xff]
    %v1154 = vld [vmem:[%s0 + $0x10] sm:$0xff]
    %v1158 = vcombine.high %v1152, %v1152
    %v1160 = vunpack.c.l.s4 1983009808
    %v1161 = vunpack.c.0.s8 %v1160
    %v1162 = vlaneseq
    %v1163 = vshrl.u32 %v1162, 7
    %v1164 = vsub.s32 %v1161, %v1163
    %v1165 = vrot.slane %v1152, %v1164
    %v1167 = vunpack.c.l.s4 1983009808
    %v1168 = vunpack.c.0.s8 %v1167
    %v1169 = vlaneseq
    %v1170 = vshrl.u32 %v1169, 7
    %v1171 = vsub.s32 %v1168, %v1170
    %v1172 = vrot.slane %v1158, %v1171
    %v1173 = vcombine.high %v1153, %v1153
    %v1175 = vunpack.c.l.s4 1983009808
    %v1176 = vunpack.c.0.s8 %v1175
    %v1177 = vlaneseq
    %v1178 = vshrl.u32 %v1177, 7
    %v1179 = vsub.s32 %v1176, %v1178
    %v1180 = vrot.slane %v1153, %v1179
    %v1182 = vunpack.c.l.s4 1983009808
    %v1183 = vunpack.c.0.s8 %v1182
    %v1184 = vlaneseq
    %v1185 = vshrl.u32 %v1184, 7
    %v1186 = vsub.s32 %v1183, %v1185
    %v1187 = vrot.slane %v1173, %v1186
    %v1188 = vcombine.high %v1154, %v1154
    %v1190 = vunpack.c.l.s4 1983009808
    %v1191 = vunpack.c.0.s8 %v1190
    %v1192 = vlaneseq
    %v1193 = vshrl.u32 %v1192, 7
    %v1194 = vsub.s32 %v1191, %v1193
    %v1195 = vrot.slane %v1154, %v1194
    %v1197 = vunpack.c.l.s4 1983009808
    %v1198 = vunpack.c.0.s8 %v1197
    %v1199 = vlaneseq
    %v1200 = vshrl.u32 %v1199, 7
    %v1201 = vsub.s32 %v1198, %v1200
    %v1202 = vrot.slane %v1188, %v1201
    %1203 = vrot.lane.b32.xlu0 %v1165, 70
    %v1204 = vpop.permute.xlu0 %1203
    %1205 = vrot.lane.b32.xlu0 %v1172, 70
    %v1206 = vpop.permute.xlu0 %1205
    %1207 = vrot.lane.b32.xlu0 %v1180, 70
    %v1208 = vpop.permute.xlu0 %1207
    %1209 = vrot.lane.b32.xlu0 %v1187, 70
    %v1210 = vpop.permute.xlu0 %1209
    %1211 = vrot.lane.b32.xlu0 %v1195, 70
    %v1212 = vpop.permute.xlu0 %1211
    %1213 = vrot.lane.b32.xlu0 %v1202, 70
    %v1214 = vpop.permute.xlu0 %1213
    %v1215 = vrot.slane %v1204, 4
    %v1216 = vrot.slane %v1206, 4
    %v1217 = vrot.slane %v1208, 4
    %v1218 = vrot.slane %v1210, 4
    %v1219 = vrot.slane %v1212, 4
    %v1220 = vrot.slane %v1214, 4
    %v1221 = vsel %vm194, %v1215, %v1216
    %vm1222 = vcmask 572416
    %v1223 = vsel %vm1222, %v1204, %v1221
    %v1224 = vsel %vm194, %v1216, %v1217
    %v1225 = vsel %vm1222, %v1206, %v1224
    %v1226 = vsel %vm194, %v1217, %v1218
    %v1227 = vsel %vm1222, %v1208, %v1226
    %v1228 = vsel %vm194, %v1218, %v1219
    %v1229 = vsel %vm1222, %v1210, %v1228
    %v1230 = vsel %vm194, %v1219, %v1220
    %v1231 = vsel %vm1222, %v1212, %v1230
    %v1232 = vsel %vm1222, %v1214, %v1220
    %1239 = vst [vmem:[#allocation2 + $0x120] sm:$0x33] %v1223
    %1240 = vst [vmem:[#allocation2 + $0x128] sm:$0x33] %v1225
    %1241 = vst [vmem:[#allocation2 + $0x130] sm:$0x33] %v1227
    %1242 = vst [vmem:[#allocation2 + $0x138] sm:$0x33] %v1229
    %1243 = vst [vmem:[#allocation2 + $0x140] sm:$0x33] %v1231
    %1244 = vst.msk [vmem:[#allocation2 + $0x148] sm:$0x33] %vm123, %v1232
    %v1245 = vld [vmem:[%s0] sm:$0xff]
    %v1246 = vld [vmem:[%s0 + $0x8] sm:$0xff]
    %v1247 = vld [vmem:[%s0 + $0x10] sm:$0xff]
    %v1251 = vcombine.low %v1245, %v1245
    %v1253 = vunpack.c.l.s4 1983009808
    %v1254 = vunpack.c.0.s8 %v1253
    %v1255 = vlaneseq
    %v1256 = vshrl.u32 %v1255, 7
    %v1257 = vsub.s32 %v1254, %v1256
    %v1258 = vrot.slane %v1251, %v1257
    %v1260 = vunpack.c.l.s4 1983009808
    %v1261 = vunpack.c.0.s8 %v1260
    %v1262 = vlaneseq
    %v1263 = vshrl.u32 %v1262, 7
    %v1264 = vsub.s32 %v1261, %v1263
    %v1265 = vrot.slane %v1245, %v1264
    %v1266 = vcombine.low %v1246, %v1246
    %v1268 = vunpack.c.l.s4 1983009808
    %v1269 = vunpack.c.0.s8 %v1268
    %v1270 = vlaneseq
    %v1271 = vshrl.u32 %v1270, 7
    %v1272 = vsub.s32 %v1269, %v1271
    %v1273 = vrot.slane %v1266, %v1272
    %v1275 = vunpack.c.l.s4 1983009808
    %v1276 = vunpack.c.0.s8 %v1275
    %v1277 = vlaneseq
    %v1278 = vshrl.u32 %v1277, 7
    %v1279 = vsub.s32 %v1276, %v1278
    %v1280 = vrot.slane %v1246, %v1279
    %v1281 = vcombine.low %v1247, %v1247
    %v1283 = vunpack.c.l.s4 1983009808
    %v1284 = vunpack.c.0.s8 %v1283
    %v1285 = vlaneseq
    %v1286 = vshrl.u32 %v1285, 7
    %v1287 = vsub.s32 %v1284, %v1286
    %v1288 = vrot.slane %v1281, %v1287
    %v1290 = vunpack.c.l.s4 1983009808
    %v1291 = vunpack.c.0.s8 %v1290
    %v1292 = vlaneseq
    %v1293 = vshrl.u32 %v1292, 7
    %v1294 = vsub.s32 %v1291, %v1293
    %v1295 = vrot.slane %v1247, %v1294
    %1296 = vrot.lane.b32.xlu0 %v1258, 69
    %v1297 = vpop.permute.xlu0 %1296
    %1298 = vrot.lane.b32.xlu0 %v1265, 69
    %v1299 = vpop.permute.xlu0 %1298
    %1300 = vrot.lane.b32.xlu0 %v1273, 69
    %v1301 = vpop.permute.xlu0 %1300
    %1302 = vrot.lane.b32.xlu0 %v1280, 69
    %v1303 = vpop.permute.xlu0 %1302
    %1304 = vrot.lane.b32.xlu0 %v1288, 69
    %v1305 = vpop.permute.xlu0 %1304
    %1306 = vrot.lane.b32.xlu0 %v1295, 69
    %v1307 = vpop.permute.xlu0 %1306
    %v1308 = vrot.slane %v1297, 4
    %v1309 = vrot.slane %v1299, 4
    %v1310 = vrot.slane %v1301, 4
    %v1311 = vrot.slane %v1303, 4
    %v1312 = vrot.slane %v1305, 4
    %v1313 = vrot.slane %v1307, 4
    %v1314 = vsel %vm194, %v1308, %v1309
    %vm1315 = vcmask 564224
    %v1316 = vsel %vm1315, %v1297, %v1314
    %v1317 = vsel %vm194, %v1309, %v1310
    %v1318 = vsel %vm1315, %v1299, %v1317
    %v1319 = vsel %vm194, %v1310, %v1311
    %v1320 = vsel %vm1315, %v1301, %v1319
    %v1321 = vsel %vm194, %v1311, %v1312
    %v1322 = vsel %vm1315, %v1303, %v1321
    %v1323 = vsel %vm194, %v1312, %v1313
    %v1324 = vsel %vm1315, %v1305, %v1323
    %v1325 = vsel %vm1315, %v1307, %v1313
    %1332 = vst [vmem:[#allocation2 + $0x120] sm:$0xcc] %v1316
    %1333 = vst [vmem:[#allocation2 + $0x128] sm:$0xcc] %v1318
    %1334 = vst [vmem:[#allocation2 + $0x130] sm:$0xcc] %v1320
    %1335 = vst [vmem:[#allocation2 + $0x138] sm:$0xcc] %v1322
    %1336 = vst [vmem:[#allocation2 + $0x140] sm:$0xcc] %v1324
    %1337 = vst.msk [vmem:[#allocation2 + $0x148] sm:$0xcc] %vm220, %v1325
    %v1338 = vld [vmem:[%s0] sm:$0xff]
    %v1339 = vld [vmem:[%s0 + $0x8] sm:$0xff]
    %v1340 = vld [vmem:[%s0 + $0x10] sm:$0xff]
    %v1344 = vcombine.high %v1338, %v1338
    %v1346 = vunpack.c.l.s4 1983009808
    %v1347 = vunpack.c.0.s8 %v1346
    %v1348 = vlaneseq
    %v1349 = vshrl.u32 %v1348, 7
    %v1350 = vsub.s32 %v1347, %v1349
    %v1351 = vrot.slane %v1338, %v1350
    %v1353 = vunpack.c.l.s4 1983009808
    %v1354 = vunpack.c.0.s8 %v1353
    %v1355 = vlaneseq
    %v1356 = vshrl.u32 %v1355, 7
    %v1357 = vsub.s32 %v1354, %v1356
    %v1358 = vrot.slane %v1344, %v1357
    %v1359 = vcombine.high %v1339, %v1339
    %v1361 = vunpack.c.l.s4 1983009808
    %v1362 = vunpack.c.0.s8 %v1361
    %v1363 = vlaneseq
    %v1364 = vshrl.u32 %v1363, 7
    %v1365 = vsub.s32 %v1362, %v1364
    %v1366 = vrot.slane %v1339, %v1365
    %v1368 = vunpack.c.l.s4 1983009808
    %v1369 = vunpack.c.0.s8 %v1368
    %v1370 = vlaneseq
    %v1371 = vshrl.u32 %v1370, 7
    %v1372 = vsub.s32 %v1369, %v1371
    %v1373 = vrot.slane %v1359, %v1372
    %v1374 = vcombine.high %v1340, %v1340
    %v1376 = vunpack.c.l.s4 1983009808
    %v1377 = vunpack.c.0.s8 %v1376
    %v1378 = vlaneseq
    %v1379 = vshrl.u32 %v1378, 7
    %v1380 = vsub.s32 %v1377, %v1379
    %v1381 = vrot.slane %v1340, %v1380
    %v1383 = vunpack.c.l.s4 1983009808
    %v1384 = vunpack.c.0.s8 %v1383
    %v1385 = vlaneseq
    %v1386 = vshrl.u32 %v1385, 7
    %v1387 = vsub.s32 %v1384, %v1386
    %v1388 = vrot.slane %v1374, %v1387
    %1389 = vrot.lane.b32.xlu0 %v1351, 68
    %v1390 = vpop.permute.xlu0 %1389
    %1391 = vrot.lane.b32.xlu0 %v1358, 68
    %v1392 = vpop.permute.xlu0 %1391
    %1393 = vrot.lane.b32.xlu0 %v1366, 68
    %v1394 = vpop.permute.xlu0 %1393
    %1395 = vrot.lane.b32.xlu0 %v1373, 68
    %v1396 = vpop.permute.xlu0 %1395
    %1397 = vrot.lane.b32.xlu0 %v1381, 68
    %v1398 = vpop.permute.xlu0 %1397
    %1399 = vrot.lane.b32.xlu0 %v1388, 68
    %v1400 = vpop.permute.xlu0 %1399
    %v1401 = vrot.slane %v1390, 4
    %v1402 = vrot.slane %v1392, 4
    %v1403 = vrot.slane %v1394, 4
    %v1404 = vrot.slane %v1396, 4
    %v1405 = vrot.slane %v1398, 4
    %v1406 = vrot.slane %v1400, 4
    %v1407 = vsel %vm194, %v1401, %v1402
    %vm1408 = vcmask 556032
    %v1409 = vsel %vm1408, %v1390, %v1407
    %v1410 = vsel %vm194, %v1402, %v1403
    %v1411 = vsel %vm1408, %v1392, %v1410
    %v1412 = vsel %vm194, %v1403, %v1404
    %v1413 = vsel %vm1408, %v1394, %v1412
    %v1414 = vsel %vm194, %v1404, %v1405
    %v1415 = vsel %vm1408, %v1396, %v1414
    %v1416 = vsel %vm194, %v1405, %v1406
    %v1417 = vsel %vm1408, %v1398, %v1416
    %v1418 = vsel %vm1408, %v1400, %v1406
    %1425 = vst [vmem:[#allocation2 + $0x150] sm:$0x33] %v1409
    %1426 = vst [vmem:[#allocation2 + $0x158] sm:$0x33] %v1411
    %1427 = vst [vmem:[#allocation2 + $0x160] sm:$0x33] %v1413
    %1428 = vst [vmem:[#allocation2 + $0x168] sm:$0x33] %v1415
    %1429 = vst [vmem:[#allocation2 + $0x170] sm:$0x33] %v1417
    %1430 = vst.msk [vmem:[#allocation2 + $0x178] sm:$0x33] %vm123, %v1418
    %v1431 = vld [vmem:[%s0] sm:$0xff]
    %v1432 = vld [vmem:[%s0 + $0x8] sm:$0xff]
    %v1433 = vld [vmem:[%s0 + $0x10] sm:$0xff]
    %v1437 = vcombine.low %v1431, %v1431
    %v1439 = vunpack.c.l.s4 1983009808
    %v1440 = vunpack.c.0.s8 %v1439
    %v1441 = vlaneseq
    %v1442 = vshrl.u32 %v1441, 7
    %v1443 = vsub.s32 %v1440, %v1442
    %v1444 = vrot.slane %v1437, %v1443
    %v1446 = vunpack.c.l.s4 1983009808
    %v1447 = vunpack.c.0.s8 %v1446
    %v1448 = vlaneseq
    %v1449 = vshrl.u32 %v1448, 7
    %v1450 = vsub.s32 %v1447, %v1449
    %v1451 = vrot.slane %v1431, %v1450
    %v1452 = vcombine.low %v1432, %v1432
    %v1454 = vunpack.c.l.s4 1983009808
    %v1455 = vunpack.c.0.s8 %v1454
    %v1456 = vlaneseq
    %v1457 = vshrl.u32 %v1456, 7
    %v1458 = vsub.s32 %v1455, %v1457
    %v1459 = vrot.slane %v1452, %v1458
    %v1461 = vunpack.c.l.s4 1983009808
    %v1462 = vunpack.c.0.s8 %v1461
    %v1463 = vlaneseq
    %v1464 = vshrl.u32 %v1463, 7
    %v1465 = vsub.s32 %v1462, %v1464
    %v1466 = vrot.slane %v1432, %v1465
    %v1467 = vcombine.low %v1433, %v1433
    %v1469 = vunpack.c.l.s4 1983009808
    %v1470 = vunpack.c.0.s8 %v1469
    %v1471 = vlaneseq
    %v1472 = vshrl.u32 %v1471, 7
    %v1473 = vsub.s32 %v1470, %v1472
    %v1474 = vrot.slane %v1467, %v1473
    %v1476 = vunpack.c.l.s4 1983009808
    %v1477 = vunpack.c.0.s8 %v1476
    %v1478 = vlaneseq
    %v1479 = vshrl.u32 %v1478, 7
    %v1480 = vsub.s32 %v1477, %v1479
    %v1481 = vrot.slane %v1433, %v1480
    %1482 = vrot.lane.b32.xlu0 %v1444, 44
    %v1483 = vpop.permute.xlu0 %1482
    %1484 = vrot.lane.b32.xlu0 %v1451, 44
    %v1485 = vpop.permute.xlu0 %1484
    %1486 = vrot.lane.b32.xlu0 %v1459, 44
    %v1487 = vpop.permute.xlu0 %1486
    %1488 = vrot.lane.b32.xlu0 %v1466, 44
    %v1489 = vpop.permute.xlu0 %1488
    %1490 = vrot.lane.b32.xlu0 %v1474, 44
    %v1491 = vpop.permute.xlu0 %1490
    %1492 = vrot.lane.b32.xlu0 %v1481, 44
    %v1493 = vpop.permute.xlu0 %1492
    %v1494 = vrot.slane %v1483, 4
    %v1495 = vrot.slane %v1485, 4
    %v1496 = vrot.slane %v1487, 4
    %v1497 = vrot.slane %v1489, 4
    %v1498 = vrot.slane %v1491, 4
    %v1499 = vrot.slane %v1493, 4
    %v1500 = vsel %vm194, %v1494, %v1495
    %vm1501 = vcmask 359424
    %v1502 = vsel %vm1501, %v1483, %v1500
    %v1503 = vsel %vm194, %v1495, %v1496
    %v1504 = vsel %vm1501, %v1485, %v1503
    %v1505 = vsel %vm194, %v1496, %v1497
    %v1506 = vsel %vm1501, %v1487, %v1505
    %v1507 = vsel %vm194, %v1497, %v1498
    %v1508 = vsel %vm1501, %v1489, %v1507
    %v1509 = vsel %vm194, %v1498, %v1499
    %v1510 = vsel %vm1501, %v1491, %v1509
    %v1511 = vsel %vm1501, %v1493, %v1499
    %1518 = vst [vmem:[#allocation2 + $0x150] sm:$0xcc] %v1502
    %1519 = vst [vmem:[#allocation2 + $0x158] sm:$0xcc] %v1504
    %1520 = vst [vmem:[#allocation2 + $0x160] sm:$0xcc] %v1506
    %1521 = vst [vmem:[#allocation2 + $0x168] sm:$0xcc] %v1508
    %1522 = vst [vmem:[#allocation2 + $0x170] sm:$0xcc] %v1510
    %1523 = vst.msk [vmem:[#allocation2 + $0x178] sm:$0xcc] %vm220, %v1511
    %v1524 = vld [vmem:[%s0] sm:$0xff]
    %v1525 = vld [vmem:[%s0 + $0x8] sm:$0xff]
    %v1526 = vld [vmem:[%s0 + $0x10] sm:$0xff]
    %v1527 = vld [vmem:[%s0 + $0x18] sm:$0x3]
    %v1532 = vcombine.high %v1524, %v1524
    %v1534 = vunpack.c.l.s4 1983009808
    %v1535 = vunpack.c.0.s8 %v1534
    %v1536 = vlaneseq
    %v1537 = vshrl.u32 %v1536, 7
    %v1538 = vsub.s32 %v1535, %v1537
    %v1539 = vrot.slane %v1524, %v1538
    %v1541 = vunpack.c.l.s4 1983009808
    %v1542 = vunpack.c.0.s8 %v1541
    %v1543 = vlaneseq
    %v1544 = vshrl.u32 %v1543, 7
    %v1545 = vsub.s32 %v1542, %v1544
    %v1546 = vrot.slane %v1532, %v1545
    %v1547 = vcombine.high %v1525, %v1525
    %v1549 = vunpack.c.l.s4 1983009808
    %v1550 = vunpack.c.0.s8 %v1549
    %v1551 = vlaneseq
    %v1552 = vshrl.u32 %v1551, 7
    %v1553 = vsub.s32 %v1550, %v1552
    %v1554 = vrot.slane %v1525, %v1553
    %v1556 = vunpack.c.l.s4 1983009808
    %v1557 = vunpack.c.0.s8 %v1556
    %v1558 = vlaneseq
    %v1559 = vshrl.u32 %v1558, 7
    %v1560 = vsub.s32 %v1557, %v1559
    %v1561 = vrot.slane %v1547, %v1560
    %v1562 = vcombine.high %v1526, %v1526
    %v1564 = vunpack.c.l.s4 1983009808
    %v1565 = vunpack.c.0.s8 %v1564
    %v1566 = vlaneseq
    %v1567 = vshrl.u32 %v1566, 7
    %v1568 = vsub.s32 %v1565, %v1567
    %v1569 = vrot.slane %v1526, %v1568
    %v1571 = vunpack.c.l.s4 1983009808
    %v1572 = vunpack.c.0.s8 %v1571
    %v1573 = vlaneseq
    %v1574 = vshrl.u32 %v1573, 7
    %v1575 = vsub.s32 %v1572, %v1574
    %v1576 = vrot.slane %v1562, %v1575
    %v1578 = vunpack.c.l.s4 1983009808
    %v1579 = vunpack.c.0.s8 %v1578
    %v1580 = vlaneseq
    %v1581 = vshrl.u32 %v1580, 7
    %v1582 = vsub.s32 %v1579, %v1581
    %v1583 = vrot.slane %v1527, %v1582
    %1584 = vrot.lane.b32.xlu0 %v1539, 43
    %v1585 = vpop.permute.xlu0 %1584
    %1586 = vrot.lane.b32.xlu0 %v1546, 43
    %v1587 = vpop.permute.xlu0 %1586
    %1588 = vrot.lane.b32.xlu0 %v1554, 43
    %v1589 = vpop.permute.xlu0 %1588
    %1590 = vrot.lane.b32.xlu0 %v1561, 43
    %v1591 = vpop.permute.xlu0 %1590
    %1592 = vrot.lane.b32.xlu0 %v1569, 43
    %v1593 = vpop.permute.xlu0 %1592
    %1594 = vrot.lane.b32.xlu0 %v1576, 43
    %v1595 = vpop.permute.xlu0 %1594
    %1596 = vrot.lane.b32.xlu0 %v1583, 43
    %v1597 = vpop.permute.xlu0 %1596
    %v1598 = vrot.slane %v1585, 4
    %v1599 = vrot.slane %v1587, 4
    %v1600 = vrot.slane %v1589, 4
    %v1601 = vrot.slane %v1591, 4
    %v1602 = vrot.slane %v1593, 4
    %v1603 = vrot.slane %v1595, 4
    %v1604 = vrot.slane %v1597, 4
    %v1605 = vsel %vm194, %v1598, %v1599
    %vm1606 = vcmask 351232
    %v1607 = vsel %vm1606, %v1585, %v1605
    %v1608 = vsel %vm194, %v1599, %v1600
    %v1609 = vsel %vm1606, %v1587, %v1608
    %v1610 = vsel %vm194, %v1600, %v1601
    %v1611 = vsel %vm1606, %v1589, %v1610
    %v1612 = vsel %vm194, %v1601, %v1602
    %v1613 = vsel %vm1606, %v1591, %v1612
    %v1614 = vsel %vm194, %v1602, %v1603
    %v1615 = vsel %vm1606, %v1593, %v1614
    %v1616 = vsel %vm194, %v1603, %v1604
    %v1617 = vsel %vm1606, %v1595, %v1616
    %1624 = vst [vmem:[#allocation2 + $0x180] sm:$0x33] %v1607
    %1625 = vst [vmem:[#allocation2 + $0x188] sm:$0x33] %v1609
    %1626 = vst [vmem:[#allocation2 + $0x190] sm:$0x33] %v1611
    %1627 = vst [vmem:[#allocation2 + $0x198] sm:$0x33] %v1613
    %1628 = vst [vmem:[#allocation2 + $0x1a0] sm:$0x33] %v1615
    %1629 = vst.msk [vmem:[#allocation2 + $0x1a8] sm:$0x33] %vm123, %v1617
    %v1630 = vld [vmem:[%s0] sm:$0xff]
    %v1631 = vld [vmem:[%s0 + $0x8] sm:$0xff]
    %v1632 = vld [vmem:[%s0 + $0x10] sm:$0xff]
    %v1633 = vld [vmem:[%s0 + $0x18] sm:$0x3]
    %v1638 = vcombine.low %v1630, %v1630
    %v1640 = vunpack.c.l.s4 1983009808
    %v1641 = vunpack.c.0.s8 %v1640
    %v1642 = vlaneseq
    %v1643 = vshrl.u32 %v1642, 7
    %v1644 = vsub.s32 %v1641, %v1643
    %v1645 = vrot.slane %v1638, %v1644
    %v1647 = vunpack.c.l.s4 1983009808
    %v1648 = vunpack.c.0.s8 %v1647
    %v1649 = vlaneseq
    %v1650 = vshrl.u32 %v1649, 7
    %v1651 = vsub.s32 %v1648, %v1650
    %v1652 = vrot.slane %v1630, %v1651
    %v1653 = vcombine.low %v1631, %v1631
    %v1655 = vunpack.c.l.s4 1983009808
    %v1656 = vunpack.c.0.s8 %v1655
    %v1657 = vlaneseq
    %v1658 = vshrl.u32 %v1657, 7
    %v1659 = vsub.s32 %v1656, %v1658
    %v1660 = vrot.slane %v1653, %v1659
    %v1662 = vunpack.c.l.s4 1983009808
    %v1663 = vunpack.c.0.s8 %v1662
    %v1664 = vlaneseq
    %v1665 = vshrl.u32 %v1664, 7
    %v1666 = vsub.s32 %v1663, %v1665
    %v1667 = vrot.slane %v1631, %v1666
    %v1668 = vcombine.low %v1632, %v1632
    %v1670 = vunpack.c.l.s4 1983009808
    %v1671 = vunpack.c.0.s8 %v1670
    %v1672 = vlaneseq
    %v1673 = vshrl.u32 %v1672, 7
    %v1674 = vsub.s32 %v1671, %v1673
    %v1675 = vrot.slane %v1668, %v1674
    %v1677 = vunpack.c.l.s4 1983009808
    %v1678 = vunpack.c.0.s8 %v1677
    %v1679 = vlaneseq
    %v1680 = vshrl.u32 %v1679, 7
    %v1681 = vsub.s32 %v1678, %v1680
    %v1682 = vrot.slane %v1632, %v1681
    %v1683 = vcombine.low %v1633, %v1633
    %v1685 = vunpack.c.l.s4 1983009808
    %v1686 = vunpack.c.0.s8 %v1685
    %v1687 = vlaneseq
    %v1688 = vshrl.u32 %v1687, 7
    %v1689 = vsub.s32 %v1686, %v1688
    %v1690 = vrot.slane %v1683, %v1689
    %1691 = vrot.lane.b32.xlu0 %v1645, 42
    %v1692 = vpop.permute.xlu0 %1691
    %1693 = vrot.lane.b32.xlu0 %v1652, 42
    %v1694 = vpop.permute.xlu0 %1693
    %1695 = vrot.lane.b32.xlu0 %v1660, 42
    %v1696 = vpop.permute.xlu0 %1695
    %1697 = vrot.lane.b32.xlu0 %v1667, 42
    %v1698 = vpop.permute.xlu0 %1697
    %1699 = vrot.lane.b32.xlu0 %v1675, 42
    %v1700 = vpop.permute.xlu0 %1699
    %1701 = vrot.lane.b32.xlu0 %v1682, 42
    %v1702 = vpop.permute.xlu0 %1701
    %1703 = vrot.lane.b32.xlu0 %v1690, 42
    %v1704 = vpop.permute.xlu0 %1703
    %v1705 = vrot.slane %v1692, 4
    %v1706 = vrot.slane %v1694, 4
    %v1707 = vrot.slane %v1696, 4
    %v1708 = vrot.slane %v1698, 4
    %v1709 = vrot.slane %v1700, 4
    %v1710 = vrot.slane %v1702, 4
    %v1711 = vrot.slane %v1704, 4
    %v1712 = vsel %vm194, %v1705, %v1706
    %vm1713 = vcmask 343040
    %v1714 = vsel %vm1713, %v1692, %v1712
    %v1715 = vsel %vm194, %v1706, %v1707
    %v1716 = vsel %vm1713, %v1694, %v1715
    %v1717 = vsel %vm194, %v1707, %v1708
    %v1718 = vsel %vm1713, %v1696, %v1717
    %v1719 = vsel %vm194, %v1708, %v1709
    %v1720 = vsel %vm1713, %v1698, %v1719
    %v1721 = vsel %vm194, %v1709, %v1710
    %v1722 = vsel %vm1713, %v1700, %v1721
    %v1723 = vsel %vm194, %v1710, %v1711
    %v1724 = vsel %vm1713, %v1702, %v1723
    %1731 = vst [vmem:[#allocation2 + $0x180] sm:$0xcc] %v1714
    %1732 = vst [vmem:[#allocation2 + $0x188] sm:$0xcc] %v1716
    %1733 = vst [vmem:[#allocation2 + $0x190] sm:$0xcc] %v1718
    %1734 = vst [vmem:[#allocation2 + $0x198] sm:$0xcc] %v1720
    %1735 = vst [vmem:[#allocation2 + $0x1a0] sm:$0xcc] %v1722
    %1736 = vst.msk [vmem:[#allocation2 + $0x1a8] sm:$0xcc] %vm220, %v1724
    %v1737 = vld [vmem:[%s0] sm:$0xff]
    %v1738 = vld [vmem:[%s0 + $0x8] sm:$0xff]
    %v1739 = vld [vmem:[%s0 + $0x10] sm:$0xff]
    %v1740 = vld [vmem:[%s0 + $0x18] sm:$0x3]
    %v1745 = vcombine.high %v1737, %v1737
    %v1747 = vunpack.c.l.s4 1983009808
    %v1748 = vunpack.c.0.s8 %v1747
    %v1749 = vlaneseq
    %v1750 = vshrl.u32 %v1749, 7
    %v1751 = vsub.s32 %v1748, %v1750
    %v1752 = vrot.slane %v1737, %v1751
    %v1754 = vunpack.c.l.s4 1983009808
    %v1755 = vunpack.c.0.s8 %v1754
    %v1756 = vlaneseq
    %v1757 = vshrl.u32 %v1756, 7
    %v1758 = vsub.s32 %v1755, %v1757
    %v1759 = vrot.slane %v1745, %v1758
    %v1760 = vcombine.high %v1738, %v1738
    %v1762 = vunpack.c.l.s4 1983009808
    %v1763 = vunpack.c.0.s8 %v1762
    %v1764 = vlaneseq
    %v1765 = vshrl.u32 %v1764, 7
    %v1766 = vsub.s32 %v1763, %v1765
    %v1767 = vrot.slane %v1738, %v1766
    %v1769 = vunpack.c.l.s4 1983009808
    %v1770 = vunpack.c.0.s8 %v1769
    %v1771 = vlaneseq
    %v1772 = vshrl.u32 %v1771, 7
    %v1773 = vsub.s32 %v1770, %v1772
    %v1774 = vrot.slane %v1760, %v1773
    %v1775 = vcombine.high %v1739, %v1739
    %v1777 = vunpack.c.l.s4 1983009808
    %v1778 = vunpack.c.0.s8 %v1777
    %v1779 = vlaneseq
    %v1780 = vshrl.u32 %v1779, 7
    %v1781 = vsub.s32 %v1778, %v1780
    %v1782 = vrot.slane %v1739, %v1781
    %v1784 = vunpack.c.l.s4 1983009808
    %v1785 = vunpack.c.0.s8 %v1784
    %v1786 = vlaneseq
    %v1787 = vshrl.u32 %v1786, 7
    %v1788 = vsub.s32 %v1785, %v1787
    %v1789 = vrot.slane %v1775, %v1788
    %v1791 = vunpack.c.l.s4 1983009808
    %v1792 = vunpack.c.0.s8 %v1791
    %v1793 = vlaneseq
    %v1794 = vshrl.u32 %v1793, 7
    %v1795 = vsub.s32 %v1792, %v1794
    %v1796 = vrot.slane %v1740, %v1795
    %1797 = vrot.lane.b32.xlu0 %v1752, 41
    %v1798 = vpop.permute.xlu0 %1797
    %1799 = vrot.lane.b32.xlu0 %v1759, 41
    %v1800 = vpop.permute.xlu0 %1799
    %1801 = vrot.lane.b32.xlu0 %v1767, 41
    %v1802 = vpop.permute.xlu0 %1801
    %1803 = vrot.lane.b32.xlu0 %v1774, 41
    %v1804 = vpop.permute.xlu0 %1803
    %1805 = vrot.lane.b32.xlu0 %v1782, 41
    %v1806 = vpop.permute.xlu0 %1805
    %1807 = vrot.lane.b32.xlu0 %v1789, 41
    %v1808 = vpop.permute.xlu0 %1807
    %1809 = vrot.lane.b32.xlu0 %v1796, 41
    %v1810 = vpop.permute.xlu0 %1809
    %v1811 = vrot.slane %v1798, 4
    %v1812 = vrot.slane %v1800, 4
    %v1813 = vrot.slane %v1802, 4
    %v1814 = vrot.slane %v1804, 4
    %v1815 = vrot.slane %v1806, 4
    %v1816 = vrot.slane %v1808, 4
    %v1817 = vrot.slane %v1810, 4
    %v1818 = vsel %vm194, %v1811, %v1812
    %vm1819 = vcmask 334848
    %v1820 = vsel %vm1819, %v1798, %v1818
    %v1821 = vsel %vm194, %v1812, %v1813
    %v1822 = vsel %vm1819, %v1800, %v1821
    %v1823 = vsel %vm194, %v1813, %v1814
    %v1824 = vsel %vm1819, %v1802, %v1823
    %v1825 = vsel %vm194, %v1814, %v1815
    %v1826 = vsel %vm1819, %v1804, %v1825
    %v1827 = vsel %vm194, %v1815, %v1816
    %v1828 = vsel %vm1819, %v1806, %v1827
    %v1829 = vsel %vm194, %v1816, %v1817
    %v1830 = vsel %vm1819, %v1808, %v1829
    %1837 = vst [vmem:[#allocation2 + $0x1b0] sm:$0x33] %v1820
    %1838 = vst [vmem:[#allocation2 + $0x1b8] sm:$0x33] %v1822
    %1839 = vst [vmem:[#allocation2 + $0x1c0] sm:$0x33] %v1824
    %1840 = vst [vmem:[#allocation2 + $0x1c8] sm:$0x33] %v1826
    %1841 = vst [vmem:[#allocation2 + $0x1d0] sm:$0x33] %v1828
    %1842 = vst.msk [vmem:[#allocation2 + $0x1d8] sm:$0x33] %vm123, %v1830
    %v1843 = vld [vmem:[%s0] sm:$0xff]
    %v1844 = vld [vmem:[%s0 + $0x8] sm:$0xff]
    %v1845 = vld [vmem:[%s0 + $0x10] sm:$0xff]
    %v1846 = vld [vmem:[%s0 + $0x18] sm:$0x3]
    %v1851 = vcombine.low %v1843, %v1843
    %v1853 = vunpack.c.l.s4 1983009808
    %v1854 = vunpack.c.0.s8 %v1853
    %v1855 = vlaneseq
    %v1856 = vshrl.u32 %v1855, 7
    %v1857 = vsub.s32 %v1854, %v1856
    %v1858 = vrot.slane %v1851, %v1857
    %v1860 = vunpack.c.l.s4 1983009808
    %v1861 = vunpack.c.0.s8 %v1860
    %v1862 = vlaneseq
    %v1863 = vshrl.u32 %v1862, 7
    %v1864 = vsub.s32 %v1861, %v1863
    %v1865 = vrot.slane %v1843, %v1864
    %v1866 = vcombine.low %v1844, %v1844
    %v1868 = vunpack.c.l.s4 1983009808
    %v1869 = vunpack.c.0.s8 %v1868
    %v1870 = vlaneseq
    %v1871 = vshrl.u32 %v1870, 7
    %v1872 = vsub.s32 %v1869, %v1871
    %v1873 = vrot.slane %v1866, %v1872
    %v1875 = vunpack.c.l.s4 1983009808
    %v1876 = vunpack.c.0.s8 %v1875
    %v1877 = vlaneseq
    %v1878 = vshrl.u32 %v1877, 7
    %v1879 = vsub.s32 %v1876, %v1878
    %v1880 = vrot.slane %v1844, %v1879
    %v1881 = vcombine.low %v1845, %v1845
    %v1883 = vunpack.c.l.s4 1983009808
    %v1884 = vunpack.c.0.s8 %v1883
    %v1885 = vlaneseq
    %v1886 = vshrl.u32 %v1885, 7
    %v1887 = vsub.s32 %v1884, %v1886
    %v1888 = vrot.slane %v1881, %v1887
    %v1890 = vunpack.c.l.s4 1983009808
    %v1891 = vunpack.c.0.s8 %v1890
    %v1892 = vlaneseq
    %v1893 = vshrl.u32 %v1892, 7
    %v1894 = vsub.s32 %v1891, %v1893
    %v1895 = vrot.slane %v1845, %v1894
    %v1896 = vcombine.low %v1846, %v1846
    %v1898 = vunpack.c.l.s4 1983009808
    %v1899 = vunpack.c.0.s8 %v1898
    %v1900 = vlaneseq
    %v1901 = vshrl.u32 %v1900, 7
    %v1902 = vsub.s32 %v1899, %v1901
    %v1903 = vrot.slane %v1896, %v1902
    %1904 = vrot.lane.b32.xlu0 %v1858, 40
    %v1905 = vpop.permute.xlu0 %1904
    %1906 = vrot.lane.b32.xlu0 %v1865, 40
    %v1907 = vpop.permute.xlu0 %1906
    %1908 = vrot.lane.b32.xlu0 %v1873, 40
    %v1909 = vpop.permute.xlu0 %1908
    %1910 = vrot.lane.b32.xlu0 %v1880, 40
    %v1911 = vpop.permute.xlu0 %1910
    %1912 = vrot.lane.b32.xlu0 %v1888, 40
    %v1913 = vpop.permute.xlu0 %1912
    %1914 = vrot.lane.b32.xlu0 %v1895, 40
    %v1915 = vpop.permute.xlu0 %1914
    %1916 = vrot.lane.b32.xlu0 %v1903, 40
    %v1917 = vpop.permute.xlu0 %1916
    %v1918 = vrot.slane %v1905, 4
    %v1919 = vrot.slane %v1907, 4
    %v1920 = vrot.slane %v1909, 4
    %v1921 = vrot.slane %v1911, 4
    %v1922 = vrot.slane %v1913, 4
    %v1923 = vrot.slane %v1915, 4
    %v1924 = vrot.slane %v1917, 4
    %v1925 = vsel %vm194, %v1918, %v1919
    %vm1926 = vcmask 326656
    %v1927 = vsel %vm1926, %v1905, %v1925
    %v1928 = vsel %vm194, %v1919, %v1920
    %v1929 = vsel %vm1926, %v1907, %v1928
    %v1930 = vsel %vm194, %v1920, %v1921
    %v1931 = vsel %vm1926, %v1909, %v1930
    %v1932 = vsel %vm194, %v1921, %v1922
    %v1933 = vsel %vm1926, %v1911, %v1932
    %v1934 = vsel %vm194, %v1922, %v1923
    %v1935 = vsel %vm1926, %v1913, %v1934
    %v1936 = vsel %vm194, %v1923, %v1924
    %v1937 = vsel %vm1926, %v1915, %v1936
    %1944 = vst [vmem:[#allocation2 + $0x1b0] sm:$0xcc] %v1927
    %1945 = vst [vmem:[#allocation2 + $0x1b8] sm:$0xcc] %v1929
    %1946 = vst [vmem:[#allocation2 + $0x1c0] sm:$0xcc] %v1931
    %1947 = vst [vmem:[#allocation2 + $0x1c8] sm:$0xcc] %v1933
    %1948 = vst [vmem:[#allocation2 + $0x1d0] sm:$0xcc] %v1935
    %1949 = vst.msk [vmem:[#allocation2 + $0x1d8] sm:$0xcc] %vm220, %v1937
    %v1950 = vld [vmem:[%s0] sm:$0xff]
    %v1951 = vld [vmem:[%s0 + $0x8] sm:$0xff]
    %v1952 = vld [vmem:[%s0 + $0x10] sm:$0xff]
    %v1953 = vld [vmem:[%s0 + $0x18] sm:$0x3]
    %v1958 = vcombine.high %v1950, %v1950
    %v1960 = vunpack.c.l.s4 1983009808
    %v1961 = vunpack.c.0.s8 %v1960
    %v1962 = vlaneseq
    %v1963 = vshrl.u32 %v1962, 7
    %v1964 = vsub.s32 %v1961, %v1963
    %v1965 = vrot.slane %v1950, %v1964
    %v1967 = vunpack.c.l.s4 1983009808
    %v1968 = vunpack.c.0.s8 %v1967
    %v1969 = vlaneseq
    %v1970 = vshrl.u32 %v1969, 7
    %v1971 = vsub.s32 %v1968, %v1970
    %v1972 = vrot.slane %v1958, %v1971
    %v1973 = vcombine.high %v1951, %v1951
    %v1975 = vunpack.c.l.s4 1983009808
    %v1976 = vunpack.c.0.s8 %v1975
    %v1977 = vlaneseq
    %v1978 = vshrl.u32 %v1977, 7
    %v1979 = vsub.s32 %v1976, %v1978
    %v1980 = vrot.slane %v1951, %v1979
    %v1982 = vunpack.c.l.s4 1983009808
    %v1983 = vunpack.c.0.s8 %v1982
    %v1984 = vlaneseq
    %v1985 = vshrl.u32 %v1984, 7
    %v1986 = vsub.s32 %v1983, %v1985
    %v1987 = vrot.slane %v1973, %v1986
    %v1988 = vcombine.high %v1952, %v1952
    %v1990 = vunpack.c.l.s4 1983009808
    %v1991 = vunpack.c.0.s8 %v1990
    %v1992 = vlaneseq
    %v1993 = vshrl.u32 %v1992, 7
    %v1994 = vsub.s32 %v1991, %v1993
    %v1995 = vrot.slane %v1952, %v1994
    %v1997 = vunpack.c.l.s4 1983009808
    %v1998 = vunpack.c.0.s8 %v1997
    %v1999 = vlaneseq
    %v2000 = vshrl.u32 %v1999, 7
    %v2001 = vsub.s32 %v1998, %v2000
    %v2002 = vrot.slane %v1988, %v2001
    %v2004 = vunpack.c.l.s4 1983009808
    %v2005 = vunpack.c.0.s8 %v2004
    %v2006 = vlaneseq
    %v2007 = vshrl.u32 %v2006, 7
    %v2008 = vsub.s32 %v2005, %v2007
    %v2009 = vrot.slane %v1953, %v2008
    %2010 = vrot.lane.b32.xlu0 %v1965, 16
    %v2011 = vpop.permute.xlu0 %2010
    %2012 = vrot.lane.b32.xlu0 %v1972, 16
    %v2013 = vpop.permute.xlu0 %2012
    %2014 = vrot.lane.b32.xlu0 %v1980, 16
    %v2015 = vpop.permute.xlu0 %2014
    %2016 = vrot.lane.b32.xlu0 %v1987, 16
    %v2017 = vpop.permute.xlu0 %2016
    %2018 = vrot.lane.b32.xlu0 %v1995, 16
    %v2019 = vpop.permute.xlu0 %2018
    %2020 = vrot.lane.b32.xlu0 %v2002, 16
    %v2021 = vpop.permute.xlu0 %2020
    %2022 = vrot.lane.b32.xlu0 %v2009, 16
    %v2023 = vpop.permute.xlu0 %2022
    %v2024 = vrot.slane %v2011, 4
    %v2025 = vrot.slane %v2013, 4
    %v2026 = vrot.slane %v2015, 4
    %v2027 = vrot.slane %v2017, 4
    %v2028 = vrot.slane %v2019, 4
    %v2029 = vrot.slane %v2021, 4
    %v2030 = vrot.slane %v2023, 4
    %v2031 = vsel %vm194, %v2024, %v2025
    %vm2032 = vcmask 130048
    %v2033 = vsel %vm2032, %v2011, %v2031
    %v2034 = vsel %vm194, %v2025, %v2026
    %v2035 = vsel %vm2032, %v2013, %v2034
    %v2036 = vsel %vm194, %v2026, %v2027
    %v2037 = vsel %vm2032, %v2015, %v2036
    %v2038 = vsel %vm194, %v2027, %v2028
    %v2039 = vsel %vm2032, %v2017, %v2038
    %v2040 = vsel %vm194, %v2028, %v2029
    %v2041 = vsel %vm2032, %v2019, %v2040
    %v2042 = vsel %vm194, %v2029, %v2030
    %v2043 = vsel %vm2032, %v2021, %v2042
    %2050 = vst [vmem:[#allocation2 + $0x1e0] sm:$0x33] %v2033
    %2051 = vst [vmem:[#allocation2 + $0x1e8] sm:$0x33] %v2035
    %2052 = vst [vmem:[#allocation2 + $0x1f0] sm:$0x33] %v2037
    %2053 = vst [vmem:[#allocation2 + $0x1f8] sm:$0x33] %v2039
    %2054 = vst [vmem:[#allocation2 + $0x200] sm:$0x33] %v2041
    %2055 = vst.msk [vmem:[#allocation2 + $0x208] sm:$0x33] %vm123, %v2043
    %v2056 = vld [vmem:[%s0] sm:$0xff]
    %v2057 = vld [vmem:[%s0 + $0x8] sm:$0xff]
    %v2058 = vld [vmem:[%s0 + $0x10] sm:$0xff]
    %v2059 = vld [vmem:[%s0 + $0x18] sm:$0x3]
    %v2064 = vcombine.low %v2056, %v2056
    %v2066 = vunpack.c.l.s4 1983009808
    %v2067 = vunpack.c.0.s8 %v2066
    %v2068 = vlaneseq
    %v2069 = vshrl.u32 %v2068, 7
    %v2070 = vsub.s32 %v2067, %v2069
    %v2071 = vrot.slane %v2064, %v2070
    %v2073 = vunpack.c.l.s4 1983009808
    %v2074 = vunpack.c.0.s8 %v2073
    %v2075 = vlaneseq
    %v2076 = vshrl.u32 %v2075, 7
    %v2077 = vsub.s32 %v2074, %v2076
    %v2078 = vrot.slane %v2056, %v2077
    %v2079 = vcombine.low %v2057, %v2057
    %v2081 = vunpack.c.l.s4 1983009808
    %v2082 = vunpack.c.0.s8 %v2081
    %v2083 = vlaneseq
    %v2084 = vshrl.u32 %v2083, 7
    %v2085 = vsub.s32 %v2082, %v2084
    %v2086 = vrot.slane %v2079, %v2085
    %v2088 = vunpack.c.l.s4 1983009808
    %v2089 = vunpack.c.0.s8 %v2088
    %v2090 = vlaneseq
    %v2091 = vshrl.u32 %v2090, 7
    %v2092 = vsub.s32 %v2089, %v2091
    %v2093 = vrot.slane %v2057, %v2092
    %v2094 = vcombine.low %v2058, %v2058
    %v2096 = vunpack.c.l.s4 1983009808
    %v2097 = vunpack.c.0.s8 %v2096
    %v2098 = vlaneseq
    %v2099 = vshrl.u32 %v2098, 7
    %v2100 = vsub.s32 %v2097, %v2099
    %v2101 = vrot.slane %v2094, %v2100
    %v2103 = vunpack.c.l.s4 1983009808
    %v2104 = vunpack.c.0.s8 %v2103
    %v2105 = vlaneseq
    %v2106 = vshrl.u32 %v2105, 7
    %v2107 = vsub.s32 %v2104, %v2106
    %v2108 = vrot.slane %v2058, %v2107
    %v2109 = vcombine.low %v2059, %v2059
    %v2111 = vunpack.c.l.s4 1983009808
    %v2112 = vunpack.c.0.s8 %v2111
    %v2113 = vlaneseq
    %v2114 = vshrl.u32 %v2113, 7
    %v2115 = vsub.s32 %v2112, %v2114
    %v2116 = vrot.slane %v2109, %v2115
    %2117 = vrot.lane.b32.xlu0 %v2071, 15
    %v2118 = vpop.permute.xlu0 %2117
    %2119 = vrot.lane.b32.xlu0 %v2078, 15
    %v2120 = vpop.permute.xlu0 %2119
    %2121 = vrot.lane.b32.xlu0 %v2086, 15
    %v2122 = vpop.permute.xlu0 %2121
    %2123 = vrot.lane.b32.xlu0 %v2093, 15
    %v2124 = vpop.permute.xlu0 %2123
    %2125 = vrot.lane.b32.xlu0 %v2101, 15
    %v2126 = vpop.permute.xlu0 %2125
    %2127 = vrot.lane.b32.xlu0 %v2108, 15
    %v2128 = vpop.permute.xlu0 %2127
    %2129 = vrot.lane.b32.xlu0 %v2116, 15
    %v2130 = vpop.permute.xlu0 %2129
    %v2131 = vrot.slane %v2118, 4
    %v2132 = vrot.slane %v2120, 4
    %v2133 = vrot.slane %v2122, 4
    %v2134 = vrot.slane %v2124, 4
    %v2135 = vrot.slane %v2126, 4
    %v2136 = vrot.slane %v2128, 4
    %v2137 = vrot.slane %v2130, 4
    %v2138 = vsel %vm194, %v2131, %v2132
    %vm2139 = vcmask 121856
    %v2140 = vsel %vm2139, %v2118, %v2138
    %v2141 = vsel %vm194, %v2132, %v2133
    %v2142 = vsel %vm2139, %v2120, %v2141
    %v2143 = vsel %vm194, %v2133, %v2134
    %v2144 = vsel %vm2139, %v2122, %v2143
    %v2145 = vsel %vm194, %v2134, %v2135
    %v2146 = vsel %vm2139, %v2124, %v2145
    %v2147 = vsel %vm194, %v2135, %v2136
    %v2148 = vsel %vm2139, %v2126, %v2147
    %v2149 = vsel %vm194, %v2136, %v2137
    %v2150 = vsel %vm2139, %v2128, %v2149
    %2157 = vst [vmem:[#allocation2 + $0x1e0] sm:$0xcc] %v2140
    %2158 = vst [vmem:[#allocation2 + $0x1e8] sm:$0xcc] %v2142
    %2159 = vst [vmem:[#allocation2 + $0x1f0] sm:$0xcc] %v2144
    %2160 = vst [vmem:[#allocation2 + $0x1f8] sm:$0xcc] %v2146
    %2161 = vst [vmem:[#allocation2 + $0x200] sm:$0xcc] %v2148
    %2162 = vst.msk [vmem:[#allocation2 + $0x208] sm:$0xcc] %vm220, %v2150
    %v2163 = vld [vmem:[%s0] sm:$0xff]
    %v2164 = vld [vmem:[%s0 + $0x8] sm:$0xff]
    %v2165 = vld [vmem:[%s0 + $0x10] sm:$0xff]
    %v2166 = vld [vmem:[%s0 + $0x18] sm:$0x3]
    %v2171 = vcombine.high %v2163, %v2163
    %v2173 = vunpack.c.l.s4 1983009808
    %v2174 = vunpack.c.0.s8 %v2173
    %v2175 = vlaneseq
    %v2176 = vshrl.u32 %v2175, 7
    %v2177 = vsub.s32 %v2174, %v2176
    %v2178 = vrot.slane %v2163, %v2177
    %v2180 = vunpack.c.l.s4 1983009808
    %v2181 = vunpack.c.0.s8 %v2180
    %v2182 = vlaneseq
    %v2183 = vshrl.u32 %v2182, 7
    %v2184 = vsub.s32 %v2181, %v2183
    %v2185 = vrot.slane %v2171, %v2184
    %v2186 = vcombine.high %v2164, %v2164
    %v2188 = vunpack.c.l.s4 1983009808
    %v2189 = vunpack.c.0.s8 %v2188
    %v2190 = vlaneseq
    %v2191 = vshrl.u32 %v2190, 7
    %v2192 = vsub.s32 %v2189, %v2191
    %v2193 = vrot.slane %v2164, %v2192
    %v2195 = vunpack.c.l.s4 1983009808
    %v2196 = vunpack.c.0.s8 %v2195
    %v2197 = vlaneseq
    %v2198 = vshrl.u32 %v2197, 7
    %v2199 = vsub.s32 %v2196, %v2198
    %v2200 = vrot.slane %v2186, %v2199
    %v2201 = vcombine.high %v2165, %v2165
    %v2203 = vunpack.c.l.s4 1983009808
    %v2204 = vunpack.c.0.s8 %v2203
    %v2205 = vlaneseq
    %v2206 = vshrl.u32 %v2205, 7
    %v2207 = vsub.s32 %v2204, %v2206
    %v2208 = vrot.slane %v2165, %v2207
    %v2210 = vunpack.c.l.s4 1983009808
    %v2211 = vunpack.c.0.s8 %v2210
    %v2212 = vlaneseq
    %v2213 = vshrl.u32 %v2212, 7
    %v2214 = vsub.s32 %v2211, %v2213
    %v2215 = vrot.slane %v2201, %v2214
    %v2217 = vunpack.c.l.s4 1983009808
    %v2218 = vunpack.c.0.s8 %v2217
    %v2219 = vlaneseq
    %v2220 = vshrl.u32 %v2219, 7
    %v2221 = vsub.s32 %v2218, %v2220
    %v2222 = vrot.slane %v2166, %v2221
    %2223 = vrot.lane.b32.xlu0 %v2178, 14
    %v2224 = vpop.permute.xlu0 %2223
    %2225 = vrot.lane.b32.xlu0 %v2185, 14
    %v2226 = vpop.permute.xlu0 %2225
    %2227 = vrot.lane.b32.xlu0 %v2193, 14
    %v2228 = vpop.permute.xlu0 %2227
    %2229 = vrot.lane.b32.xlu0 %v2200, 14
    %v2230 = vpop.permute.xlu0 %2229
    %2231 = vrot.lane.b32.xlu0 %v2208, 14
    %v2232 = vpop.permute.xlu0 %2231
    %2233 = vrot.lane.b32.xlu0 %v2215, 14
    %v2234 = vpop.permute.xlu0 %2233
    %2235 = vrot.lane.b32.xlu0 %v2222, 14
    %v2236 = vpop.permute.xlu0 %2235
    %v2237 = vrot.slane %v2224, 4
    %v2238 = vrot.slane %v2226, 4
    %v2239 = vrot.slane %v2228, 4
    %v2240 = vrot.slane %v2230, 4
    %v2241 = vrot.slane %v2232, 4
    %v2242 = vrot.slane %v2234, 4
    %v2243 = vrot.slane %v2236, 4
    %v2244 = vsel %vm194, %v2237, %v2238
    %vm2245 = vcmask 113664
    %v2246 = vsel %vm2245, %v2224, %v2244
    %v2247 = vsel %vm194, %v2238, %v2239
    %v2248 = vsel %vm2245, %v2226, %v2247
    %v2249 = vsel %vm194, %v2239, %v2240
    %v2250 = vsel %vm2245, %v2228, %v2249
    %v2251 = vsel %vm194, %v2240, %v2241
    %v2252 = vsel %vm2245, %v2230, %v2251
    %v2253 = vsel %vm194, %v2241, %v2242
    %v2254 = vsel %vm2245, %v2232, %v2253
    %v2255 = vsel %vm194, %v2242, %v2243
    %v2256 = vsel %vm2245, %v2234, %v2255
    %2263 = vst [vmem:[#allocation2 + $0x210] sm:$0x33] %v2246
    %2264 = vst [vmem:[#allocation2 + $0x218] sm:$0x33] %v2248
    %2265 = vst [vmem:[#allocation2 + $0x220] sm:$0x33] %v2250
    %2266 = vst [vmem:[#allocation2 + $0x228] sm:$0x33] %v2252
    %2267 = vst [vmem:[#allocation2 + $0x230] sm:$0x33] %v2254
    %2268 = vst.msk [vmem:[#allocation2 + $0x238] sm:$0x33] %vm123, %v2256
    %v2269 = vld [vmem:[%s0] sm:$0xff]
    %v2270 = vld [vmem:[%s0 + $0x8] sm:$0xff]
    %v2271 = vld [vmem:[%s0 + $0x10] sm:$0xff]
    %v2272 = vld [vmem:[%s0 + $0x18] sm:$0x3]
    %v2277 = vcombine.low %v2269, %v2269
    %v2279 = vunpack.c.l.s4 1983009808
    %v2280 = vunpack.c.0.s8 %v2279
    %v2281 = vlaneseq
    %v2282 = vshrl.u32 %v2281, 7
    %v2283 = vsub.s32 %v2280, %v2282
    %v2284 = vrot.slane %v2277, %v2283
    %v2286 = vunpack.c.l.s4 1983009808
    %v2287 = vunpack.c.0.s8 %v2286
    %v2288 = vlaneseq
    %v2289 = vshrl.u32 %v2288, 7
    %v2290 = vsub.s32 %v2287, %v2289
    %v2291 = vrot.slane %v2269, %v2290
    %v2292 = vcombine.low %v2270, %v2270
    %v2294 = vunpack.c.l.s4 1983009808
    %v2295 = vunpack.c.0.s8 %v2294
    %v2296 = vlaneseq
    %v2297 = vshrl.u32 %v2296, 7
    %v2298 = vsub.s32 %v2295, %v2297
    %v2299 = vrot.slane %v2292, %v2298
    %v2301 = vunpack.c.l.s4 1983009808
    %v2302 = vunpack.c.0.s8 %v2301
    %v2303 = vlaneseq
    %v2304 = vshrl.u32 %v2303, 7
    %v2305 = vsub.s32 %v2302, %v2304
    %v2306 = vrot.slane %v2270, %v2305
    %v2307 = vcombine.low %v2271, %v2271
    %v2309 = vunpack.c.l.s4 1983009808
    %v2310 = vunpack.c.0.s8 %v2309
    %v2311 = vlaneseq
    %v2312 = vshrl.u32 %v2311, 7
    %v2313 = vsub.s32 %v2310, %v2312
    %v2314 = vrot.slane %v2307, %v2313
    %v2316 = vunpack.c.l.s4 1983009808
    %v2317 = vunpack.c.0.s8 %v2316
    %v2318 = vlaneseq
    %v2319 = vshrl.u32 %v2318, 7
    %v2320 = vsub.s32 %v2317, %v2319
    %v2321 = vrot.slane %v2271, %v2320
    %v2322 = vcombine.low %v2272, %v2272
    %v2324 = vunpack.c.l.s4 1983009808
    %v2325 = vunpack.c.0.s8 %v2324
    %v2326 = vlaneseq
    %v2327 = vshrl.u32 %v2326, 7
    %v2328 = vsub.s32 %v2325, %v2327
    %v2329 = vrot.slane %v2322, %v2328
    %2330 = vrot.lane.b32.xlu0 %v2284, 13
    %v2331 = vpop.permute.xlu0 %2330
    %2332 = vrot.lane.b32.xlu0 %v2291, 13
    %v2333 = vpop.permute.xlu0 %2332
    %2334 = vrot.lane.b32.xlu0 %v2299, 13
    %v2335 = vpop.permute.xlu0 %2334
    %2336 = vrot.lane.b32.xlu0 %v2306, 13
    %v2337 = vpop.permute.xlu0 %2336
    %2338 = vrot.lane.b32.xlu0 %v2314, 13
    %v2339 = vpop.permute.xlu0 %2338
    %2340 = vrot.lane.b32.xlu0 %v2321, 13
    %v2341 = vpop.permute.xlu0 %2340
    %2342 = vrot.lane.b32.xlu0 %v2329, 13
    %v2343 = vpop.permute.xlu0 %2342
    %v2344 = vrot.slane %v2331, 4
    %v2345 = vrot.slane %v2333, 4
    %v2346 = vrot.slane %v2335, 4
    %v2347 = vrot.slane %v2337, 4
    %v2348 = vrot.slane %v2339, 4
    %v2349 = vrot.slane %v2341, 4
    %v2350 = vrot.slane %v2343, 4
    %v2351 = vsel %vm194, %v2344, %v2345
    %vm2352 = vcmask 105472
    %v2353 = vsel %vm2352, %v2331, %v2351
    %v2354 = vsel %vm194, %v2345, %v2346
    %v2355 = vsel %vm2352, %v2333, %v2354
    %v2356 = vsel %vm194, %v2346, %v2347
    %v2357 = vsel %vm2352, %v2335, %v2356
    %v2358 = vsel %vm194, %v2347, %v2348
    %v2359 = vsel %vm2352, %v2337, %v2358
    %v2360 = vsel %vm194, %v2348, %v2349
    %v2361 = vsel %vm2352, %v2339, %v2360
    %v2362 = vsel %vm194, %v2349, %v2350
    %v2363 = vsel %vm2352, %v2341, %v2362
    %2370 = vst [vmem:[#allocation2 + $0x210] sm:$0xcc] %v2353
    %2371 = vst [vmem:[#allocation2 + $0x218] sm:$0xcc] %v2355
    %2372 = vst [vmem:[#allocation2 + $0x220] sm:$0xcc] %v2357
    %2373 = vst [vmem:[#allocation2 + $0x228] sm:$0xcc] %v2359
    %2374 = vst [vmem:[#allocation2 + $0x230] sm:$0xcc] %v2361
    %2375 = vst.msk [vmem:[#allocation2 + $0x238] sm:$0xcc] %vm220, %v2363
    %v2376 = vld [vmem:[%s0] sm:$0xff]
    %v2377 = vld [vmem:[%s0 + $0x8] sm:$0xff]
    %v2378 = vld [vmem:[%s0 + $0x10] sm:$0xff]
    %v2379 = vld [vmem:[%s0 + $0x18] sm:$0x3]
    %v2384 = vcombine.high %v2376, %v2376
    %v2386 = vunpack.c.l.s4 1983009808
    %v2387 = vunpack.c.0.s8 %v2386
    %v2388 = vlaneseq
    %v2389 = vshrl.u32 %v2388, 7
    %v2390 = vsub.s32 %v2387, %v2389
    %v2391 = vrot.slane %v2376, %v2390
    %v2393 = vunpack.c.l.s4 1983009808
    %v2394 = vunpack.c.0.s8 %v2393
    %v2395 = vlaneseq
    %v2396 = vshrl.u32 %v2395, 7
    %v2397 = vsub.s32 %v2394, %v2396
    %v2398 = vrot.slane %v2384, %v2397
    %v2399 = vcombine.high %v2377, %v2377
    %v2401 = vunpack.c.l.s4 1983009808
    %v2402 = vunpack.c.0.s8 %v2401
    %v2403 = vlaneseq
    %v2404 = vshrl.u32 %v2403, 7
    %v2405 = vsub.s32 %v2402, %v2404
    %v2406 = vrot.slane %v2377, %v2405
    %v2408 = vunpack.c.l.s4 1983009808
    %v2409 = vunpack.c.0.s8 %v2408
    %v2410 = vlaneseq
    %v2411 = vshrl.u32 %v2410, 7
    %v2412 = vsub.s32 %v2409, %v2411
    %v2413 = vrot.slane %v2399, %v2412
    %v2414 = vcombine.high %v2378, %v2378
    %v2416 = vunpack.c.l.s4 1983009808
    %v2417 = vunpack.c.0.s8 %v2416
    %v2418 = vlaneseq
    %v2419 = vshrl.u32 %v2418, 7
    %v2420 = vsub.s32 %v2417, %v2419
    %v2421 = vrot.slane %v2378, %v2420
    %v2423 = vunpack.c.l.s4 1983009808
    %v2424 = vunpack.c.0.s8 %v2423
    %v2425 = vlaneseq
    %v2426 = vshrl.u32 %v2425, 7
    %v2427 = vsub.s32 %v2424, %v2426
    %v2428 = vrot.slane %v2414, %v2427
    %v2430 = vunpack.c.l.s4 1983009808
    %v2431 = vunpack.c.0.s8 %v2430
    %v2432 = vlaneseq
    %v2433 = vshrl.u32 %v2432, 7
    %v2434 = vsub.s32 %v2431, %v2433
    %v2435 = vrot.slane %v2379, %v2434
    %2436 = vrot.lane.b32.xlu0 %v2391, 12
    %v2437 = vpop.permute.xlu0 %2436
    %2438 = vrot.lane.b32.xlu0 %v2398, 12
    %v2439 = vpop.permute.xlu0 %2438
    %2440 = vrot.lane.b32.xlu0 %v2406, 12
    %v2441 = vpop.permute.xlu0 %2440
    %2442 = vrot.lane.b32.xlu0 %v2413, 12
    %v2443 = vpop.permute.xlu0 %2442
    %2444 = vrot.lane.b32.xlu0 %v2421, 12
    %v2445 = vpop.permute.xlu0 %2444
    %2446 = vrot.lane.b32.xlu0 %v2428, 12
    %v2447 = vpop.permute.xlu0 %2446
    %2448 = vrot.lane.b32.xlu0 %v2435, 12
    %v2449 = vpop.permute.xlu0 %2448
    %v2450 = vrot.slane %v2437, 4
    %v2451 = vrot.slane %v2439, 4
    %v2452 = vrot.slane %v2441, 4
    %v2453 = vrot.slane %v2443, 4
    %v2454 = vrot.slane %v2445, 4
    %v2455 = vrot.slane %v2447, 4
    %v2456 = vrot.slane %v2449, 4
    %v2457 = vsel %vm194, %v2450, %v2451
    %vm2458 = vcmask 97280
    %v2459 = vsel %vm2458, %v2437, %v2457
    %v2460 = vsel %vm194, %v2451, %v2452
    %v2461 = vsel %vm2458, %v2439, %v2460
    %v2462 = vsel %vm194, %v2452, %v2453
    %v2463 = vsel %vm2458, %v2441, %v2462
    %v2464 = vsel %vm194, %v2453, %v2454
    %v2465 = vsel %vm2458, %v2443, %v2464
    %v2466 = vsel %vm194, %v2454, %v2455
    %v2467 = vsel %vm2458, %v2445, %v2466
    %v2468 = vsel %vm194, %v2455, %v2456
    %v2469 = vsel %vm2458, %v2447, %v2468
    %2476 = vst [vmem:[#allocation2 + $0x240] sm:$0x33] %v2459
    %2477 = vst [vmem:[#allocation2 + $0x248] sm:$0x33] %v2461
    %2478 = vst [vmem:[#allocation2 + $0x250] sm:$0x33] %v2463
    %2479 = vst [vmem:[#allocation2 + $0x258] sm:$0x33] %v2465
    %2480 = vst [vmem:[#allocation2 + $0x260] sm:$0x33] %v2467
    %2481 = vst.msk [vmem:[#allocation2 + $0x268] sm:$0x33] %vm123, %v2469
    %v2482 = vld [vmem:[%s2] sm:$0xf]
    %v2483 = vld [vmem:[#allocation2] sm:$0xff]
    %v2484 = vld [vmem:[#allocation2 + $0x8] sm:$0xff]
    %v2485 = vld [vmem:[#allocation2 + $0x10] sm:$0xff]
    %v2486 = vld [vmem:[#allocation2 + $0x18] sm:$0xff]
    %v2487 = vld [vmem:[#allocation2 + $0x20] sm:$0xff]
    %v2488 = vld [vmem:[#allocation2 + $0x28] sm:$0xff]
    %v2489 = vld [vmem:[#allocation2 + $0x30] sm:$0xff]
    %v2490 = vld [vmem:[#allocation2 + $0x38] sm:$0xff]
    %v2491 = vld [vmem:[#allocation2 + $0x40] sm:$0xff]
    %v2492 = vld [vmem:[#allocation2 + $0x48] sm:$0xff]
    %v2493 = vld [vmem:[#allocation2 + $0x50] sm:$0xff]
    %v2494 = vld [vmem:[#allocation2 + $0x58] sm:$0xff]
    %v2495 = vld [vmem:[#allocation2 + $0x60] sm:$0xff]
    %v2496 = vld [vmem:[#allocation2 + $0x68] sm:$0xff]
    %v2497 = vld [vmem:[#allocation2 + $0x70] sm:$0xff]
    %v2498 = vld [vmem:[#allocation2 + $0x78] sm:$0xff]
    %v2499 = vld [vmem:[#allocation2 + $0x80] sm:$0xff]
    %v2500 = vld [vmem:[#allocation2 + $0x88] sm:$0xff]
    %v2501 = vld [vmem:[#allocation2 + $0x90] sm:$0xff]
    %v2502 = vld [vmem:[#allocation2 + $0x98] sm:$0xff]
    %v2503 = vld [vmem:[#allocation2 + $0xa0] sm:$0xff]
    %v2504 = vld [vmem:[#allocation2 + $0xa8] sm:$0xff]
    %v2505 = vld [vmem:[#allocation2 + $0xb0] sm:$0xff]
    %v2506 = vld [vmem:[#allocation2 + $0xb8] sm:$0xff]
    %v2507 = vld [vmem:[#allocation2 + $0xc0] sm:$0xff]
    %v2508 = vld [vmem:[#allocation2 + $0xc8] sm:$0xff]
    %v2509 = vld [vmem:[#allocation2 + $0xd0] sm:$0xff]
    %v2510 = vld [vmem:[#allocation2 + $0xd8] sm:$0xff]
    %v2511 = vld [vmem:[#allocation2 + $0xe0] sm:$0xff]
    %v2512 = vld [vmem:[#allocation2 + $0xe8] sm:$0xff]
    %v2513 = vld [vmem:[#allocation2 + $0xf0] sm:$0xff]
    %v2514 = vld [vmem:[#allocation2 + $0xf8] sm:$0xff]
    %v2515 = vld [vmem:[#allocation2 + $0x100] sm:$0xff]
    %v2516 = vld [vmem:[#allocation2 + $0x108] sm:$0xff]
    %v2517 = vld [vmem:[#allocation2 + $0x110] sm:$0xff]
    %v2518 = vld [vmem:[#allocation2 + $0x118] sm:$0xff]
    %v2519 = vld [vmem:[#allocation2 + $0x120] sm:$0xff]
    %v2520 = vld [vmem:[#allocation2 + $0x128] sm:$0xff]
    %v2521 = vld [vmem:[#allocation2 + $0x130] sm:$0xff]
    %v2522 = vld [vmem:[#allocation2 + $0x138] sm:$0xff]
    %v2523 = vld [vmem:[#allocation2 + $0x140] sm:$0xff]
    %v2524 = vld [vmem:[#allocation2 + $0x148] sm:$0xff]
    %v2525 = vld [vmem:[#allocation2 + $0x150] sm:$0xff]
    %v2526 = vld [vmem:[#allocation2 + $0x158] sm:$0xff]
    %v2527 = vld [vmem:[#allocation2 + $0x160] sm:$0xff]
    %v2528 = vld [vmem:[#allocation2 + $0x168] sm:$0xff]
    %v2529 = vld [vmem:[#allocation2 + $0x170] sm:$0xff]
    %v2530 = vld [vmem:[#allocation2 + $0x178] sm:$0xff]
    %v2531 = vld [vmem:[#allocation2 + $0x180] sm:$0xff]
    %v2532 = vld [vmem:[#allocation2 + $0x188] sm:$0xff]
    %v2533 = vld [vmem:[#allocation2 + $0x190] sm:$0xff]
    %v2534 = vld [vmem:[#allocation2 + $0x198] sm:$0xff]
    %v2535 = vld [vmem:[#allocation2 + $0x1a0] sm:$0xff]
    %v2536 = vld [vmem:[#allocation2 + $0x1a8] sm:$0xff]
    %v2537 = vld [vmem:[#allocation2 + $0x1b0] sm:$0xff]
    %v2538 = vld [vmem:[#allocation2 + $0x1b8] sm:$0xff]
    %v2539 = vld [vmem:[#allocation2 + $0x1c0] sm:$0xff]
    %v2540 = vld [vmem:[#allocation2 + $0x1c8] sm:$0xff]
    %v2541 = vld [vmem:[#allocation2 + $0x1d0] sm:$0xff]
    %v2542 = vld [vmem:[#allocation2 + $0x1d8] sm:$0xff]
    %v2543 = vld [vmem:[#allocation2 + $0x1e0] sm:$0xff]
    %v2544 = vld [vmem:[#allocation2 + $0x1e8] sm:$0xff]
    %v2545 = vld [vmem:[#allocation2 + $0x1f0] sm:$0xff]
    %v2546 = vld [vmem:[#allocation2 + $0x1f8] sm:$0xff]
    %v2547 = vld [vmem:[#allocation2 + $0x200] sm:$0xff]
    %v2548 = vld [vmem:[#allocation2 + $0x208] sm:$0xff]
    %v2549 = vld [vmem:[#allocation2 + $0x210] sm:$0xff]
    %v2550 = vld [vmem:[#allocation2 + $0x218] sm:$0xff]
    %v2551 = vld [vmem:[#allocation2 + $0x220] sm:$0xff]
    %v2552 = vld [vmem:[#allocation2 + $0x228] sm:$0xff]
    %v2553 = vld [vmem:[#allocation2 + $0x230] sm:$0xff]
    %v2554 = vld [vmem:[#allocation2 + $0x238] sm:$0xff]
    %v2555 = vld [vmem:[#allocation2 + $0x240] sm:$0x33]
    %v2556 = vld [vmem:[#allocation2 + $0x248] sm:$0x33]
    %v2557 = vld [vmem:[#allocation2 + $0x250] sm:$0x33]
    %v2558 = vld [vmem:[#allocation2 + $0x258] sm:$0x33]
    %v2559 = vld [vmem:[#allocation2 + $0x260] sm:$0x33]
    %v2560 = vld [vmem:[#allocation2 + $0x268] sm:$0x33]
    %v2561 = vld [vmem:[%s3] sm:$0xff]
    %2563 = vset.pattern.permute.xlu0 0
    %2564 = vperm.xlu0 %2563, %v2561
    %v2565 = vpop.permute.xlu0 %2564
    %v2645 = vunpack.c.l.b16 %v2483
    %v2646 = vunpack.c.h.b16 %v2483
    %v2647 = vunpack.c.l.b16 %v2484
    %v2648 = vunpack.c.h.b16 %v2484
    %v2649 = vunpack.c.l.b16 %v2485
    %v2650 = vunpack.c.h.b16 %v2485
    %v2651 = vunpack.c.l.b16 %v2486
    %v2652 = vunpack.c.h.b16 %v2486
    %v2653 = vunpack.c.l.b16 %v2487
    %v2654 = vunpack.c.h.b16 %v2487
    %v2655 = vunpack.c.l.b16 %v2488
    %v2656 = vunpack.c.h.b16 %v2488
    %v2657 = vunpack.c.l.b16 %v2489
    %v2658 = vunpack.c.h.b16 %v2489
    %v2659 = vunpack.c.l.b16 %v2490
    %v2660 = vunpack.c.h.b16 %v2490
    %v2661 = vunpack.c.l.b16 %v2491
    %v2662 = vunpack.c.h.b16 %v2491
    %v2663 = vunpack.c.l.b16 %v2492
    %v2664 = vunpack.c.h.b16 %v2492
    %v2665 = vunpack.c.l.b16 %v2493
    %v2666 = vunpack.c.h.b16 %v2493
    %v2667 = vunpack.c.l.b16 %v2494
    %v2668 = vunpack.c.h.b16 %v2494
    %v2669 = vunpack.c.l.b16 %v2495
    %v2670 = vunpack.c.h.b16 %v2495
    %v2671 = vunpack.c.l.b16 %v2496
    %v2672 = vunpack.c.h.b16 %v2496
    %v2673 = vunpack.c.l.b16 %v2497
    %v2674 = vunpack.c.h.b16 %v2497
    %v2675 = vunpack.c.l.b16 %v2498
    %v2676 = vunpack.c.h.b16 %v2498
    %v2677 = vunpack.c.l.b16 %v2499
    %v2678 = vunpack.c.h.b16 %v2499
    %v2679 = vunpack.c.l.b16 %v2500
    %v2680 = vunpack.c.h.b16 %v2500
    %v2681 = vunpack.c.l.b16 %v2501
    %v2682 = vunpack.c.h.b16 %v2501
    %v2683 = vunpack.c.l.b16 %v2502
    %v2684 = vunpack.c.h.b16 %v2502
    %v2685 = vunpack.c.l.b16 %v2503
    %v2686 = vunpack.c.h.b16 %v2503
    %v2687 = vunpack.c.l.b16 %v2504
    %v2688 = vunpack.c.h.b16 %v2504
    %v2689 = vunpack.c.l.b16 %v2505
    %v2690 = vunpack.c.h.b16 %v2505
    %v2691 = vunpack.c.l.b16 %v2506
    %v2692 = vunpack.c.h.b16 %v2506
    %v2693 = vunpack.c.l.b16 %v2507
    %v2694 = vunpack.c.h.b16 %v2507
    %v2695 = vunpack.c.l.b16 %v2508
    %v2696 = vunpack.c.h.b16 %v2508
    %v2697 = vunpack.c.l.b16 %v2509
    %v2698 = vunpack.c.h.b16 %v2509
    %v2699 = vunpack.c.l.b16 %v2510
    %v2700 = vunpack.c.h.b16 %v2510
    %v2701 = vunpack.c.l.b16 %v2511
    %v2702 = vunpack.c.h.b16 %v2511
    %v2703 = vunpack.c.l.b16 %v2512
    %v2704 = vunpack.c.h.b16 %v2512
    %v2705 = vunpack.c.l.b16 %v2513
    %v2706 = vunpack.c.h.b16 %v2513
    %v2707 = vunpack.c.l.b16 %v2514
    %v2708 = vunpack.c.h.b16 %v2514
    %v2709 = vunpack.c.l.b16 %v2515
    %v2710 = vunpack.c.h.b16 %v2515
    %v2711 = vunpack.c.l.b16 %v2516
    %v2712 = vunpack.c.h.b16 %v2516
    %v2713 = vunpack.c.l.b16 %v2517
    %v2714 = vunpack.c.h.b16 %v2517
    %v2715 = vunpack.c.l.b16 %v2518
    %v2716 = vunpack.c.h.b16 %v2518
    %v2717 = vunpack.c.l.b16 %v2519
    %v2718 = vunpack.c.h.b16 %v2519
    %v2719 = vunpack.c.l.b16 %v2520
    %v2720 = vunpack.c.h.b16 %v2520
    %v2721 = vunpack.c.l.b16 %v2521
    %v2722 = vunpack.c.h.b16 %v2521
    %v2723 = vunpack.c.l.b16 %v2522
    %v2724 = vunpack.c.h.b16 %v2522
    %v2725 = vunpack.c.l.b16 %v2523
    %v2726 = vunpack.c.h.b16 %v2523
    %v2727 = vunpack.c.l.b16 %v2524
    %v2728 = vunpack.c.h.b16 %v2524
    %v2729 = vunpack.c.l.b16 %v2525
    %v2730 = vunpack.c.h.b16 %v2525
    %v2731 = vunpack.c.l.b16 %v2526
    %v2732 = vunpack.c.h.b16 %v2526
    %v2733 = vunpack.c.l.b16 %v2527
    %v2734 = vunpack.c.h.b16 %v2527
    %v2735 = vunpack.c.l.b16 %v2528
    %v2736 = vunpack.c.h.b16 %v2528
    %v2737 = vunpack.c.l.b16 %v2529
    %v2738 = vunpack.c.h.b16 %v2529
    %v2739 = vunpack.c.l.b16 %v2530
    %v2740 = vunpack.c.h.b16 %v2530
    %v2741 = vunpack.c.l.b16 %v2531
    %v2742 = vunpack.c.h.b16 %v2531
    %v2743 = vunpack.c.l.b16 %v2532
    %v2744 = vunpack.c.h.b16 %v2532
    %v2745 = vunpack.c.l.b16 %v2533
    %v2746 = vunpack.c.h.b16 %v2533
    %v2747 = vunpack.c.l.b16 %v2534
    %v2748 = vunpack.c.h.b16 %v2534
    %v2749 = vunpack.c.l.b16 %v2535
    %v2750 = vunpack.c.h.b16 %v2535
    %v2751 = vunpack.c.l.b16 %v2536
    %v2752 = vunpack.c.h.b16 %v2536
    %v2753 = vunpack.c.l.b16 %v2537
    %v2754 = vunpack.c.h.b16 %v2537
    %v2755 = vunpack.c.l.b16 %v2538
    %v2756 = vunpack.c.h.b16 %v2538
    %v2757 = vunpack.c.l.b16 %v2539
    %v2758 = vunpack.c.h.b16 %v2539
    %v2759 = vunpack.c.l.b16 %v2540
    %v2760 = vunpack.c.h.b16 %v2540
    %v2761 = vunpack.c.l.b16 %v2541
    %v2762 = vunpack.c.h.b16 %v2541
    %v2763 = vunpack.c.l.b16 %v2542
    %v2764 = vunpack.c.h.b16 %v2542
    %v2765 = vunpack.c.l.b16 %v2543
    %v2766 = vunpack.c.h.b16 %v2543
    %v2767 = vunpack.c.l.b16 %v2544
    %v2768 = vunpack.c.h.b16 %v2544
    %v2769 = vunpack.c.l.b16 %v2545
    %v2770 = vunpack.c.h.b16 %v2545
    %v2771 = vunpack.c.l.b16 %v2546
    %v2772 = vunpack.c.h.b16 %v2546
    %v2773 = vunpack.c.l.b16 %v2547
    %v2774 = vunpack.c.h.b16 %v2547
    %v2775 = vunpack.c.l.b16 %v2548
    %v2776 = vunpack.c.h.b16 %v2548
    %v2777 = vunpack.c.l.b16 %v2549
    %v2778 = vunpack.c.h.b16 %v2549
    %v2779 = vunpack.c.l.b16 %v2550
    %v2780 = vunpack.c.h.b16 %v2550
    %v2781 = vunpack.c.l.b16 %v2551
    %v2782 = vunpack.c.h.b16 %v2551
    %v2783 = vunpack.c.l.b16 %v2552
    %v2784 = vunpack.c.h.b16 %v2552
    %v2785 = vunpack.c.l.b16 %v2553
    %v2786 = vunpack.c.h.b16 %v2553
    %v2787 = vunpack.c.l.b16 %v2554
    %v2788 = vunpack.c.h.b16 %v2554
    %v2789 = vunpack.c.l.b16 %v2555
    %v2790 = vunpack.c.h.b16 %v2555
    %v2791 = vunpack.c.l.b16 %v2556
    %v2792 = vunpack.c.h.b16 %v2556
    %v2793 = vunpack.c.l.b16 %v2557
    %v2794 = vunpack.c.h.b16 %v2557
    %v2795 = vunpack.c.l.b16 %v2558
    %v2796 = vunpack.c.h.b16 %v2558
    %v2797 = vunpack.c.l.b16 %v2559
    %v2798 = vunpack.c.h.b16 %v2559
    %v2799 = vunpack.c.l.b16 %v2560
    %v2800 = vunpack.c.h.b16 %v2560
    %v2801 = vpack.c.b16 %v2657, %v2645
    %v2802 = vpack.c.b16 %v2658, %v2646
    %v2803 = vpack.c.b16 %v2659, %v2647
    %v2804 = vpack.c.b16 %v2660, %v2648
    %v2805 = vpack.c.b16 %v2661, %v2649
    %v2806 = vpack.c.b16 %v2662, %v2650
    %v2807 = vpack.c.b16 %v2663, %v2651
    %v2808 = vpack.c.b16 %v2664, %v2652
    %v2809 = vpack.c.b16 %v2665, %v2653
    %v2810 = vpack.c.b16 %v2666, %v2654
    %v2811 = vpack.c.b16 %v2667, %v2655
    %v2812 = vpack.c.b16 %v2668, %v2656
    %v2813 = vpack.c.b16 %v2681, %v2669
    %v2814 = vpack.c.b16 %v2682, %v2670
    %v2815 = vpack.c.b16 %v2683, %v2671
    %v2816 = vpack.c.b16 %v2684, %v2672
    %v2817 = vpack.c.b16 %v2685, %v2673
    %v2818 = vpack.c.b16 %v2686, %v2674
    %v2819 = vpack.c.b16 %v2687, %v2675
    %v2820 = vpack.c.b16 %v2688, %v2676
    %v2821 = vpack.c.b16 %v2689, %v2677
    %v2822 = vpack.c.b16 %v2690, %v2678
    %v2823 = vpack.c.b16 %v2691, %v2679
    %v2824 = vpack.c.b16 %v2692, %v2680
    %v2825 = vpack.c.b16 %v2705, %v2693
    %v2826 = vpack.c.b16 %v2706, %v2694
    %v2827 = vpack.c.b16 %v2707, %v2695
    %v2828 = vpack.c.b16 %v2708, %v2696
    %v2829 = vpack.c.b16 %v2709, %v2697
    %v2830 = vpack.c.b16 %v2710, %v2698
    %v2831 = vpack.c.b16 %v2711, %v2699
    %v2832 = vpack.c.b16 %v2712, %v2700
    %v2833 = vpack.c.b16 %v2713, %v2701
    %v2834 = vpack.c.b16 %v2714, %v2702
    %v2835 = vpack.c.b16 %v2715, %v2703
    %v2836 = vpack.c.b16 %v2716, %v2704
    %v2837 = vpack.c.b16 %v2729, %v2717
    %v2838 = vpack.c.b16 %v2730, %v2718
    %v2839 = vpack.c.b16 %v2731, %v2719
    %v2840 = vpack.c.b16 %v2732, %v2720
    %v2841 = vpack.c.b16 %v2733, %v2721
    %v2842 = vpack.c.b16 %v2734, %v2722
    %v2843 = vpack.c.b16 %v2735, %v2723
    %v2844 = vpack.c.b16 %v2736, %v2724
    %v2845 = vpack.c.b16 %v2737, %v2725
    %v2846 = vpack.c.b16 %v2738, %v2726
    %v2847 = vpack.c.b16 %v2739, %v2727
    %v2848 = vpack.c.b16 %v2740, %v2728
    %v2849 = vpack.c.b16 %v2753, %v2741
    %v2850 = vpack.c.b16 %v2754, %v2742
    %v2851 = vpack.c.b16 %v2755, %v2743
    %v2852 = vpack.c.b16 %v2756, %v2744
    %v2853 = vpack.c.b16 %v2757, %v2745
    %v2854 = vpack.c.b16 %v2758, %v2746
    %v2855 = vpack.c.b16 %v2759, %v2747
    %v2856 = vpack.c.b16 %v2760, %v2748
    %v2857 = vpack.c.b16 %v2761, %v2749
    %v2858 = vpack.c.b16 %v2762, %v2750
    %v2859 = vpack.c.b16 %v2763, %v2751
    %v2860 = vpack.c.b16 %v2764, %v2752
    %v2861 = vpack.c.b16 %v2777, %v2765
    %v2862 = vpack.c.b16 %v2778, %v2766
    %v2863 = vpack.c.b16 %v2779, %v2767
    %v2864 = vpack.c.b16 %v2780, %v2768
    %v2865 = vpack.c.b16 %v2781, %v2769
    %v2866 = vpack.c.b16 %v2782, %v2770
    %v2867 = vpack.c.b16 %v2783, %v2771
    %v2868 = vpack.c.b16 %v2784, %v2772
    %v2869 = vpack.c.b16 %v2785, %v2773
    %v2870 = vpack.c.b16 %v2786, %v2774
    %v2871 = vpack.c.b16 %v2787, %v2775
    %v2872 = vpack.c.b16 %v2788, %v2776
    %v2873 = vpack.c.b16 %v2789, %v2789
    %v2874 = vpack.c.b16 %v2790, %v2790
    %v2875 = vpack.c.b16 %v2791, %v2791
    %v2876 = vpack.c.b16 %v2792, %v2792
    %v2877 = vpack.c.b16 %v2793, %v2793
    %v2878 = vpack.c.b16 %v2794, %v2794
    %v2879 = vpack.c.b16 %v2795, %v2795
    %v2880 = vpack.c.b16 %v2796, %v2796
    %v2881 = vpack.c.b16 %v2797, %v2797
    %v2882 = vpack.c.b16 %v2798, %v2798
    %v2883 = vpack.c.b16 %v2799, %v2799
    %v2884 = vpack.c.b16 %v2800, %v2800
    %vm2957 = vcmask 818176
    %v2959 = vsel %vm2957, %v2482, 0
    %v2962 = vsel %vm121, %v2873, 0
    %v2965 = vsel %vm121, %v2874, 0
    %v2968 = vsel %vm121, %v2875, 0
    %v2971 = vsel %vm121, %v2876, 0
    %v2974 = vsel %vm121, %v2877, 0
    %v2977 = vsel %vm121, %v2878, 0
    %v2980 = vsel %vm121, %v2879, 0
    %v2983 = vsel %vm121, %v2880, 0
    %v2986 = vsel %vm121, %v2881, 0
    %v2989 = vsel %vm121, %v2882, 0
    %v2992 = vsel %vm121, %v2883, 0
    %v2995 = vsel %vm121, %v2884, 0
    %2997 = vmatprep.subr.bf16.mxu0 %v2802
    %2998 = vmatpush1.bf16.msra.mxu0 %v2801
    %2999 = vmatprep.subr.bf16.mxu0 %v2814
    %3000 = vmatpush1.bf16.msra.mxu0 %v2813
    %3001 = vmatprep.subr.bf16.mxu0 %v2826
    %3002 = vmatpush1.bf16.msra.mxu0 %v2825
    %3003 = vmatprep.subr.bf16.mxu0 %v2838
    %3004 = vmatpush1.bf16.msra.mxu0 %v2837
    %3005 = vmatprep.subr.bf16.mxu0 %v2850
    %3006 = vmatpush1.bf16.msra.mxu0 %v2849
    %3007 = vmatprep.subr.bf16.mxu0 %v2862
    %3008 = vmatpush1.bf16.msra.mxu0 %v2861
    %3009 = vmatprep.subr.bf16.mxu0 %v2965
    %3010 = vmatpush1.bf16.msra.mxu0 %v2962
    %3011 = vmatprep.subr.bf16.mxu0 0
    %3012 = vmatpush1.bf16.msra.mxu0 0
    %3013 = vmatprep.subr.bf16.mxu0 0
    %3014 = vmatpush1.bf16.msra.mxu0 0
    %3015 = vmatprep.subr.bf16.mxu0 0
    %3016 = vmatpush1.bf16.msra.mxu0 0
    %3017 = vmatprep.subr.bf16.mxu0 0
    %3018 = vmatpush1.bf16.msra.mxu0 0
    %3019 = vmatprep.subr.bf16.mxu0 0
    %3020 = vmatpush1.bf16.msra.mxu0 0
    %3021 = vmatprep.subr.bf16.mxu0 0
    %3022 = vmatpush1.bf16.msra.mxu0 0
    %3023 = vmatprep.subr.bf16.mxu0 0
    %3024 = vmatpush1.bf16.msra.mxu0 0
    %3025 = vmatprep.subr.bf16.mxu0 0
    %3026 = vmatpush1.bf16.msra.mxu0 0
    %3027 = vmatprep.subr.bf16.mxu0 0
    %3028 = vmatpush1.bf16.msra.mxu0 0
    %3029 = vmatprep.mubr.bf16.mxu0 0
    %3030 = vmatmul.mubr.bf16.gmra.mrb[0].mxu0 %v2959
    %v3031 = vpop.f32.mrb[0].mxu0
    %v3032 = vadd.f32 %v2565, %v3031
    %v3033 = vpop.f32.mrb[0].mxu0
    %v3034 = vadd.f32 %v2565, %v3033
    %v3035 = vpop.f32.mrb[0].mxu0
    %v3036 = vpop.f32.mrb[0].mxu0
    %3037 = vdwg.mxu0
    %3038 = vmatprep.subr.bf16.mxu0 %v2804
    %3039 = vmatpush1.bf16.msra.mxu0 %v2803
    %3040 = vmatprep.subr.bf16.mxu0 %v2816
    %3041 = vmatpush1.bf16.msra.mxu0 %v2815
    %3042 = vmatprep.subr.bf16.mxu0 %v2828
    %3043 = vmatpush1.bf16.msra.mxu0 %v2827
    %3044 = vmatprep.subr.bf16.mxu0 %v2840
    %3045 = vmatpush1.bf16.msra.mxu0 %v2839
    %3046 = vmatprep.subr.bf16.mxu0 %v2852
    %3047 = vmatpush1.bf16.msra.mxu0 %v2851
    %3048 = vmatprep.subr.bf16.mxu0 %v2864
    %3049 = vmatpush1.bf16.msra.mxu0 %v2863
    %3050 = vmatprep.subr.bf16.mxu0 %v2971
    %3051 = vmatpush1.bf16.msra.mxu0 %v2968
    %3052 = vmatprep.subr.bf16.mxu0 0
    %3053 = vmatpush1.bf16.msra.mxu0 0
    %3054 = vmatprep.subr.bf16.mxu0 0
    %3055 = vmatpush1.bf16.msra.mxu0 0
    %3056 = vmatprep.subr.bf16.mxu0 0
    %3057 = vmatpush1.bf16.msra.mxu0 0
    %3058 = vmatprep.subr.bf16.mxu0 0
    %3059 = vmatpush1.bf16.msra.mxu0 0
    %3060 = vmatprep.subr.bf16.mxu0 0
    %3061 = vmatpush1.bf16.msra.mxu0 0
    %3062 = vmatprep.subr.bf16.mxu0 0
    %3063 = vmatpush1.bf16.msra.mxu0 0
    %3064 = vmatprep.subr.bf16.mxu0 0
    %3065 = vmatpush1.bf16.msra.mxu0 0
    %3066 = vmatprep.subr.bf16.mxu0 0
    %3067 = vmatpush1.bf16.msra.mxu0 0
    %3068 = vmatprep.subr.bf16.mxu0 0
    %3069 = vmatpush1.bf16.msra.mxu0 0
    %3070 = vmatprep.mubr.bf16.mxu0 0
    %3071 = vmatmul.mubr.bf16.gmra.mrb[0].mxu0 %v2959
    %v3072 = vpop.f32.mrb[0].mxu0
    %v3073 = vadd.f32 %v2565, %v3072
    %v3074 = vpop.f32.mrb[0].mxu0
    %v3075 = vadd.f32 %v2565, %v3074
    %v3076 = vpop.f32.mrb[0].mxu0
    %v3077 = vpop.f32.mrb[0].mxu0
    %3078 = vdwg.mxu0
    %3079 = vmatprep.subr.bf16.mxu0 %v2806
    %3080 = vmatpush1.bf16.msra.mxu0 %v2805
    %3081 = vmatprep.subr.bf16.mxu0 %v2818
    %3082 = vmatpush1.bf16.msra.mxu0 %v2817
    %3083 = vmatprep.subr.bf16.mxu0 %v2830
    %3084 = vmatpush1.bf16.msra.mxu0 %v2829
    %3085 = vmatprep.subr.bf16.mxu0 %v2842
    %3086 = vmatpush1.bf16.msra.mxu0 %v2841
    %3087 = vmatprep.subr.bf16.mxu0 %v2854
    %3088 = vmatpush1.bf16.msra.mxu0 %v2853
    %3089 = vmatprep.subr.bf16.mxu0 %v2866
    %3090 = vmatpush1.bf16.msra.mxu0 %v2865
    %3091 = vmatprep.subr.bf16.mxu0 %v2977
    %3092 = vmatpush1.bf16.msra.mxu0 %v2974
    %3093 = vmatprep.subr.bf16.mxu0 0
    %3094 = vmatpush1.bf16.msra.mxu0 0
    %3095 = vmatprep.subr.bf16.mxu0 0
    %3096 = vmatpush1.bf16.msra.mxu0 0
    %3097 = vmatprep.subr.bf16.mxu0 0
    %3098 = vmatpush1.bf16.msra.mxu0 0
    %3099 = vmatprep.subr.bf16.mxu0 0
    %3100 = vmatpush1.bf16.msra.mxu0 0
    %3101 = vmatprep.subr.bf16.mxu0 0
    %3102 = vmatpush1.bf16.msra.mxu0 0
    %3103 = vmatprep.subr.bf16.mxu0 0
    %3104 = vmatpush1.bf16.msra.mxu0 0
    %3105 = vmatprep.subr.bf16.mxu0 0
    %3106 = vmatpush1.bf16.msra.mxu0 0
    %3107 = vmatprep.subr.bf16.mxu0 0
    %3108 = vmatpush1.bf16.msra.mxu0 0
    %3109 = vmatprep.subr.bf16.mxu0 0
    %3110 = vmatpush1.bf16.msra.mxu0 0
    %3111 = vmatprep.mubr.bf16.mxu0 0
    %3112 = vmatmul.mubr.bf16.gmra.mrb[0].mxu0 %v2959
    %v3113 = vpop.f32.mrb[0].mxu0
    %v3114 = vadd.f32 %v2565, %v3113
    %v3115 = vpop.f32.mrb[0].mxu0
    %v3116 = vadd.f32 %v2565, %v3115
    %v3117 = vpop.f32.mrb[0].mxu0
    %v3118 = vpop.f32.mrb[0].mxu0
    %3119 = vdwg.mxu0
    %3120 = vmatprep.subr.bf16.mxu0 %v2808
    %3121 = vmatpush1.bf16.msra.mxu0 %v2807
    %3122 = vmatprep.subr.bf16.mxu0 %v2820
    %3123 = vmatpush1.bf16.msra.mxu0 %v2819
    %3124 = vmatprep.subr.bf16.mxu0 %v2832
    %3125 = vmatpush1.bf16.msra.mxu0 %v2831
    %3126 = vmatprep.subr.bf16.mxu0 %v2844
    %3127 = vmatpush1.bf16.msra.mxu0 %v2843
    %3128 = vmatprep.subr.bf16.mxu0 %v2856
    %3129 = vmatpush1.bf16.msra.mxu0 %v2855
    %3130 = vmatprep.subr.bf16.mxu0 %v2868
    %3131 = vmatpush1.bf16.msra.mxu0 %v2867
    %3132 = vmatprep.subr.bf16.mxu0 %v2983
    %3133 = vmatpush1.bf16.msra.mxu0 %v2980
    %3134 = vmatprep.subr.bf16.mxu0 0
    %3135 = vmatpush1.bf16.msra.mxu0 0
    %3136 = vmatprep.subr.bf16.mxu0 0
    %3137 = vmatpush1.bf16.msra.mxu0 0
    %3138 = vmatprep.subr.bf16.mxu0 0
    %3139 = vmatpush1.bf16.msra.mxu0 0
    %3140 = vmatprep.subr.bf16.mxu0 0
    %3141 = vmatpush1.bf16.msra.mxu0 0
    %3142 = vmatprep.subr.bf16.mxu0 0
    %3143 = vmatpush1.bf16.msra.mxu0 0
    %3144 = vmatprep.subr.bf16.mxu0 0
    %3145 = vmatpush1.bf16.msra.mxu0 0
    %3146 = vmatprep.subr.bf16.mxu0 0
    %3147 = vmatpush1.bf16.msra.mxu0 0
    %3148 = vmatprep.subr.bf16.mxu0 0
    %3149 = vmatpush1.bf16.msra.mxu0 0
    %3150 = vmatprep.subr.bf16.mxu0 0
    %3151 = vmatpush1.bf16.msra.mxu0 0
    %3152 = vmatprep.mubr.bf16.mxu0 0
    %3153 = vmatmul.mubr.bf16.gmra.mrb[0].mxu0 %v2959
    %v3154 = vpop.f32.mrb[0].mxu0
    %v3155 = vadd.f32 %v2565, %v3154
    %v3156 = vpop.f32.mrb[0].mxu0
    %v3157 = vadd.f32 %v2565, %v3156
    %v3158 = vpop.f32.mrb[0].mxu0
    %v3159 = vpop.f32.mrb[0].mxu0
    %3160 = vdwg.mxu0
    %3161 = vmatprep.subr.bf16.mxu0 %v2810
    %3162 = vmatpush1.bf16.msra.mxu0 %v2809
    %3163 = vmatprep.subr.bf16.mxu0 %v2822
    %3164 = vmatpush1.bf16.msra.mxu0 %v2821
    %3165 = vmatprep.subr.bf16.mxu0 %v2834
    %3166 = vmatpush1.bf16.msra.mxu0 %v2833
    %3167 = vmatprep.subr.bf16.mxu0 %v2846
    %3168 = vmatpush1.bf16.msra.mxu0 %v2845
    %3169 = vmatprep.subr.bf16.mxu0 %v2858
    %3170 = vmatpush1.bf16.msra.mxu0 %v2857
    %3171 = vmatprep.subr.bf16.mxu0 %v2870
    %3172 = vmatpush1.bf16.msra.mxu0 %v2869
    %3173 = vmatprep.subr.bf16.mxu0 %v2989
    %3174 = vmatpush1.bf16.msra.mxu0 %v2986
    %3175 = vmatprep.subr.bf16.mxu0 0
    %3176 = vmatpush1.bf16.msra.mxu0 0
    %3177 = vmatprep.subr.bf16.mxu0 0
    %3178 = vmatpush1.bf16.msra.mxu0 0
    %3179 = vmatprep.subr.bf16.mxu0 0
    %3180 = vmatpush1.bf16.msra.mxu0 0
    %3181 = vmatprep.subr.bf16.mxu0 0
    %3182 = vmatpush1.bf16.msra.mxu0 0
    %3183 = vmatprep.subr.bf16.mxu0 0
    %3184 = vmatpush1.bf16.msra.mxu0 0
    %3185 = vmatprep.subr.bf16.mxu0 0
    %3186 = vmatpush1.bf16.msra.mxu0 0
    %3187 = vmatprep.subr.bf16.mxu0 0
    %3188 = vmatpush1.bf16.msra.mxu0 0
    %3189 = vmatprep.subr.bf16.mxu0 0
    %3190 = vmatpush1.bf16.msra.mxu0 0
    %3191 = vmatprep.subr.bf16.mxu0 0
    %3192 = vmatpush1.bf16.msra.mxu0 0
    %3193 = vmatprep.mubr.bf16.mxu0 0
    %3194 = vmatmul.mubr.bf16.gmra.mrb[0].mxu0 %v2959
    %v3195 = vpop.f32.mrb[0].mxu0
    %v3196 = vadd.f32 %v2565, %v3195
    %v3197 = vpop.f32.mrb[0].mxu0
    %v3198 = vadd.f32 %v2565, %v3197
    %v3199 = vpop.f32.mrb[0].mxu0
    %v3200 = vpop.f32.mrb[0].mxu0
    %3201 = vdwg.mxu0
    %3202 = vmatprep.subr.bf16.mxu0 %v2812
    %3203 = vmatpush1.bf16.msra.mxu0 %v2811
    %3204 = vmatprep.subr.bf16.mxu0 %v2824
    %3205 = vmatpush1.bf16.msra.mxu0 %v2823
    %3206 = vmatprep.subr.bf16.mxu0 %v2836
    %3207 = vmatpush1.bf16.msra.mxu0 %v2835
    %3208 = vmatprep.subr.bf16.mxu0 %v2848
    %3209 = vmatpush1.bf16.msra.mxu0 %v2847
    %3210 = vmatprep.subr.bf16.mxu0 %v2860
    %3211 = vmatpush1.bf16.msra.mxu0 %v2859
    %3212 = vmatprep.subr.bf16.mxu0 %v2872
    %3213 = vmatpush1.bf16.msra.mxu0 %v2871
    %3214 = vmatprep.subr.bf16.mxu0 %v2995
    %3215 = vmatpush1.bf16.msra.mxu0 %v2992
    %3216 = vmatprep.subr.bf16.mxu0 0
    %3217 = vmatpush1.bf16.msra.mxu0 0
    %3218 = vmatprep.subr.bf16.mxu0 0
    %3219 = vmatpush1.bf16.msra.mxu0 0
    %3220 = vmatprep.subr.bf16.mxu0 0
    %3221 = vmatpush1.bf16.msra.mxu0 0
    %3222 = vmatprep.subr.bf16.mxu0 0
    %3223 = vmatpush1.bf16.msra.mxu0 0
    %3224 = vmatprep.subr.bf16.mxu0 0
    %3225 = vmatpush1.bf16.msra.mxu0 0
    %3226 = vmatprep.subr.bf16.mxu0 0
    %3227 = vmatpush1.bf16.msra.mxu0 0
    %3228 = vmatprep.subr.bf16.mxu0 0
    %3229 = vmatpush1.bf16.msra.mxu0 0
    %3230 = vmatprep.subr.bf16.mxu0 0
    %3231 = vmatpush1.bf16.msra.mxu0 0
    %3232 = vmatprep.subr.bf16.mxu0 0
    %3233 = vmatpush1.bf16.msra.mxu0 0
    %3234 = vmatprep.mubr.bf16.mxu0 0
    %3235 = vmatmul.mubr.bf16.gmra.mrb[0].mxu0 %v2959
    %v3236 = vpop.f32.mrb[0].mxu0
    %v3237 = vadd.f32 %v2565, %v3236
    %v3238 = vpop.f32.mrb[0].mxu0
    %v3239 = vadd.f32 %v2565, %v3238
    %v3240 = vpop.f32.mrb[0].mxu0
    %v3241 = vpop.f32.mrb[0].mxu0
    %3242 = vdwg.mxu0
    %v3243 = vmax.f32 %v3032, 0.0
    %v3244 = vmax.f32 %v3034, 0.0
    %v3245 = vmax.f32 %v3073, 0.0
    %v3246 = vmax.f32 %v3075, 0.0
    %v3247 = vmax.f32 %v3114, 0.0
    %v3248 = vmax.f32 %v3116, 0.0
    %v3249 = vmax.f32 %v3155, 0.0
    %v3250 = vmax.f32 %v3157, 0.0
    %v3251 = vmax.f32 %v3196, 0.0
    %v3252 = vmax.f32 %v3198, 0.0
    %v3253 = vmax.f32 %v3237, 0.0
    %v3254 = vmax.f32 %v3239, 0.0
    %v3255 = vpack.c.bf16 %v3243, %v3243
    %v3256 = vpack.c.bf16 %v3244, %v3244
    %v3257 = vpack.c.bf16 %v3245, %v3245
    %v3258 = vpack.c.bf16 %v3246, %v3246
    %v3259 = vpack.c.bf16 %v3247, %v3247
    %v3260 = vpack.c.bf16 %v3248, %v3248
    %v3261 = vpack.c.bf16 %v3249, %v3249
    %v3262 = vpack.c.bf16 %v3250, %v3250
    %v3263 = vpack.c.bf16 %v3251, %v3251
    %v3264 = vpack.c.bf16 %v3252, %v3252
    %v3265 = vpack.c.bf16 %v3253, %v3253
    %v3266 = vpack.c.bf16 %v3254, %v3254
    %v3279 = vunpack.c.l.b16 %v3255
    %v3280 = vunpack.c.l.b16 %v3256
    %v3281 = vunpack.c.l.b16 %v3257
    %v3282 = vunpack.c.l.b16 %v3258
    %v3283 = vunpack.c.l.b16 %v3259
    %v3284 = vunpack.c.l.b16 %v3260
    %v3285 = vunpack.c.l.b16 %v3261
    %v3286 = vunpack.c.l.b16 %v3262
    %v3287 = vunpack.c.l.b16 %v3263
    %v3288 = vunpack.c.l.b16 %v3264
    %v3289 = vunpack.c.l.b16 %v3265
    %v3290 = vunpack.c.l.b16 %v3266
    %v3291 = vpack.c.b16 %v3280, %v3279
    %v3292 = vpack.c.b16 %v3282, %v3281
    %v3293 = vpack.c.b16 %v3284, %v3283
    %v3294 = vpack.c.b16 %v3286, %v3285
    %v3295 = vpack.c.b16 %v3288, %v3287
    %v3296 = vpack.c.b16 %v3290, %v3289
    %3303 = vst [vmem:[#allocation3] sm:$0xff] %v3291
    %3304 = vst [vmem:[#allocation3 + $0x8] sm:$0xff] %v3292
    %3305 = vst [vmem:[#allocation3 + $0x10] sm:$0xff] %v3293
    %3306 = vst [vmem:[#allocation3 + $0x18] sm:$0xff] %v3294
    %3307 = vst [vmem:[#allocation3 + $0x20] sm:$0xff] %v3295
    %vm3308 = vcmask 1043456
    %vm3309 = vcmask 359428
    %vm3310 = vmor %vm3309, %vm3308
    %3311 = vst.msk [vmem:[#allocation3 + $0x28] sm:$0xff] %vm3310, %v3296
    %v3312 = vld [vmem:[#allocation3] sm:$0xff]
    %v3313 = vld [vmem:[#allocation3 + $0x8] sm:$0xff]
    %v3314 = vld [vmem:[#allocation3 + $0x10] sm:$0xff]
    %v3315 = vld [vmem:[#allocation3 + $0x18] sm:$0xff]
    %v3316 = vld [vmem:[#allocation3 + $0x20] sm:$0xff]
    %v3317 = vld [vmem:[#allocation3 + $0x28] sm:$0xff]
    %3324 = vrot.lane.b32.xlu0 %v3312, 127
    %v3325 = vpop.permute.xlu0 %3324
    %3326 = vrot.lane.b32.xlu0 %v3313, 127
    %v3327 = vpop.permute.xlu0 %3326
    %3328 = vrot.lane.b32.xlu0 %v3314, 127
    %v3329 = vpop.permute.xlu0 %3328
    %3330 = vrot.lane.b32.xlu0 %v3315, 127
    %v3331 = vpop.permute.xlu0 %3330
    %3332 = vrot.lane.b32.xlu0 %v3316, 127
    %v3333 = vpop.permute.xlu0 %3332
    %3334 = vrot.lane.b32.xlu0 %v3317, 127
    %v3335 = vpop.permute.xlu0 %3334
    %v3336 = vrot.slane %v3325, 4
    %v3337 = vrot.slane %v3327, 4
    %v3338 = vrot.slane %v3329, 4
    %v3339 = vrot.slane %v3331, 4
    %v3340 = vrot.slane %v3333, 4
    %v3341 = vrot.slane %v3335, 4
    %v3342 = vsel %vm194, %v3336, %v3337
    %v3343 = vsel %vm196, %v3325, %v3342
    %v3344 = vsel %vm194, %v3337, %v3338
    %v3345 = vsel %vm196, %v3327, %v3344
    %v3346 = vsel %vm194, %v3338, %v3339
    %v3347 = vsel %vm196, %v3329, %v3346
    %v3348 = vsel %vm194, %v3339, %v3340
    %v3349 = vsel %vm196, %v3331, %v3348
    %v3350 = vsel %vm194, %v3340, %v3341
    %v3351 = vsel %vm196, %v3333, %v3350
    %v3352 = vsel %vm196, %v3335, %v3341
    %v3359 = vmax.bf16 %v3312, %v3343
    %v3360 = vmax.bf16 %v3313, %v3345
    %v3361 = vmax.bf16 %v3314, %v3347
    %v3362 = vmax.bf16 %v3315, %v3349
    %v3363 = vmax.bf16 %v3316, %v3351
    %v3364 = vmax.bf16 %v3317, %v3352
    %3371 = vrot.lane.b32.xlu0 %v3359, 100
    %v3372 = vpop.permute.xlu0 %3371
    %3373 = vrot.lane.b32.xlu0 %v3360, 100
    %v3374 = vpop.permute.xlu0 %3373
    %3375 = vrot.lane.b32.xlu0 %v3361, 100
    %v3376 = vpop.permute.xlu0 %3375
    %3377 = vrot.lane.b32.xlu0 %v3362, 100
    %v3378 = vpop.permute.xlu0 %3377
    %3379 = vrot.lane.b32.xlu0 %v3363, 100
    %v3380 = vpop.permute.xlu0 %3379
    %3381 = vrot.lane.b32.xlu0 %v3364, 100
    %v3382 = vpop.permute.xlu0 %3381
    %v3383 = vrot.slane %v3372, 4
    %v3384 = vrot.slane %v3374, 4
    %v3385 = vrot.slane %v3376, 4
    %v3386 = vrot.slane %v3378, 4
    %v3387 = vrot.slane %v3380, 4
    %v3388 = vrot.slane %v3382, 4
    %v3389 = vsel %vm194, %v3383, %v3384
    %v3390 = vsel %vm571, %v3372, %v3389
    %v3391 = vsel %vm194, %v3384, %v3385
    %v3392 = vsel %vm571, %v3374, %v3391
    %v3393 = vsel %vm194, %v3385, %v3386
    %v3394 = vsel %vm571, %v3376, %v3393
    %v3395 = vsel %vm194, %v3386, %v3387
    %v3396 = vsel %vm571, %v3378, %v3395
    %v3397 = vsel %vm194, %v3387, %v3388
    %v3398 = vsel %vm571, %v3380, %v3397
    %v3399 = vsel %vm571, %v3382, %v3388
    %v3406 = vmax.bf16 %v3359, %v3390
    %v3407 = vmax.bf16 %v3360, %v3392
    %v3408 = vmax.bf16 %v3361, %v3394
    %v3409 = vmax.bf16 %v3362, %v3396
    %v3410 = vmax.bf16 %v3363, %v3398
    %v3411 = vmax.bf16 %v3364, %v3399
    %3412 = vst [vmem:[#allocation4] sm:$0xff] %v3406
    %3413 = vst [vmem:[#allocation4 + $0x8] sm:$0xff] %v3407
    %3414 = vst [vmem:[#allocation4 + $0x10] sm:$0xff] %v3408
    %3415 = vst [vmem:[#allocation4 + $0x18] sm:$0xff] %v3409
    %3416 = vst [vmem:[#allocation4 + $0x20] sm:$0xff] %v3410
    %vm3417 = vcmask 121860
    %vm3418 = vmor %vm3417, %vm3308
    %3419 = vst.msk [vmem:[#allocation4 + $0x28] sm:$0xff] %vm3418, %v3411
    %v3420 = vld [vmem:[#allocation4] sm:$0xff]
    %v3421 = vld [vmem:[#allocation4 + $0x8] sm:$0xff]
    %v3422 = vld [vmem:[#allocation4 + $0x10] sm:$0xff]
    %v3423 = vld [vmem:[#allocation4 + $0x18] sm:$0xff]
    %v3424 = vld [vmem:[#allocation4 + $0x20] sm:$0xff]
    %v3425 = vld [vmem:[#allocation4 + $0x28] sm:$0xf]
    %3426 = vst [vmem:[#allocation5] sm:$0xff] %v3420
    %3427 = vst [vmem:[#allocation5 + $0x8] sm:$0xff] %v3421
    %3428 = vst [vmem:[#allocation5 + $0x10] sm:$0xff] %v3422
    %3429 = vst [vmem:[#allocation5 + $0x18] sm:$0xff] %v3423
    %3430 = vst [vmem:[#allocation5 + $0x20] sm:$0xff] %v3424
    %vm3431 = vcmask 216064
    %3432 = vst.msk [vmem:[#allocation5 + $0x28] sm:$0xf] %vm3431, %v3425
    %v3433 = vld [vmem:[#allocation4] sm:$0xff]
    %v3434 = vld [vmem:[#allocation4 + $0x8] sm:$0xff]
    %v3435 = vld [vmem:[#allocation4 + $0x10] sm:$0xff]
    %v3436 = vld [vmem:[#allocation4 + $0x18] sm:$0xff]
    %v3437 = vld [vmem:[#allocation4 + $0x20] sm:$0xff]
    %v3438 = vld [vmem:[#allocation4 + $0x28] sm:$0xf]
    %3445 = vrot.lane.b32.xlu0 %v3433, 126
    %v3446 = vpop.permute.xlu0 %3445
    %3447 = vrot.lane.b32.xlu0 %v3434, 126
    %v3448 = vpop.permute.xlu0 %3447
    %3449 = vrot.lane.b32.xlu0 %v3435, 126
    %v3450 = vpop.permute.xlu0 %3449
    %3451 = vrot.lane.b32.xlu0 %v3436, 126
    %v3452 = vpop.permute.xlu0 %3451
    %3453 = vrot.lane.b32.xlu0 %v3437, 126
    %v3454 = vpop.permute.xlu0 %3453
    %3455 = vrot.lane.b32.xlu0 %v3438, 126
    %v3456 = vpop.permute.xlu0 %3455
    %v3457 = vrot.slane %v3446, 4
    %v3458 = vrot.slane %v3448, 4
    %v3459 = vrot.slane %v3450, 4
    %v3460 = vrot.slane %v3452, 4
    %v3461 = vrot.slane %v3454, 4
    %v3462 = vrot.slane %v3456, 4
    %v3463 = vsel %vm194, %v3457, %v3458
    %v3464 = vsel %vm292, %v3446, %v3463
    %v3465 = vsel %vm194, %v3458, %v3459
    %v3466 = vsel %vm292, %v3448, %v3465
    %v3467 = vsel %vm194, %v3459, %v3460
    %v3468 = vsel %vm292, %v3450, %v3467
    %v3469 = vsel %vm194, %v3460, %v3461
    %v3470 = vsel %vm292, %v3452, %v3469
    %v3471 = vsel %vm194, %v3461, %v3462
    %v3472 = vsel %vm292, %v3454, %v3471
    %3479 = vst [vmem:[#allocation5 + $0x2c] sm:$0xff] %v3464
    %3480 = vst [vmem:[#allocation5 + $0x34] sm:$0xff] %v3466
    %3481 = vst [vmem:[#allocation5 + $0x3c] sm:$0xff] %v3468
    %3482 = vst [vmem:[#allocation5 + $0x44] sm:$0xff] %v3470
    %3483 = vst [vmem:[#allocation5 + $0x4c] sm:$0xff] %v3472
    %3484 = vst.msk [vmem:[#allocation5 + $0x54] sm:$0xf] %vm3431, %v3456
    %v3485 = vld [vmem:[#allocation4] sm:$0xff]
    %v3486 = vld [vmem:[#allocation4 + $0x8] sm:$0xff]
    %v3487 = vld [vmem:[#allocation4 + $0x10] sm:$0xff]
    %v3488 = vld [vmem:[#allocation4 + $0x18] sm:$0xff]
    %v3489 = vld [vmem:[#allocation4 + $0x20] sm:$0xff]
    %v3490 = vld [vmem:[#allocation4 + $0x28] sm:$0xf]
    %3497 = vrot.lane.b32.xlu0 %v3485, 124
    %v3498 = vpop.permute.xlu0 %3497
    %3499 = vrot.lane.b32.xlu0 %v3486, 124
    %v3500 = vpop.permute.xlu0 %3499
    %3501 = vrot.lane.b32.xlu0 %v3487, 124
    %v3502 = vpop.permute.xlu0 %3501
    %3503 = vrot.lane.b32.xlu0 %v3488, 124
    %v3504 = vpop.permute.xlu0 %3503
    %3505 = vrot.lane.b32.xlu0 %v3489, 124
    %v3506 = vpop.permute.xlu0 %3505
    %3507 = vrot.lane.b32.xlu0 %v3490, 124
    %v3508 = vpop.permute.xlu0 %3507
    %v3509 = vrot.slane %v3498, 4
    %v3510 = vrot.slane %v3500, 4
    %v3511 = vrot.slane %v3502, 4
    %v3512 = vrot.slane %v3504, 4
    %v3513 = vrot.slane %v3506, 4
    %v3514 = vrot.slane %v3508, 4
    %v3515 = vsel %vm194, %v3509, %v3510
    %v3516 = vsel %vm478, %v3498, %v3515
    %v3517 = vsel %vm194, %v3510, %v3511
    %v3518 = vsel %vm478, %v3500, %v3517
    %v3519 = vsel %vm194, %v3511, %v3512
    %v3520 = vsel %vm478, %v3502, %v3519
    %v3521 = vsel %vm194, %v3512, %v3513
    %v3522 = vsel %vm478, %v3504, %v3521
    %v3523 = vsel %vm194, %v3513, %v3514
    %v3524 = vsel %vm478, %v3506, %v3523
    %3531 = vst [vmem:[#allocation5 + $0x58] sm:$0xff] %v3516
    %3532 = vst [vmem:[#allocation5 + $0x60] sm:$0xff] %v3518
    %3533 = vst [vmem:[#allocation5 + $0x68] sm:$0xff] %v3520
    %3534 = vst [vmem:[#allocation5 + $0x70] sm:$0xff] %v3522
    %3535 = vst [vmem:[#allocation5 + $0x78] sm:$0xff] %v3524
    %3536 = vst.msk [vmem:[#allocation5 + $0x80] sm:$0xf] %vm3431, %v3508
    %v3537 = vld [vmem:[#allocation4] sm:$0xff]
    %v3538 = vld [vmem:[#allocation4 + $0x8] sm:$0xff]
    %v3539 = vld [vmem:[#allocation4 + $0x10] sm:$0xff]
    %v3540 = vld [vmem:[#allocation4 + $0x18] sm:$0xff]
    %v3541 = vld [vmem:[#allocation4 + $0x20] sm:$0xff]
    %v3542 = vld [vmem:[#allocation4 + $0x28] sm:$0xf]
    %3549 = vrot.lane.b32.xlu0 %v3537, 72
    %v3550 = vpop.permute.xlu0 %3549
    %3551 = vrot.lane.b32.xlu0 %v3538, 72
    %v3552 = vpop.permute.xlu0 %3551
    %3553 = vrot.lane.b32.xlu0 %v3539, 72
    %v3554 = vpop.permute.xlu0 %3553
    %3555 = vrot.lane.b32.xlu0 %v3540, 72
    %v3556 = vpop.permute.xlu0 %3555
    %3557 = vrot.lane.b32.xlu0 %v3541, 72
    %v3558 = vpop.permute.xlu0 %3557
    %3559 = vrot.lane.b32.xlu0 %v3542, 72
    %v3560 = vpop.permute.xlu0 %3559
    %v3561 = vrot.slane %v3550, 4
    %v3562 = vrot.slane %v3552, 4
    %v3563 = vrot.slane %v3554, 4
    %v3564 = vrot.slane %v3556, 4
    %v3565 = vrot.slane %v3558, 4
    %v3566 = vrot.slane %v3560, 4
    %v3567 = vsel %vm194, %v3561, %v3562
    %v3568 = vsel %vm1036, %v3550, %v3567
    %v3569 = vsel %vm194, %v3562, %v3563
    %v3570 = vsel %vm1036, %v3552, %v3569
    %v3571 = vsel %vm194, %v3563, %v3564
    %v3572 = vsel %vm1036, %v3554, %v3571
    %v3573 = vsel %vm194, %v3564, %v3565
    %v3574 = vsel %vm1036, %v3556, %v3573
    %v3575 = vsel %vm194, %v3565, %v3566
    %v3576 = vsel %vm1036, %v3558, %v3575
    %3583 = vst [vmem:[#allocation5 + $0x84] sm:$0xff] %v3568
    %3584 = vst [vmem:[#allocation5 + $0x8c] sm:$0xff] %v3570
    %3585 = vst [vmem:[#allocation5 + $0x94] sm:$0xff] %v3572
    %3586 = vst [vmem:[#allocation5 + $0x9c] sm:$0xff] %v3574
    %3587 = vst [vmem:[#allocation5 + $0xa4] sm:$0xff] %v3576
    %3588 = vst.msk [vmem:[#allocation5 + $0xac] sm:$0xf] %vm3431, %v3560
    %v3589 = vld [vmem:[#allocation4] sm:$0xff]
    %v3590 = vld [vmem:[#allocation4 + $0x8] sm:$0xff]
    %v3591 = vld [vmem:[#allocation4 + $0x10] sm:$0xff]
    %v3592 = vld [vmem:[#allocation4 + $0x18] sm:$0xff]
    %v3593 = vld [vmem:[#allocation4 + $0x20] sm:$0xff]
    %v3594 = vld [vmem:[#allocation4 + $0x28] sm:$0xf]
    %3601 = vrot.lane.b32.xlu0 %v3589, 70
    %v3602 = vpop.permute.xlu0 %3601
    %3603 = vrot.lane.b32.xlu0 %v3590, 70
    %v3604 = vpop.permute.xlu0 %3603
    %3605 = vrot.lane.b32.xlu0 %v3591, 70
    %v3606 = vpop.permute.xlu0 %3605
    %3607 = vrot.lane.b32.xlu0 %v3592, 70
    %v3608 = vpop.permute.xlu0 %3607
    %3609 = vrot.lane.b32.xlu0 %v3593, 70
    %v3610 = vpop.permute.xlu0 %3609
    %3611 = vrot.lane.b32.xlu0 %v3594, 70
    %v3612 = vpop.permute.xlu0 %3611
    %v3613 = vrot.slane %v3602, 4
    %v3614 = vrot.slane %v3604, 4
    %v3615 = vrot.slane %v3606, 4
    %v3616 = vrot.slane %v3608, 4
    %v3617 = vrot.slane %v3610, 4
    %v3618 = vrot.slane %v3612, 4
    %v3619 = vsel %vm194, %v3613, %v3614
    %v3620 = vsel %vm1222, %v3602, %v3619
    %v3621 = vsel %vm194, %v3614, %v3615
    %v3622 = vsel %vm1222, %v3604, %v3621
    %v3623 = vsel %vm194, %v3615, %v3616
    %v3624 = vsel %vm1222, %v3606, %v3623
    %v3625 = vsel %vm194, %v3616, %v3617
    %v3626 = vsel %vm1222, %v3608, %v3625
    %v3627 = vsel %vm194, %v3617, %v3618
    %v3628 = vsel %vm1222, %v3610, %v3627
    %3635 = vst [vmem:[#allocation5 + $0xb0] sm:$0xff] %v3620
    %3636 = vst [vmem:[#allocation5 + $0xb8] sm:$0xff] %v3622
    %3637 = vst [vmem:[#allocation5 + $0xc0] sm:$0xff] %v3624
    %3638 = vst [vmem:[#allocation5 + $0xc8] sm:$0xff] %v3626
    %3639 = vst [vmem:[#allocation5 + $0xd0] sm:$0xff] %v3628
    %3640 = vst.msk [vmem:[#allocation5 + $0xd8] sm:$0xf] %vm3431, %v3612
    %v3641 = vld [vmem:[#allocation4] sm:$0xff]
    %v3642 = vld [vmem:[#allocation4 + $0x8] sm:$0xff]
    %v3643 = vld [vmem:[#allocation4 + $0x10] sm:$0xff]
    %v3644 = vld [vmem:[#allocation4 + $0x18] sm:$0xff]
    %v3645 = vld [vmem:[#allocation4 + $0x20] sm:$0xff]
    %v3646 = vld [vmem:[#allocation4 + $0x28] sm:$0xf]
    %3653 = vrot.lane.b32.xlu0 %v3641, 68
    %v3654 = vpop.permute.xlu0 %3653
    %3655 = vrot.lane.b32.xlu0 %v3642, 68
    %v3656 = vpop.permute.xlu0 %3655
    %3657 = vrot.lane.b32.xlu0 %v3643, 68
    %v3658 = vpop.permute.xlu0 %3657
    %3659 = vrot.lane.b32.xlu0 %v3644, 68
    %v3660 = vpop.permute.xlu0 %3659
    %3661 = vrot.lane.b32.xlu0 %v3645, 68
    %v3662 = vpop.permute.xlu0 %3661
    %3663 = vrot.lane.b32.xlu0 %v3646, 68
    %v3664 = vpop.permute.xlu0 %3663
    %v3665 = vrot.slane %v3654, 4
    %v3666 = vrot.slane %v3656, 4
    %v3667 = vrot.slane %v3658, 4
    %v3668 = vrot.slane %v3660, 4
    %v3669 = vrot.slane %v3662, 4
    %v3670 = vrot.slane %v3664, 4
    %v3671 = vsel %vm194, %v3665, %v3666
    %v3672 = vsel %vm1408, %v3654, %v3671
    %v3673 = vsel %vm194, %v3666, %v3667
    %v3674 = vsel %vm1408, %v3656, %v3673
    %v3675 = vsel %vm194, %v3667, %v3668
    %v3676 = vsel %vm1408, %v3658, %v3675
    %v3677 = vsel %vm194, %v3668, %v3669
    %v3678 = vsel %vm1408, %v3660, %v3677
    %v3679 = vsel %vm194, %v3669, %v3670
    %v3680 = vsel %vm1408, %v3662, %v3679
    %3687 = vst [vmem:[#allocation5 + $0xdc] sm:$0xff] %v3672
    %3688 = vst [vmem:[#allocation5 + $0xe4] sm:$0xff] %v3674
    %3689 = vst [vmem:[#allocation5 + $0xec] sm:$0xff] %v3676
    %3690 = vst [vmem:[#allocation5 + $0xf4] sm:$0xff] %v3678
    %3691 = vst [vmem:[#allocation5 + $0xfc] sm:$0xff] %v3680
    %3692 = vst.msk [vmem:[#allocation5 + $0x104] sm:$0xf] %vm3431, %v3664
    %v3693 = vld [vmem:[#allocation4] sm:$0xff]
    %v3694 = vld [vmem:[#allocation4 + $0x8] sm:$0xff]
    %v3695 = vld [vmem:[#allocation4 + $0x10] sm:$0xff]
    %v3696 = vld [vmem:[#allocation4 + $0x18] sm:$0xff]
    %v3697 = vld [vmem:[#allocation4 + $0x20] sm:$0xff]
    %v3698 = vld [vmem:[#allocation4 + $0x28] sm:$0xff]
    %3705 = vrot.lane.b32.xlu0 %v3693, 16
    %v3706 = vpop.permute.xlu0 %3705
    %3707 = vrot.lane.b32.xlu0 %v3694, 16
    %v3708 = vpop.permute.xlu0 %3707
    %3709 = vrot.lane.b32.xlu0 %v3695, 16
    %v3710 = vpop.permute.xlu0 %3709
    %3711 = vrot.lane.b32.xlu0 %v3696, 16
    %v3712 = vpop.permute.xlu0 %3711
    %3713 = vrot.lane.b32.xlu0 %v3697, 16
    %v3714 = vpop.permute.xlu0 %3713
    %3715 = vrot.lane.b32.xlu0 %v3698, 16
    %v3716 = vpop.permute.xlu0 %3715
    %v3717 = vrot.slane %v3706, 4
    %v3718 = vrot.slane %v3708, 4
    %v3719 = vrot.slane %v3710, 4
    %v3720 = vrot.slane %v3712, 4
    %v3721 = vrot.slane %v3714, 4
    %v3722 = vrot.slane %v3716, 4
    %v3723 = vsel %vm194, %v3717, %v3718
    %v3724 = vsel %vm2032, %v3706, %v3723
    %v3725 = vsel %vm194, %v3718, %v3719
    %v3726 = vsel %vm2032, %v3708, %v3725
    %v3727 = vsel %vm194, %v3719, %v3720
    %v3728 = vsel %vm2032, %v3710, %v3727
    %v3729 = vsel %vm194, %v3720, %v3721
    %v3730 = vsel %vm2032, %v3712, %v3729
    %v3731 = vsel %vm194, %v3721, %v3722
    %v3732 = vsel %vm2032, %v3714, %v3731
    %v3733 = vsel %vm2032, %v3716, %v3722
    %3740 = vst [vmem:[#allocation5 + $0x108] sm:$0xff] %v3724
    %3741 = vst [vmem:[#allocation5 + $0x110] sm:$0xff] %v3726
    %3742 = vst [vmem:[#allocation5 + $0x118] sm:$0xff] %v3728
    %3743 = vst [vmem:[#allocation5 + $0x120] sm:$0xff] %v3730
    %3744 = vst [vmem:[#allocation5 + $0x128] sm:$0xff] %v3732
    %3745 = vst.msk [vmem:[#allocation5 + $0x130] sm:$0xf] %vm3431, %v3733
    %v3746 = vld [vmem:[#allocation4] sm:$0xff]
    %v3747 = vld [vmem:[#allocation4 + $0x8] sm:$0xff]
    %v3748 = vld [vmem:[#allocation4 + $0x10] sm:$0xff]
    %v3749 = vld [vmem:[#allocation4 + $0x18] sm:$0xff]
    %v3750 = vld [vmem:[#allocation4 + $0x20] sm:$0xff]
    %v3751 = vld [vmem:[#allocation4 + $0x28] sm:$0xff]
    %3758 = vrot.lane.b32.xlu0 %v3746, 14
    %v3759 = vpop.permute.xlu0 %3758
    %3760 = vrot.lane.b32.xlu0 %v3747, 14
    %v3761 = vpop.permute.xlu0 %3760
    %3762 = vrot.lane.b32.xlu0 %v3748, 14
    %v3763 = vpop.permute.xlu0 %3762
    %3764 = vrot.lane.b32.xlu0 %v3749, 14
    %v3765 = vpop.permute.xlu0 %3764
    %3766 = vrot.lane.b32.xlu0 %v3750, 14
    %v3767 = vpop.permute.xlu0 %3766
    %3768 = vrot.lane.b32.xlu0 %v3751, 14
    %v3769 = vpop.permute.xlu0 %3768
    %v3770 = vrot.slane %v3759, 4
    %v3771 = vrot.slane %v3761, 4
    %v3772 = vrot.slane %v3763, 4
    %v3773 = vrot.slane %v3765, 4
    %v3774 = vrot.slane %v3767, 4
    %v3775 = vrot.slane %v3769, 4
    %v3776 = vsel %vm194, %v3770, %v3771
    %v3777 = vsel %vm2245, %v3759, %v3776
    %v3778 = vsel %vm194, %v3771, %v3772
    %v3779 = vsel %vm2245, %v3761, %v3778
    %v3780 = vsel %vm194, %v3772, %v3773
    %v3781 = vsel %vm2245, %v3763, %v3780
    %v3782 = vsel %vm194, %v3773, %v3774
    %v3783 = vsel %vm2245, %v3765, %v3782
    %v3784 = vsel %vm194, %v3774, %v3775
    %v3785 = vsel %vm2245, %v3767, %v3784
    %v3786 = vsel %vm2245, %v3769, %v3775
    %3793 = vst [vmem:[#allocation5 + $0x134] sm:$0xff] %v3777
    %3794 = vst [vmem:[#allocation5 + $0x13c] sm:$0xff] %v3779
    %3795 = vst [vmem:[#allocation5 + $0x144] sm:$0xff] %v3781
    %3796 = vst [vmem:[#allocation5 + $0x14c] sm:$0xff] %v3783
    %3797 = vst [vmem:[#allocation5 + $0x154] sm:$0xff] %v3785
    %3798 = vst.msk [vmem:[#allocation5 + $0x15c] sm:$0xf] %vm3431, %v3786
    %v3799 = vld [vmem:[#allocation4] sm:$0xff]
    %v3800 = vld [vmem:[#allocation4 + $0x8] sm:$0xff]
    %v3801 = vld [vmem:[#allocation4 + $0x10] sm:$0xff]
    %v3802 = vld [vmem:[#allocation4 + $0x18] sm:$0xff]
    %v3803 = vld [vmem:[#allocation4 + $0x20] sm:$0xff]
    %v3804 = vld [vmem:[#allocation4 + $0x28] sm:$0xff]
    %3811 = vrot.lane.b32.xlu0 %v3799, 12
    %v3812 = vpop.permute.xlu0 %3811
    %3813 = vrot.lane.b32.xlu0 %v3800, 12
    %v3814 = vpop.permute.xlu0 %3813
    %3815 = vrot.lane.b32.xlu0 %v3801, 12
    %v3816 = vpop.permute.xlu0 %3815
    %3817 = vrot.lane.b32.xlu0 %v3802, 12
    %v3818 = vpop.permute.xlu0 %3817
    %3819 = vrot.lane.b32.xlu0 %v3803, 12
    %v3820 = vpop.permute.xlu0 %3819
    %3821 = vrot.lane.b32.xlu0 %v3804, 12
    %v3822 = vpop.permute.xlu0 %3821
    %v3823 = vrot.slane %v3812, 4
    %v3824 = vrot.slane %v3814, 4
    %v3825 = vrot.slane %v3816, 4
    %v3826 = vrot.slane %v3818, 4
    %v3827 = vrot.slane %v3820, 4
    %v3828 = vrot.slane %v3822, 4
    %v3829 = vsel %vm194, %v3823, %v3824
    %v3830 = vsel %vm2458, %v3812, %v3829
    %v3831 = vsel %vm194, %v3824, %v3825
    %v3832 = vsel %vm2458, %v3814, %v3831
    %v3833 = vsel %vm194, %v3825, %v3826
    %v3834 = vsel %vm2458, %v3816, %v3833
    %v3835 = vsel %vm194, %v3826, %v3827
    %v3836 = vsel %vm2458, %v3818, %v3835
    %v3837 = vsel %vm194, %v3827, %v3828
    %v3838 = vsel %vm2458, %v3820, %v3837
    %v3839 = vsel %vm2458, %v3822, %v3828
    %3846 = vst [vmem:[#allocation5 + $0x160] sm:$0xff] %v3830
    %3847 = vst [vmem:[#allocation5 + $0x168] sm:$0xff] %v3832
    %3848 = vst [vmem:[#allocation5 + $0x170] sm:$0xff] %v3834
    %3849 = vst [vmem:[#allocation5 + $0x178] sm:$0xff] %v3836
    %3850 = vst [vmem:[#allocation5 + $0x180] sm:$0xff] %v3838
    %3851 = vst.msk [vmem:[#allocation5 + $0x188] sm:$0xf] %vm3431, %v3839
    %v3852 = vld [vmem:[%s4] sm:$0xf]
    %v3853 = vld [vmem:[%s4 + $0x4] sm:$0xf]
    %v3854 = vld [vmem:[#allocation5] sm:$0xff]
    %v3855 = vld [vmem:[#allocation5 + $0x8] sm:$0xff]
    %v3856 = vld [vmem:[#allocation5 + $0x10] sm:$0xff]
    %v3857 = vld [vmem:[#allocation5 + $0x18] sm:$0xff]
    %v3858 = vld [vmem:[#allocation5 + $0x20] sm:$0xff]
    %v3859 = vld [vmem:[#allocation5 + $0x28] sm:$0xf]
    %v3860 = vld [vmem:[#allocation5 + $0x2c] sm:$0xff]
    %v3861 = vld [vmem:[#allocation5 + $0x34] sm:$0xff]
    %v3862 = vld [vmem:[#allocation5 + $0x3c] sm:$0xff]
    %v3863 = vld [vmem:[#allocation5 + $0x44] sm:$0xff]
    %v3864 = vld [vmem:[#allocation5 + $0x4c] sm:$0xff]
    %v3865 = vld [vmem:[#allocation5 + $0x54] sm:$0xf]
    %v3866 = vld [vmem:[#allocation5 + $0x58] sm:$0xff]
    %v3867 = vld [vmem:[#allocation5 + $0x60] sm:$0xff]
    %v3868 = vld [vmem:[#allocation5 + $0x68] sm:$0xff]
    %v3869 = vld [vmem:[#allocation5 + $0x70] sm:$0xff]
    %v3870 = vld [vmem:[#allocation5 + $0x78] sm:$0xff]
    %v3871 = vld [vmem:[#allocation5 + $0x80] sm:$0xf]
    %v3872 = vld [vmem:[#allocation5 + $0x84] sm:$0xff]
    %v3873 = vld [vmem:[#allocation5 + $0x8c] sm:$0xff]
    %v3874 = vld [vmem:[#allocation5 + $0x94] sm:$0xff]
    %v3875 = vld [vmem:[#allocation5 + $0x9c] sm:$0xff]
    %v3876 = vld [vmem:[#allocation5 + $0xa4] sm:$0xff]
    %v3877 = vld [vmem:[#allocation5 + $0xac] sm:$0xf]
    %v3878 = vld [vmem:[#allocation5 + $0xb0] sm:$0xff]
    %v3879 = vld [vmem:[#allocation5 + $0xb8] sm:$0xff]
    %v3880 = vld [vmem:[#allocation5 + $0xc0] sm:$0xff]
    %v3881 = vld [vmem:[#allocation5 + $0xc8] sm:$0xff]
    %v3882 = vld [vmem:[#allocation5 + $0xd0] sm:$0xff]
    %v3883 = vld [vmem:[#allocation5 + $0xd8] sm:$0xf]
    %v3884 = vld [vmem:[#allocation5 + $0xdc] sm:$0xff]
    %v3885 = vld [vmem:[#allocation5 + $0xe4] sm:$0xff]
    %v3886 = vld [vmem:[#allocation5 + $0xec] sm:$0xff]
    %v3887 = vld [vmem:[#allocation5 + $0xf4] sm:$0xff]
    %v3888 = vld [vmem:[#allocation5 + $0xfc] sm:$0xff]
    %v3889 = vld [vmem:[#allocation5 + $0x104] sm:$0xf]
    %v3890 = vld [vmem:[#allocation5 + $0x108] sm:$0xff]
    %v3891 = vld [vmem:[#allocation5 + $0x110] sm:$0xff]
    %v3892 = vld [vmem:[#allocation5 + $0x118] sm:$0xff]
    %v3893 = vld [vmem:[#allocation5 + $0x120] sm:$0xff]
    %v3894 = vld [vmem:[#allocation5 + $0x128] sm:$0xff]
    %v3895 = vld [vmem:[#allocation5 + $0x130] sm:$0xf]
    %v3896 = vld [vmem:[#allocation5 + $0x134] sm:$0xff]
    %v3897 = vld [vmem:[#allocation5 + $0x13c] sm:$0xff]
    %v3898 = vld [vmem:[#allocation5 + $0x144] sm:$0xff]
    %v3899 = vld [vmem:[#allocation5 + $0x14c] sm:$0xff]
    %v3900 = vld [vmem:[#allocation5 + $0x154] sm:$0xff]
    %v3901 = vld [vmem:[#allocation5 + $0x15c] sm:$0xf]
    %v3902 = vld [vmem:[#allocation5 + $0x160] sm:$0xff]
    %v3903 = vld [vmem:[#allocation5 + $0x168] sm:$0xff]
    %v3904 = vld [vmem:[#allocation5 + $0x170] sm:$0xff]
    %v3905 = vld [vmem:[#allocation5 + $0x178] sm:$0xff]
    %v3906 = vld [vmem:[#allocation5 + $0x180] sm:$0xff]
    %v3907 = vld [vmem:[#allocation5 + $0x188] sm:$0xf]
    %v3908 = vld [vmem:[%s5] sm:$0xff]
    %v3909 = vld [vmem:[%s5 + $0x8] sm:$0xff]
    %3911 = vset.pattern.permute.xlu0 0
    %3912 = vperm.xlu0 %3911, %v3908
    %v3913 = vpop.permute.xlu0 %3912
    %3916 = vset.pattern.permute.xlu0 0
    %3917 = vperm.xlu0 %3916, %v3909
    %v3918 = vpop.permute.xlu0 %3917
    %v3922 = vunpack.c.l.b16 %v3852
    %v3923 = vunpack.c.l.b16 %v3853
    %v3924 = vpack.c.b16 %v3923, %v3922
    %v3979 = vunpack.c.l.b16 %v3854
    %v3980 = vunpack.c.h.b16 %v3854
    %v3981 = vunpack.c.l.b16 %v3855
    %v3982 = vunpack.c.h.b16 %v3855
    %v3983 = vunpack.c.l.b16 %v3856
    %v3984 = vunpack.c.h.b16 %v3856
    %v3985 = vunpack.c.l.b16 %v3857
    %v3986 = vunpack.c.h.b16 %v3857
    %v3987 = vunpack.c.l.b16 %v3858
    %v3988 = vunpack.c.h.b16 %v3858
    %v3989 = vunpack.c.l.b16 %v3859
    %v3990 = vunpack.c.l.b16 %v3860
    %v3991 = vunpack.c.h.b16 %v3860
    %v3992 = vunpack.c.l.b16 %v3861
    %v3993 = vunpack.c.h.b16 %v3861
    %v3994 = vunpack.c.l.b16 %v3862
    %v3995 = vunpack.c.h.b16 %v3862
    %v3996 = vunpack.c.l.b16 %v3863
    %v3997 = vunpack.c.h.b16 %v3863
    %v3998 = vunpack.c.l.b16 %v3864
    %v3999 = vunpack.c.h.b16 %v3864
    %v4000 = vunpack.c.l.b16 %v3865
    %v4001 = vunpack.c.l.b16 %v3866
    %v4002 = vunpack.c.h.b16 %v3866
    %v4003 = vunpack.c.l.b16 %v3867
    %v4004 = vunpack.c.h.b16 %v3867
    %v4005 = vunpack.c.l.b16 %v3868
    %v4006 = vunpack.c.h.b16 %v3868
    %v4007 = vunpack.c.l.b16 %v3869
    %v4008 = vunpack.c.h.b16 %v3869
    %v4009 = vunpack.c.l.b16 %v3870
    %v4010 = vunpack.c.h.b16 %v3870
    %v4011 = vunpack.c.l.b16 %v3871
    %v4012 = vunpack.c.l.b16 %v3872
    %v4013 = vunpack.c.h.b16 %v3872
    %v4014 = vunpack.c.l.b16 %v3873
    %v4015 = vunpack.c.h.b16 %v3873
    %v4016 = vunpack.c.l.b16 %v3874
    %v4017 = vunpack.c.h.b16 %v3874
    %v4018 = vunpack.c.l.b16 %v3875
    %v4019 = vunpack.c.h.b16 %v3875
    %v4020 = vunpack.c.l.b16 %v3876
    %v4021 = vunpack.c.h.b16 %v3876
    %v4022 = vunpack.c.l.b16 %v3877
    %v4023 = vunpack.c.l.b16 %v3878
    %v4024 = vunpack.c.h.b16 %v3878
    %v4025 = vunpack.c.l.b16 %v3879
    %v4026 = vunpack.c.h.b16 %v3879
    %v4027 = vunpack.c.l.b16 %v3880
    %v4028 = vunpack.c.h.b16 %v3880
    %v4029 = vunpack.c.l.b16 %v3881
    %v4030 = vunpack.c.h.b16 %v3881
    %v4031 = vunpack.c.l.b16 %v3882
    %v4032 = vunpack.c.h.b16 %v3882
    %v4033 = vunpack.c.l.b16 %v3883
    %v4034 = vunpack.c.l.b16 %v3884
    %v4035 = vunpack.c.h.b16 %v3884
    %v4036 = vunpack.c.l.b16 %v3885
    %v4037 = vunpack.c.h.b16 %v3885
    %v4038 = vunpack.c.l.b16 %v3886
    %v4039 = vunpack.c.h.b16 %v3886
    %v4040 = vunpack.c.l.b16 %v3887
    %v4041 = vunpack.c.h.b16 %v3887
    %v4042 = vunpack.c.l.b16 %v3888
    %v4043 = vunpack.c.h.b16 %v3888
    %v4044 = vunpack.c.l.b16 %v3889
    %v4045 = vunpack.c.l.b16 %v3890
    %v4046 = vunpack.c.h.b16 %v3890
    %v4047 = vunpack.c.l.b16 %v3891
    %v4048 = vunpack.c.h.b16 %v3891
    %v4049 = vunpack.c.l.b16 %v3892
    %v4050 = vunpack.c.h.b16 %v3892
    %v4051 = vunpack.c.l.b16 %v3893
    %v4052 = vunpack.c.h.b16 %v3893
    %v4053 = vunpack.c.l.b16 %v3894
    %v4054 = vunpack.c.h.b16 %v3894
    %v4055 = vunpack.c.l.b16 %v3895
    %v4056 = vunpack.c.l.b16 %v3896
    %v4057 = vunpack.c.h.b16 %v3896
    %v4058 = vunpack.c.l.b16 %v3897
    %v4059 = vunpack.c.h.b16 %v3897
    %v4060 = vunpack.c.l.b16 %v3898
    %v4061 = vunpack.c.h.b16 %v3898
    %v4062 = vunpack.c.l.b16 %v3899
    %v4063 = vunpack.c.h.b16 %v3899
    %v4064 = vunpack.c.l.b16 %v3900
    %v4065 = vunpack.c.h.b16 %v3900
    %v4066 = vunpack.c.l.b16 %v3901
    %v4067 = vunpack.c.l.b16 %v3902
    %v4068 = vunpack.c.h.b16 %v3902
    %v4069 = vunpack.c.l.b16 %v3903
    %v4070 = vunpack.c.h.b16 %v3903
    %v4071 = vunpack.c.l.b16 %v3904
    %v4072 = vunpack.c.h.b16 %v3904
    %v4073 = vunpack.c.l.b16 %v3905
    %v4074 = vunpack.c.h.b16 %v3905
    %v4075 = vunpack.c.l.b16 %v3906
    %v4076 = vunpack.c.h.b16 %v3906
    %v4077 = vunpack.c.l.b16 %v3907
    %v4078 = vpack.c.b16 %v3990, %v3979
    %v4079 = vpack.c.b16 %v3991, %v3980
    %v4080 = vpack.c.b16 %v3992, %v3981
    %v4081 = vpack.c.b16 %v3993, %v3982
    %v4082 = vpack.c.b16 %v3994, %v3983
    %v4083 = vpack.c.b16 %v3995, %v3984
    %v4084 = vpack.c.b16 %v3996, %v3985
    %v4085 = vpack.c.b16 %v3997, %v3986
    %v4086 = vpack.c.b16 %v3998, %v3987
    %v4087 = vpack.c.b16 %v3999, %v3988
    %v4088 = vpack.c.b16 %v4000, %v3989
    %v4089 = vpack.c.b16 %v4012, %v4001
    %v4090 = vpack.c.b16 %v4013, %v4002
    %v4091 = vpack.c.b16 %v4014, %v4003
    %v4092 = vpack.c.b16 %v4015, %v4004
    %v4093 = vpack.c.b16 %v4016, %v4005
    %v4094 = vpack.c.b16 %v4017, %v4006
    %v4095 = vpack.c.b16 %v4018, %v4007
    %v4096 = vpack.c.b16 %v4019, %v4008
    %v4097 = vpack.c.b16 %v4020, %v4009
    %v4098 = vpack.c.b16 %v4021, %v4010
    %v4099 = vpack.c.b16 %v4022, %v4011
    %v4100 = vpack.c.b16 %v4034, %v4023
    %v4101 = vpack.c.b16 %v4035, %v4024
    %v4102 = vpack.c.b16 %v4036, %v4025
    %v4103 = vpack.c.b16 %v4037, %v4026
    %v4104 = vpack.c.b16 %v4038, %v4027
    %v4105 = vpack.c.b16 %v4039, %v4028
    %v4106 = vpack.c.b16 %v4040, %v4029
    %v4107 = vpack.c.b16 %v4041, %v4030
    %v4108 = vpack.c.b16 %v4042, %v4031
    %v4109 = vpack.c.b16 %v4043, %v4032
    %v4110 = vpack.c.b16 %v4044, %v4033
    %v4111 = vpack.c.b16 %v4056, %v4045
    %v4112 = vpack.c.b16 %v4057, %v4046
    %v4113 = vpack.c.b16 %v4058, %v4047
    %v4114 = vpack.c.b16 %v4059, %v4048
    %v4115 = vpack.c.b16 %v4060, %v4049
    %v4116 = vpack.c.b16 %v4061, %v4050
    %v4117 = vpack.c.b16 %v4062, %v4051
    %v4118 = vpack.c.b16 %v4063, %v4052
    %v4119 = vpack.c.b16 %v4064, %v4053
    %v4120 = vpack.c.b16 %v4065, %v4054
    %v4121 = vpack.c.b16 %v4066, %v4055
    %v4122 = vpack.c.b16 %v4067, %v4067
    %v4123 = vpack.c.b16 %v4068, %v4068
    %v4124 = vpack.c.b16 %v4069, %v4069
    %v4125 = vpack.c.b16 %v4070, %v4070
    %v4126 = vpack.c.b16 %v4071, %v4071
    %v4127 = vpack.c.b16 %v4072, %v4072
    %v4128 = vpack.c.b16 %v4073, %v4073
    %v4129 = vpack.c.b16 %v4074, %v4074
    %v4130 = vpack.c.b16 %v4075, %v4075
    %v4131 = vpack.c.b16 %v4076, %v4076
    %v4132 = vpack.c.b16 %v4077, %v4077
    %vm4177 = vcmask 588800
    %v4179 = vsel %vm4177, %v3924, 0
    %v4182 = vsel %vm3308, %v4122, 0
    %v4185 = vsel %vm3308, %v4123, 0
    %v4188 = vsel %vm3308, %v4124, 0
    %v4191 = vsel %vm3308, %v4125, 0
    %v4194 = vsel %vm3308, %v4126, 0
    %v4197 = vsel %vm3308, %v4127, 0
    %v4200 = vsel %vm3308, %v4128, 0
    %v4203 = vsel %vm3308, %v4129, 0
    %v4206 = vsel %vm3308, %v4130, 0
    %v4209 = vsel %vm3308, %v4131, 0
    %v4212 = vsel %vm3308, %v4132, 0
    %4214 = vmatprep.subr.bf16.mxu0 %v4079
    %4215 = vmatpush1.bf16.msra.mxu0 %v4078
    %4216 = vmatprep.subr.bf16.mxu0 %v4090
    %4217 = vmatpush1.bf16.msra.mxu0 %v4089
    %4218 = vmatprep.subr.bf16.mxu0 %v4101
    %4219 = vmatpush1.bf16.msra.mxu0 %v4100
    %4220 = vmatprep.subr.bf16.mxu0 %v4112
    %4221 = vmatpush1.bf16.msra.mxu0 %v4111
    %4222 = vmatprep.subr.bf16.mxu0 %v4185
    %4223 = vmatpush1.bf16.msra.mxu0 %v4182
    %4224 = vmatprep.subr.bf16.mxu0 0
    %4225 = vmatpush1.bf16.msra.mxu0 0
    %4226 = vmatprep.subr.bf16.mxu0 0
    %4227 = vmatpush1.bf16.msra.mxu0 0
    %4228 = vmatprep.subr.bf16.mxu0 0
    %4229 = vmatpush1.bf16.msra.mxu0 0
    %4230 = vmatprep.subr.bf16.mxu0 0
    %4231 = vmatpush1.bf16.msra.mxu0 0
    %4232 = vmatprep.subr.bf16.mxu0 0
    %4233 = vmatpush1.bf16.msra.mxu0 0
    %4234 = vmatprep.subr.bf16.mxu0 0
    %4235 = vmatpush1.bf16.msra.mxu0 0
    %4236 = vmatprep.subr.bf16.mxu0 0
    %4237 = vmatpush1.bf16.msra.mxu0 0
    %4238 = vmatprep.subr.bf16.mxu0 0
    %4239 = vmatpush1.bf16.msra.mxu0 0
    %4240 = vmatprep.subr.bf16.mxu0 0
    %4241 = vmatpush1.bf16.msra.mxu0 0
    %4242 = vmatprep.subr.bf16.mxu0 0
    %4243 = vmatpush1.bf16.msra.mxu0 0
    %4244 = vmatprep.subr.bf16.mxu0 0
    %4245 = vmatpush1.bf16.msra.mxu0 0
    %4246 = vmatprep.mubr.bf16.mxu0 0
    %4247 = vmatmul.mubr.bf16.gmra.mrb[0].mxu0 %v4179
    %v4248 = vpop.f32.mrb[0].mxu0
    %v4249 = vadd.f32 %v3913, %v4248
    %v4250 = vpop.f32.mrb[0].mxu0
    %v4251 = vadd.f32 %v3913, %v4250
    %v4252 = vpop.f32.mrb[0].mxu0
    %v4253 = vadd.f32 %v3918, %v4252
    %v4254 = vpop.f32.mrb[0].mxu0
    %v4255 = vadd.f32 %v3918, %v4254
    %4256 = vdwg.mxu0
    %4257 = vmatprep.subr.bf16.mxu0 %v4081
    %4258 = vmatpush1.bf16.msra.mxu0 %v4080
    %4259 = vmatprep.subr.bf16.mxu0 %v4092
    %4260 = vmatpush1.bf16.msra.mxu0 %v4091
    %4261 = vmatprep.subr.bf16.mxu0 %v4103
    %4262 = vmatpush1.bf16.msra.mxu0 %v4102
    %4263 = vmatprep.subr.bf16.mxu0 %v4114
    %4264 = vmatpush1.bf16.msra.mxu0 %v4113
    %4265 = vmatprep.subr.bf16.mxu0 %v4191
    %4266 = vmatpush1.bf16.msra.mxu0 %v4188
    %4267 = vmatprep.subr.bf16.mxu0 0
    %4268 = vmatpush1.bf16.msra.mxu0 0
    %4269 = vmatprep.subr.bf16.mxu0 0
    %4270 = vmatpush1.bf16.msra.mxu0 0
    %4271 = vmatprep.subr.bf16.mxu0 0
    %4272 = vmatpush1.bf16.msra.mxu0 0
    %4273 = vmatprep.subr.bf16.mxu0 0
    %4274 = vmatpush1.bf16.msra.mxu0 0
    %4275 = vmatprep.subr.bf16.mxu0 0
    %4276 = vmatpush1.bf16.msra.mxu0 0
    %4277 = vmatprep.subr.bf16.mxu0 0
    %4278 = vmatpush1.bf16.msra.mxu0 0
    %4279 = vmatprep.subr.bf16.mxu0 0
    %4280 = vmatpush1.bf16.msra.mxu0 0
    %4281 = vmatprep.subr.bf16.mxu0 0
    %4282 = vmatpush1.bf16.msra.mxu0 0
    %4283 = vmatprep.subr.bf16.mxu0 0
    %4284 = vmatpush1.bf16.msra.mxu0 0
    %4285 = vmatprep.subr.bf16.mxu0 0
    %4286 = vmatpush1.bf16.msra.mxu0 0
    %4287 = vmatprep.subr.bf16.mxu0 0
    %4288 = vmatpush1.bf16.msra.mxu0 0
    %4289 = vmatprep.mubr.bf16.mxu0 0
    %4290 = vmatmul.mubr.bf16.gmra.mrb[0].mxu0 %v4179
    %v4291 = vpop.f32.mrb[0].mxu0
    %v4292 = vadd.f32 %v3913, %v4291
    %v4293 = vpop.f32.mrb[0].mxu0
    %v4294 = vadd.f32 %v3913, %v4293
    %v4295 = vpop.f32.mrb[0].mxu0
    %v4296 = vadd.f32 %v3918, %v4295
    %v4297 = vpop.f32.mrb[0].mxu0
    %v4298 = vadd.f32 %v3918, %v4297
    %4299 = vdwg.mxu0
    %4300 = vmatprep.subr.bf16.mxu0 %v4083
    %4301 = vmatpush1.bf16.msra.mxu0 %v4082
    %4302 = vmatprep.subr.bf16.mxu0 %v4094
    %4303 = vmatpush1.bf16.msra.mxu0 %v4093
    %4304 = vmatprep.subr.bf16.mxu0 %v4105
    %4305 = vmatpush1.bf16.msra.mxu0 %v4104
    %4306 = vmatprep.subr.bf16.mxu0 %v4116
    %4307 = vmatpush1.bf16.msra.mxu0 %v4115
    %4308 = vmatprep.subr.bf16.mxu0 %v4197
    %4309 = vmatpush1.bf16.msra.mxu0 %v4194
    %4310 = vmatprep.subr.bf16.mxu0 0
    %4311 = vmatpush1.bf16.msra.mxu0 0
    %4312 = vmatprep.subr.bf16.mxu0 0
    %4313 = vmatpush1.bf16.msra.mxu0 0
    %4314 = vmatprep.subr.bf16.mxu0 0
    %4315 = vmatpush1.bf16.msra.mxu0 0
    %4316 = vmatprep.subr.bf16.mxu0 0
    %4317 = vmatpush1.bf16.msra.mxu0 0
    %4318 = vmatprep.subr.bf16.mxu0 0
    %4319 = vmatpush1.bf16.msra.mxu0 0
    %4320 = vmatprep.subr.bf16.mxu0 0
    %4321 = vmatpush1.bf16.msra.mxu0 0
    %4322 = vmatprep.subr.bf16.mxu0 0
    %4323 = vmatpush1.bf16.msra.mxu0 0
    %4324 = vmatprep.subr.bf16.mxu0 0
    %4325 = vmatpush1.bf16.msra.mxu0 0
    %4326 = vmatprep.subr.bf16.mxu0 0
    %4327 = vmatpush1.bf16.msra.mxu0 0
    %4328 = vmatprep.subr.bf16.mxu0 0
    %4329 = vmatpush1.bf16.msra.mxu0 0
    %4330 = vmatprep.subr.bf16.mxu0 0
    %4331 = vmatpush1.bf16.msra.mxu0 0
    %4332 = vmatprep.mubr.bf16.mxu0 0
    %4333 = vmatmul.mubr.bf16.gmra.mrb[0].mxu0 %v4179
    %v4334 = vpop.f32.mrb[0].mxu0
    %v4335 = vadd.f32 %v3913, %v4334
    %v4336 = vpop.f32.mrb[0].mxu0
    %v4337 = vadd.f32 %v3913, %v4336
    %v4338 = vpop.f32.mrb[0].mxu0
    %v4339 = vadd.f32 %v3918, %v4338
    %v4340 = vpop.f32.mrb[0].mxu0
    %v4341 = vadd.f32 %v3918, %v4340
    %4342 = vdwg.mxu0
    %4343 = vmatprep.subr.bf16.mxu0 %v4085
    %4344 = vmatpush1.bf16.msra.mxu0 %v4084
    %4345 = vmatprep.subr.bf16.mxu0 %v4096
    %4346 = vmatpush1.bf16.msra.mxu0 %v4095
    %4347 = vmatprep.subr.bf16.mxu0 %v4107
    %4348 = vmatpush1.bf16.msra.mxu0 %v4106
    %4349 = vmatprep.subr.bf16.mxu0 %v4118
    %4350 = vmatpush1.bf16.msra.mxu0 %v4117
    %4351 = vmatprep.subr.bf16.mxu0 %v4203
    %4352 = vmatpush1.bf16.msra.mxu0 %v4200
    %4353 = vmatprep.subr.bf16.mxu0 0
    %4354 = vmatpush1.bf16.msra.mxu0 0
    %4355 = vmatprep.subr.bf16.mxu0 0
    %4356 = vmatpush1.bf16.msra.mxu0 0
    %4357 = vmatprep.subr.bf16.mxu0 0
    %4358 = vmatpush1.bf16.msra.mxu0 0
    %4359 = vmatprep.subr.bf16.mxu0 0
    %4360 = vmatpush1.bf16.msra.mxu0 0
    %4361 = vmatprep.subr.bf16.mxu0 0
    %4362 = vmatpush1.bf16.msra.mxu0 0
    %4363 = vmatprep.subr.bf16.mxu0 0
    %4364 = vmatpush1.bf16.msra.mxu0 0
    %4365 = vmatprep.subr.bf16.mxu0 0
    %4366 = vmatpush1.bf16.msra.mxu0 0
    %4367 = vmatprep.subr.bf16.mxu0 0
    %4368 = vmatpush1.bf16.msra.mxu0 0
    %4369 = vmatprep.subr.bf16.mxu0 0
    %4370 = vmatpush1.bf16.msra.mxu0 0
    %4371 = vmatprep.subr.bf16.mxu0 0
    %4372 = vmatpush1.bf16.msra.mxu0 0
    %4373 = vmatprep.subr.bf16.mxu0 0
    %4374 = vmatpush1.bf16.msra.mxu0 0
    %4375 = vmatprep.mubr.bf16.mxu0 0
    %4376 = vmatmul.mubr.bf16.gmra.mrb[0].mxu0 %v4179
    %v4377 = vpop.f32.mrb[0].mxu0
    %v4378 = vadd.f32 %v3913, %v4377
    %v4379 = vpop.f32.mrb[0].mxu0
    %v4380 = vadd.f32 %v3913, %v4379
    %v4381 = vpop.f32.mrb[0].mxu0
    %v4382 = vadd.f32 %v3918, %v4381
    %v4383 = vpop.f32.mrb[0].mxu0
    %v4384 = vadd.f32 %v3918, %v4383
    %4385 = vdwg.mxu0
    %4386 = vmatprep.subr.bf16.mxu0 %v4087
    %4387 = vmatpush1.bf16.msra.mxu0 %v4086
    %4388 = vmatprep.subr.bf16.mxu0 %v4098
    %4389 = vmatpush1.bf16.msra.mxu0 %v4097
    %4390 = vmatprep.subr.bf16.mxu0 %v4109
    %4391 = vmatpush1.bf16.msra.mxu0 %v4108
    %4392 = vmatprep.subr.bf16.mxu0 %v4120
    %4393 = vmatpush1.bf16.msra.mxu0 %v4119
    %4394 = vmatprep.subr.bf16.mxu0 %v4209
    %4395 = vmatpush1.bf16.msra.mxu0 %v4206
    %4396 = vmatprep.subr.bf16.mxu0 0
    %4397 = vmatpush1.bf16.msra.mxu0 0
    %4398 = vmatprep.subr.bf16.mxu0 0
    %4399 = vmatpush1.bf16.msra.mxu0 0
    %4400 = vmatprep.subr.bf16.mxu0 0
    %4401 = vmatpush1.bf16.msra.mxu0 0
    %4402 = vmatprep.subr.bf16.mxu0 0
    %4403 = vmatpush1.bf16.msra.mxu0 0
    %4404 = vmatprep.subr.bf16.mxu0 0
    %4405 = vmatpush1.bf16.msra.mxu0 0
    %4406 = vmatprep.subr.bf16.mxu0 0
    %4407 = vmatpush1.bf16.msra.mxu0 0
    %4408 = vmatprep.subr.bf16.mxu0 0
    %4409 = vmatpush1.bf16.msra.mxu0 0
    %4410 = vmatprep.subr.bf16.mxu0 0
    %4411 = vmatpush1.bf16.msra.mxu0 0
    %4412 = vmatprep.subr.bf16.mxu0 0
    %4413 = vmatpush1.bf16.msra.mxu0 0
    %4414 = vmatprep.subr.bf16.mxu0 0
    %4415 = vmatpush1.bf16.msra.mxu0 0
    %4416 = vmatprep.subr.bf16.mxu0 0
    %4417 = vmatpush1.bf16.msra.mxu0 0
    %4418 = vmatprep.mubr.bf16.mxu0 0
    %4419 = vmatmul.mubr.bf16.gmra.mrb[0].mxu0 %v4179
    %v4420 = vpop.f32.mrb[0].mxu0
    %v4421 = vadd.f32 %v3913, %v4420
    %v4422 = vpop.f32.mrb[0].mxu0
    %v4423 = vadd.f32 %v3913, %v4422
    %v4424 = vpop.f32.mrb[0].mxu0
    %v4425 = vadd.f32 %v3918, %v4424
    %v4426 = vpop.f32.mrb[0].mxu0
    %v4427 = vadd.f32 %v3918, %v4426
    %4428 = vdwg.mxu0
    %4429 = vmatprep.subr.bf16.mxu0 0
    %4430 = vmatpush1.bf16.msra.mxu0 %v4088
    %4431 = vmatprep.subr.bf16.mxu0 0
    %4432 = vmatpush1.bf16.msra.mxu0 %v4099
    %4433 = vmatprep.subr.bf16.mxu0 0
    %4434 = vmatpush1.bf16.msra.mxu0 %v4110
    %4435 = vmatprep.subr.bf16.mxu0 0
    %4436 = vmatpush1.bf16.msra.mxu0 %v4121
    %4437 = vmatprep.subr.bf16.mxu0 0
    %4438 = vmatpush1.bf16.msra.mxu0 %v4212
    %4439 = vmatprep.subr.bf16.mxu0 0
    %4440 = vmatpush1.bf16.msra.mxu0 0
    %4441 = vmatprep.subr.bf16.mxu0 0
    %4442 = vmatpush1.bf16.msra.mxu0 0
    %4443 = vmatprep.subr.bf16.mxu0 0
    %4444 = vmatpush1.bf16.msra.mxu0 0
    %4445 = vmatprep.subr.bf16.mxu0 0
    %4446 = vmatpush1.bf16.msra.mxu0 0
    %4447 = vmatprep.subr.bf16.mxu0 0
    %4448 = vmatpush1.bf16.msra.mxu0 0
    %4449 = vmatprep.subr.bf16.mxu0 0
    %4450 = vmatpush1.bf16.msra.mxu0 0
    %4451 = vmatprep.subr.bf16.mxu0 0
    %4452 = vmatpush1.bf16.msra.mxu0 0
    %4453 = vmatprep.subr.bf16.mxu0 0
    %4454 = vmatpush1.bf16.msra.mxu0 0
    %4455 = vmatprep.subr.bf16.mxu0 0
    %4456 = vmatpush1.bf16.msra.mxu0 0
    %4457 = vmatprep.subr.bf16.mxu0 0
    %4458 = vmatpush1.bf16.msra.mxu0 0
    %4459 = vmatprep.subr.bf16.mxu0 0
    %4460 = vmatpush1.bf16.msra.mxu0 0
    %4461 = vmatprep.mubr.bf16.mxu0 0
    %4462 = vmatmul.mubr.bf16.gmra.mrb[0].mxu0 %v4179
    %v4463 = vpop.f32.mrb[0].mxu0
    %v4464 = vadd.f32 %v3913, %v4463
    %v4465 = vpop.f32.mrb[0].mxu0
    %v4466 = vpop.f32.mrb[0].mxu0
    %v4467 = vadd.f32 %v3918, %v4466
    %v4468 = vpop.f32.mrb[0].mxu0
    %4469 = vdwg.mxu0
    %v4470 = vmax.f32 %v4249, 0.0
    %v4471 = vmax.f32 %v4251, 0.0
    %v4472 = vmax.f32 %v4292, 0.0
    %v4473 = vmax.f32 %v4294, 0.0
    %v4474 = vmax.f32 %v4335, 0.0
    %v4475 = vmax.f32 %v4337, 0.0
    %v4476 = vmax.f32 %v4378, 0.0
    %v4477 = vmax.f32 %v4380, 0.0
    %v4478 = vmax.f32 %v4421, 0.0
    %v4479 = vmax.f32 %v4423, 0.0
    %v4480 = vmax.f32 %v4464, 0.0
    %v4481 = vmax.f32 %v4253, 0.0
    %v4482 = vmax.f32 %v4255, 0.0
    %v4483 = vmax.f32 %v4296, 0.0
    %v4484 = vmax.f32 %v4298, 0.0
    %v4485 = vmax.f32 %v4339, 0.0
    %v4486 = vmax.f32 %v4341, 0.0
    %v4487 = vmax.f32 %v4382, 0.0
    %v4488 = vmax.f32 %v4384, 0.0
    %v4489 = vmax.f32 %v4425, 0.0
    %v4490 = vmax.f32 %v4427, 0.0
    %v4491 = vmax.f32 %v4467, 0.0
    %4492 = vst [vmem:[#allocation6] sm:$0xff] %v4470
    %4493 = vst [vmem:[#allocation6 + $0x8] sm:$0xff] %v4471
    %4494 = vst [vmem:[#allocation6 + $0x10] sm:$0xff] %v4472
    %4495 = vst [vmem:[#allocation6 + $0x18] sm:$0xff] %v4473
    %4496 = vst [vmem:[#allocation6 + $0x20] sm:$0xff] %v4474
    %4497 = vst [vmem:[#allocation6 + $0x28] sm:$0xff] %v4475
    %4498 = vst [vmem:[#allocation6 + $0x30] sm:$0xff] %v4476
    %4499 = vst [vmem:[#allocation6 + $0x38] sm:$0xff] %v4477
    %4500 = vst [vmem:[#allocation6 + $0x40] sm:$0xff] %v4478
    %4501 = vst [vmem:[#allocation6 + $0x48] sm:$0xff] %v4479
    %vm4502 = vcmask 220160
    %4503 = vst.msk [vmem:[#allocation6 + $0x50] sm:$0xff] %vm4502, %v4480
    %4504 = vst [vmem:[#allocation6 + $0x58] sm:$0xff] %v4481
    %4505 = vst [vmem:[#allocation6 + $0x60] sm:$0xff] %v4482
    %4506 = vst [vmem:[#allocation6 + $0x68] sm:$0xff] %v4483
    %4507 = vst [vmem:[#allocation6 + $0x70] sm:$0xff] %v4484
    %4508 = vst [vmem:[#allocation6 + $0x78] sm:$0xff] %v4485
    %4509 = vst [vmem:[#allocation6 + $0x80] sm:$0xff] %v4486
    %4510 = vst [vmem:[#allocation6 + $0x88] sm:$0xff] %v4487
    %4511 = vst [vmem:[#allocation6 + $0x90] sm:$0xff] %v4488
    %4512 = vst [vmem:[#allocation6 + $0x98] sm:$0xff] %v4489
    %4513 = vst [vmem:[#allocation6 + $0xa0] sm:$0xff] %v4490
    %4514 = vst.msk [vmem:[#allocation6 + $0xa8] sm:$0xff] %vm4502, %v4491
    %v4515 = vld [vmem:[#allocation6] sm:$0xff]
    %v4516 = vld [vmem:[#allocation6 + $0x8] sm:$0xff]
    %v4517 = vld [vmem:[#allocation6 + $0x10] sm:$0xff]
    %v4518 = vld [vmem:[#allocation6 + $0x18] sm:$0xff]
    %v4519 = vld [vmem:[#allocation6 + $0x20] sm:$0xff]
    %v4520 = vld [vmem:[#allocation6 + $0x28] sm:$0xff]
    %v4521 = vld [vmem:[#allocation6 + $0x30] sm:$0xff]
    %v4522 = vld [vmem:[#allocation6 + $0x38] sm:$0xff]
    %v4523 = vld [vmem:[#allocation6 + $0x40] sm:$0xff]
    %v4524 = vld [vmem:[#allocation6 + $0x48] sm:$0xff]
    %v4525 = vld [vmem:[#allocation6 + $0x58] sm:$0xff]
    %v4526 = vld [vmem:[#allocation6 + $0x60] sm:$0xff]
    %v4527 = vld [vmem:[#allocation6 + $0x68] sm:$0xff]
    %v4528 = vld [vmem:[#allocation6 + $0x70] sm:$0xff]
    %v4529 = vld [vmem:[#allocation6 + $0x78] sm:$0xff]
    %v4530 = vld [vmem:[#allocation6 + $0x80] sm:$0xff]
    %v4531 = vld [vmem:[#allocation6 + $0x88] sm:$0xff]
    %v4532 = vld [vmem:[#allocation6 + $0x90] sm:$0xff]
    %v4533 = vld [vmem:[#allocation6 + $0x98] sm:$0xff]
    %v4534 = vld [vmem:[#allocation6 + $0xa0] sm:$0xff]
    %4555 = vrot.lane.b32.xlu0 %v4515, 126
    %v4556 = vpop.permute.xlu0 %4555
    %4557 = vrot.lane.b32.xlu0 %v4516, 126
    %v4558 = vpop.permute.xlu0 %4557
    %4559 = vrot.lane.b32.xlu0 %v4517, 126
    %v4560 = vpop.permute.xlu0 %4559
    %4561 = vrot.lane.b32.xlu0 %v4518, 126
    %v4562 = vpop.permute.xlu0 %4561
    %4563 = vrot.lane.b32.xlu0 %v4519, 126
    %v4564 = vpop.permute.xlu0 %4563
    %4565 = vrot.lane.b32.xlu0 %v4520, 126
    %v4566 = vpop.permute.xlu0 %4565
    %4567 = vrot.lane.b32.xlu0 %v4521, 126
    %v4568 = vpop.permute.xlu0 %4567
    %4569 = vrot.lane.b32.xlu0 %v4522, 126
    %v4570 = vpop.permute.xlu0 %4569
    %4571 = vrot.lane.b32.xlu0 %v4523, 126
    %v4572 = vpop.permute.xlu0 %4571
    %4573 = vrot.lane.b32.xlu0 %v4524, 126
    %v4574 = vpop.permute.xlu0 %4573
    %4575 = vrot.lane.b32.xlu0 %v4525, 126
    %v4576 = vpop.permute.xlu0 %4575
    %4577 = vrot.lane.b32.xlu0 %v4526, 126
    %v4578 = vpop.permute.xlu0 %4577
    %4579 = vrot.lane.b32.xlu0 %v4527, 126
    %v4580 = vpop.permute.xlu0 %4579
    %4581 = vrot.lane.b32.xlu0 %v4528, 126
    %v4582 = vpop.permute.xlu0 %4581
    %4583 = vrot.lane.b32.xlu0 %v4529, 126
    %v4584 = vpop.permute.xlu0 %4583
    %4585 = vrot.lane.b32.xlu0 %v4530, 126
    %v4586 = vpop.permute.xlu0 %4585
    %4587 = vrot.lane.b32.xlu0 %v4531, 126
    %v4588 = vpop.permute.xlu0 %4587
    %4589 = vrot.lane.b32.xlu0 %v4532, 126
    %v4590 = vpop.permute.xlu0 %4589
    %4591 = vrot.lane.b32.xlu0 %v4533, 126
    %v4592 = vpop.permute.xlu0 %4591
    %4593 = vrot.lane.b32.xlu0 %v4534, 126
    %v4594 = vpop.permute.xlu0 %4593
    %vm4595 = vcmask 1031168
    %v4596 = vsel %vm4595, %v4556, %v4558
    %v4597 = vsel %vm4595, %v4558, %v4560
    %v4598 = vsel %vm4595, %v4560, %v4562
    %v4599 = vsel %vm4595, %v4562, %v4564
    %v4600 = vsel %vm4595, %v4564, %v4566
    %v4601 = vsel %vm4595, %v4566, %v4568
    %v4602 = vsel %vm4595, %v4568, %v4570
    %v4603 = vsel %vm4595, %v4570, %v4572
    %v4604 = vsel %vm4595, %v4572, %v4574
    %v4605 = vsel %vm4595, %v4576, %v4578
    %v4606 = vsel %vm4595, %v4578, %v4580
    %v4607 = vsel %vm4595, %v4580, %v4582
    %v4608 = vsel %vm4595, %v4582, %v4584
    %v4609 = vsel %vm4595, %v4584, %v4586
    %v4610 = vsel %vm4595, %v4586, %v4588
    %v4611 = vsel %vm4595, %v4588, %v4590
    %v4612 = vsel %vm4595, %v4590, %v4592
    %v4613 = vsel %vm4595, %v4592, %v4594
    %v4634 = vmax.f32 %v4515, %v4596
    %v4635 = vmax.f32 %v4516, %v4597
    %v4636 = vmax.f32 %v4517, %v4598
    %v4637 = vmax.f32 %v4518, %v4599
    %v4638 = vmax.f32 %v4519, %v4600
    %v4639 = vmax.f32 %v4520, %v4601
    %v4640 = vmax.f32 %v4521, %v4602
    %v4641 = vmax.f32 %v4522, %v4603
    %v4642 = vmax.f32 %v4523, %v4604
    %v4643 = vmax.f32 %v4524, %v4574
    %v4644 = vmax.f32 %v4525, %v4605
    %v4645 = vmax.f32 %v4526, %v4606
    %v4646 = vmax.f32 %v4527, %v4607
    %v4647 = vmax.f32 %v4528, %v4608
    %v4648 = vmax.f32 %v4529, %v4609
    %v4649 = vmax.f32 %v4530, %v4610
    %v4650 = vmax.f32 %v4531, %v4611
    %v4651 = vmax.f32 %v4532, %v4612
    %v4652 = vmax.f32 %v4533, %v4613
    %v4653 = vmax.f32 %v4534, %v4594
    %v4654 = vld [vmem:[#allocation6 + $0x50] sm:$0xff]
    %v4655 = vld [vmem:[#allocation6 + $0xa8] sm:$0xff]
    %4658 = vrot.lane.b32.xlu0 %v4654, 126
    %v4659 = vpop.permute.xlu0 %4658
    %4660 = vrot.lane.b32.xlu0 %v4655, 126
    %v4661 = vpop.permute.xlu0 %4660
    %v4662 = vsel %vm4595, %v4574, %v4659
    %v4663 = vsel %vm4595, %v4594, %v4661
    %v4668 = vmax.f32 %v4524, %v4662
    %v4669 = vmax.f32 %v4654, %v4659
    %v4670 = vmax.f32 %v4534, %v4663
    %v4671 = vmax.f32 %v4655, %v4661
    %4694 = vrot.lane.b32.xlu0 %v4634, 72
    %v4695 = vpop.permute.xlu0 %4694
    %4696 = vrot.lane.b32.xlu0 %v4635, 72
    %v4697 = vpop.permute.xlu0 %4696
    %4698 = vrot.lane.b32.xlu0 %v4636, 72
    %v4699 = vpop.permute.xlu0 %4698
    %4700 = vrot.lane.b32.xlu0 %v4637, 72
    %v4701 = vpop.permute.xlu0 %4700
    %4702 = vrot.lane.b32.xlu0 %v4638, 72
    %v4703 = vpop.permute.xlu0 %4702
    %4704 = vrot.lane.b32.xlu0 %v4639, 72
    %v4705 = vpop.permute.xlu0 %4704
    %4706 = vrot.lane.b32.xlu0 %v4640, 72
    %v4707 = vpop.permute.xlu0 %4706
    %4708 = vrot.lane.b32.xlu0 %v4641, 72
    %v4709 = vpop.permute.xlu0 %4708
    %4710 = vrot.lane.b32.xlu0 %v4642, 72
    %v4711 = vpop.permute.xlu0 %4710
    %4712 = vrot.lane.b32.xlu0 %v4668, 72
    %v4713 = vpop.permute.xlu0 %4712
    %4714 = vrot.lane.b32.xlu0 %v4669, 72
    %v4715 = vpop.permute.xlu0 %4714
    %4716 = vrot.lane.b32.xlu0 %v4644, 72
    %v4717 = vpop.permute.xlu0 %4716
    %4718 = vrot.lane.b32.xlu0 %v4645, 72
    %v4719 = vpop.permute.xlu0 %4718
    %4720 = vrot.lane.b32.xlu0 %v4646, 72
    %v4721 = vpop.permute.xlu0 %4720
    %4722 = vrot.lane.b32.xlu0 %v4647, 72
    %v4723 = vpop.permute.xlu0 %4722
    %4724 = vrot.lane.b32.xlu0 %v4648, 72
    %v4725 = vpop.permute.xlu0 %4724
    %4726 = vrot.lane.b32.xlu0 %v4649, 72
    %v4727 = vpop.permute.xlu0 %4726
    %4728 = vrot.lane.b32.xlu0 %v4650, 72
    %v4729 = vpop.permute.xlu0 %4728
    %4730 = vrot.lane.b32.xlu0 %v4651, 72
    %v4731 = vpop.permute.xlu0 %4730
    %4732 = vrot.lane.b32.xlu0 %v4652, 72
    %v4733 = vpop.permute.xlu0 %4732
    %4734 = vrot.lane.b32.xlu0 %v4670, 72
    %v4735 = vpop.permute.xlu0 %4734
    %4736 = vrot.lane.b32.xlu0 %v4671, 72
    %v4737 = vpop.permute.xlu0 %4736
    %v4738 = vsel %vm4177, %v4695, %v4697
    %v4739 = vsel %vm4177, %v4697, %v4699
    %v4740 = vsel %vm4177, %v4699, %v4701
    %v4741 = vsel %vm4177, %v4701, %v4703
    %v4742 = vsel %vm4177, %v4703, %v4705
    %v4743 = vsel %vm4177, %v4705, %v4707
    %v4744 = vsel %vm4177, %v4707, %v4709
    %v4745 = vsel %vm4177, %v4709, %v4711
    %v4746 = vsel %vm4177, %v4711, %v4713
    %v4747 = vsel %vm4177, %v4713, %v4715
    %v4748 = vsel %vm4177, %v4717, %v4719
    %v4749 = vsel %vm4177, %v4719, %v4721
    %v4750 = vsel %vm4177, %v4721, %v4723
    %v4751 = vsel %vm4177, %v4723, %v4725
    %v4752 = vsel %vm4177, %v4725, %v4727
    %v4753 = vsel %vm4177, %v4727, %v4729
    %v4754 = vsel %vm4177, %v4729, %v4731
    %v4755 = vsel %vm4177, %v4731, %v4733
    %v4756 = vsel %vm4177, %v4733, %v4735
    %v4757 = vsel %vm4177, %v4735, %v4737
    %v4778 = vmax.f32 %v4634, %v4738
    %v4779 = vmax.f32 %v4635, %v4739
    %v4780 = vmax.f32 %v4636, %v4740
    %v4781 = vmax.f32 %v4637, %v4741
    %v4782 = vmax.f32 %v4638, %v4742
    %v4783 = vmax.f32 %v4639, %v4743
    %v4784 = vmax.f32 %v4640, %v4744
    %v4785 = vmax.f32 %v4641, %v4745
    %v4786 = vmax.f32 %v4642, %v4746
    %v4787 = vmax.f32 %v4643, %v4747
    %v4788 = vmax.f32 %v4644, %v4748
    %v4789 = vmax.f32 %v4645, %v4749
    %v4790 = vmax.f32 %v4646, %v4750
    %v4791 = vmax.f32 %v4647, %v4751
    %v4792 = vmax.f32 %v4648, %v4752
    %v4793 = vmax.f32 %v4649, %v4753
    %v4794 = vmax.f32 %v4650, %v4754
    %v4795 = vmax.f32 %v4651, %v4755
    %v4796 = vmax.f32 %v4652, %v4756
    %v4797 = vmax.f32 %v4653, %v4757
    %v4798 = vld [vmem:[#allocation8] sm:$0xff]
    %v4799 = vld [vmem:[#allocation8 + $0x8] sm:$0xff]
    %v4800 = vld [vmem:[#allocation8 + $0x10] sm:$0xff]
    %v4801 = vld [vmem:[#allocation8 + $0x18] sm:$0xff]
    %v4802 = vld [vmem:[#allocation8 + $0x20] sm:$0xff]
    %v4803 = vld [vmem:[#allocation8 + $0x28] sm:$0xff]
    %v4804 = vld [vmem:[#allocation8 + $0x30] sm:$0xff]
    %v4805 = vld [vmem:[#allocation8 + $0x38] sm:$0xff]
    %v4806 = vld [vmem:[#allocation8 + $0x40] sm:$0xff]
    %v4807 = vld [vmem:[#allocation8 + $0x48] sm:$0xff]
    %v4808 = vld [vmem:[#allocation8 + $0x50] sm:$0xff]
    %v4809 = vld [vmem:[#allocation8 + $0x58] sm:$0xff]
    %v4810 = vld [vmem:[#allocation8 + $0x60] sm:$0xff]
    %v4811 = vld [vmem:[#allocation8 + $0x68] sm:$0xff]
    %v4812 = vld [vmem:[#allocation8 + $0x70] sm:$0xff]
    %v4813 = vld [vmem:[#allocation8 + $0x78] sm:$0xff]
    %v4814 = vld [vmem:[#allocation8 + $0x80] sm:$0xff]
    %v4815 = vld [vmem:[#allocation8 + $0x88] sm:$0xff]
    %v4816 = vld [vmem:[#allocation8 + $0x90] sm:$0xff]
    %v4817 = vld [vmem:[#allocation8 + $0x98] sm:$0xff]
    %v4818 = vld [vmem:[#allocation8 + $0xa0] sm:$0xff]
    %v4819 = vld [vmem:[#allocation8 + $0xa8] sm:$0xff]
    %v4820 = vld [vmem:[#allocation8 + $0xb0] sm:$0xff]
    %v4821 = vld [vmem:[#allocation8 + $0xb8] sm:$0xff]
    %v4822 = vld [vmem:[#allocation8 + $0xc0] sm:$0xff]
    %v4823 = vld [vmem:[#allocation8 + $0xc8] sm:$0xff]
    %v4824 = vld [vmem:[#allocation8 + $0xd0] sm:$0xff]
    %v4825 = vld [vmem:[#allocation8 + $0xd8] sm:$0xff]
    %v4826 = vld [vmem:[#allocation8 + $0xe0] sm:$0xff]
    %v4827 = vld [vmem:[#allocation8 + $0xe8] sm:$0xff]
    %v4828 = vld [vmem:[#allocation8 + $0xf0] sm:$0xff]
    %v4829 = vld [vmem:[#allocation8 + $0xf8] sm:$0xff]
    %v4830 = vld [vmem:[#allocation8 + $0x100] sm:$0xff]
    %v4831 = vld [vmem:[#allocation8 + $0x108] sm:$0xff]
    %v4832 = vld [vmem:[#allocation8 + $0x110] sm:$0xff]
    %v4833 = vld [vmem:[#allocation8 + $0x118] sm:$0xff]
    %v4834 = vld [vmem:[#allocation8 + $0x120] sm:$0xff]
    %v4835 = vld [vmem:[#allocation8 + $0x128] sm:$0xff]
    %v4836 = vld [vmem:[#allocation8 + $0x130] sm:$0xff]
    %v4837 = vld [vmem:[#allocation8 + $0x138] sm:$0xff]
    %v4838 = vld [vmem:[#allocation8 + $0x140] sm:$0xff]
    %v4839 = vld [vmem:[#allocation8 + $0x148] sm:$0xff]
    %v4840 = vld [vmem:[#allocation8 + $0x150] sm:$0xff]
    %v4841 = vld [vmem:[#allocation8 + $0x158] sm:$0xff]
    %v4842 = vld [vmem:[#allocation8 + $0x160] sm:$0xff]
    %v4843 = vld [vmem:[#allocation8 + $0x168] sm:$0xff]
    %v4844 = vld [vmem:[#allocation8 + $0x170] sm:$0xff]
    %v4845 = vld [vmem:[#allocation8 + $0x178] sm:$0xff]
    %v4846 = vld [vmem:[#allocation8 + $0x180] sm:$0xff]
    %v4847 = vld [vmem:[#allocation8 + $0x188] sm:$0xff]
    %v4848 = vld [vmem:[#allocation8 + $0x190] sm:$0xff]
    %v4849 = vld [vmem:[#allocation8 + $0x198] sm:$0xff]
    %v4850 = vld [vmem:[#allocation8 + $0x1a0] sm:$0xff]
    %v4851 = vld [vmem:[#allocation8 + $0x1a8] sm:$0xff]
    %v4852 = vld [vmem:[#allocation8 + $0x1b0] sm:$0xff]
    %v4853 = vld [vmem:[#allocation8 + $0x1b8] sm:$0xff]
    %v4854 = vld [vmem:[#allocation8 + $0x1c0] sm:$0xff]
    %v4855 = vld [vmem:[#allocation8 + $0x1c8] sm:$0xff]
    %v4856 = vld [vmem:[#allocation8 + $0x1d0] sm:$0xff]
    %v4857 = vld [vmem:[#allocation8 + $0x1d8] sm:$0xff]
    %v4858 = vld [vmem:[#allocation8 + $0x1e0] sm:$0xff]
    %v4859 = vld [vmem:[#allocation8 + $0x1e8] sm:$0xff]
    %v4860 = vld [vmem:[#allocation8 + $0x1f0] sm:$0xff]
    %v4861 = vld [vmem:[#allocation8 + $0x1f8] sm:$0xff]
    %v4862 = vld [vmem:[#allocation8 + $0x200] sm:$0xff]
    %v4863 = vld [vmem:[#allocation8 + $0x208] sm:$0xff]
    %v4864 = vld [vmem:[#allocation8 + $0x210] sm:$0xff]
    %v4865 = vld [vmem:[#allocation8 + $0x218] sm:$0xff]
    %v4866 = vld [vmem:[#allocation8 + $0x220] sm:$0xff]
    %v4867 = vld [vmem:[#allocation8 + $0x228] sm:$0xff]
    %v4868 = vld [vmem:[#allocation8 + $0x230] sm:$0xff]
    %v4869 = vld [vmem:[#allocation8 + $0x238] sm:$0xff]
    %v4870 = vld [vmem:[#allocation8 + $0x240] sm:$0xff]
    %v4871 = vld [vmem:[#allocation8 + $0x248] sm:$0xff]
    %v4872 = vld [vmem:[#allocation8 + $0x250] sm:$0xff]
    %v4873 = vld [vmem:[#allocation8 + $0x258] sm:$0xff]
    %v4874 = vld [vmem:[#allocation8 + $0x260] sm:$0xff]
    %v4875 = vld [vmem:[#allocation8 + $0x268] sm:$0xff]
    %v4876 = vld [vmem:[#allocation8 + $0x270] sm:$0xff]
    %v4877 = vld [vmem:[#allocation8 + $0x278] sm:$0xff]
    %v4878 = vld [vmem:[#allocation8 + $0x280] sm:$0xff]
    %v4879 = vld [vmem:[#allocation8 + $0x288] sm:$0xff]
    %v4880 = vld [vmem:[#allocation8 + $0x290] sm:$0xff]
    %v4881 = vld [vmem:[#allocation8 + $0x298] sm:$0xff]
    %v4882 = vld [vmem:[#allocation8 + $0x2a0] sm:$0xff]
    %v4883 = vld [vmem:[#allocation8 + $0x2a8] sm:$0xff]
    %v4884 = vld [vmem:[#allocation8 + $0x2b0] sm:$0xff]
    %v4885 = vld [vmem:[#allocation8 + $0x2b8] sm:$0xff]
    %v4886 = vld [vmem:[#allocation8 + $0x2c0] sm:$0xff]
    %v4887 = vld [vmem:[#allocation8 + $0x2c8] sm:$0xff]
    %v4888 = vld [vmem:[#allocation8 + $0x2d0] sm:$0xff]
    %v4889 = vld [vmem:[#allocation8 + $0x2d8] sm:$0xff]
    %v4890 = vld [vmem:[#allocation8 + $0x2e0] sm:$0xff]
    %v4891 = vld [vmem:[#allocation8 + $0x2e8] sm:$0xff]
    %v4892 = vld [vmem:[#allocation8 + $0x2f0] sm:$0xff]
    %v4893 = vld [vmem:[#allocation8 + $0x2f8] sm:$0xff]
    %v4894 = vld [vmem:[#allocation8 + $0x300] sm:$0xff]
    %v4895 = vld [vmem:[#allocation8 + $0x308] sm:$0xff]
    %v4896 = vld [vmem:[#allocation8 + $0x310] sm:$0xff]
    %v4897 = vld [vmem:[#allocation8 + $0x318] sm:$0xff]
    %v4898 = vld [vmem:[#allocation8 + $0x320] sm:$0xff]
    %v4899 = vld [vmem:[#allocation8 + $0x328] sm:$0xff]
    %v4900 = vld [vmem:[#allocation8 + $0x330] sm:$0xff]
    %v4901 = vld [vmem:[#allocation8 + $0x338] sm:$0xff]
    %v4902 = vld [vmem:[#allocation8 + $0x340] sm:$0xff]
    %v4903 = vld [vmem:[#allocation8 + $0x348] sm:$0xff]
    %v4904 = vld [vmem:[#allocation8 + $0x350] sm:$0xff]
    %v4905 = vld [vmem:[#allocation8 + $0x358] sm:$0xff]
    %v4906 = vld [vmem:[#allocation8 + $0x360] sm:$0xff]
    %v4907 = vld [vmem:[#allocation8 + $0x368] sm:$0xff]
    %v4908 = vld [vmem:[#allocation8 + $0x370] sm:$0xff]
    %v4909 = vld [vmem:[#allocation8 + $0x378] sm:$0xff]
    %v4910 = vld [vmem:[#allocation8 + $0x380] sm:$0xff]
    %v4911 = vld [vmem:[#allocation8 + $0x388] sm:$0xff]
    %v4912 = vld [vmem:[#allocation8 + $0x390] sm:$0xff]
    %v4913 = vld [vmem:[#allocation8 + $0x398] sm:$0xff]
    %v4914 = vld [vmem:[#allocation8 + $0x3a0] sm:$0xff]
    %v4915 = vld [vmem:[#allocation8 + $0x3a8] sm:$0xff]
    %v4916 = vld [vmem:[#allocation8 + $0x3b0] sm:$0xff]
    %v4917 = vld [vmem:[#allocation8 + $0x3b8] sm:$0xff]
    %v4918 = vld [vmem:[#allocation8 + $0x3c0] sm:$0xff]
    %v4919 = vld [vmem:[#allocation8 + $0x3c8] sm:$0xff]
    %v4920 = vld [vmem:[#allocation8 + $0x3d0] sm:$0xff]
    %v4921 = vld [vmem:[#allocation8 + $0x3d8] sm:$0xff]
    %v4922 = vld [vmem:[#allocation8 + $0x3e0] sm:$0xff]
    %v4923 = vld [vmem:[#allocation8 + $0x3e8] sm:$0xff]
    %v4924 = vld [vmem:[#allocation8 + $0x3f0] sm:$0xff]
    %v4925 = vld [vmem:[#allocation8 + $0x3f8] sm:$0xff]
    %v4926 = vld [vmem:[#allocation8 + $0x400] sm:$0xff]
    %v4927 = vld [vmem:[#allocation8 + $0x408] sm:$0xff]
    %v4928 = vld [vmem:[#allocation8 + $0x410] sm:$0xff]
    %v4929 = vld [vmem:[#allocation8 + $0x418] sm:$0xff]
    %v4930 = vld [vmem:[#allocation8 + $0x420] sm:$0xff]
    %v4931 = vld [vmem:[#allocation8 + $0x428] sm:$0xff]
    %v4932 = vld [vmem:[#allocation8 + $0x430] sm:$0xff]
    %v4933 = vld [vmem:[#allocation8 + $0x438] sm:$0xff]
    %v4934 = vld [vmem:[#allocation8 + $0x440] sm:$0xff]
    %v4935 = vld [vmem:[#allocation8 + $0x448] sm:$0xff]
    %v4936 = vld [vmem:[#allocation8 + $0x450] sm:$0xff]
    %v4937 = vld [vmem:[#allocation8 + $0x458] sm:$0xff]
    %v4938 = vld [vmem:[#allocation8 + $0x460] sm:$0xff]
    %v4939 = vld [vmem:[#allocation8 + $0x468] sm:$0xff]
    %v4940 = vld [vmem:[#allocation8 + $0x470] sm:$0xff]
    %v4941 = vld [vmem:[#allocation8 + $0x478] sm:$0xff]
    %v4942 = vld [vmem:[#allocation8 + $0x480] sm:$0xff]
    %v4943 = vld [vmem:[#allocation8 + $0x488] sm:$0xff]
    %v4944 = vld [vmem:[#allocation8 + $0x490] sm:$0xff]
    %v4945 = vld [vmem:[#allocation8 + $0x498] sm:$0xff]
    %v4946 = vld [vmem:[#allocation8 + $0x4a0] sm:$0xff]
    %v4947 = vld [vmem:[#allocation8 + $0x4a8] sm:$0xff]
    %v4948 = vld [vmem:[#allocation8 + $0x4b0] sm:$0xff]
    %v4949 = vld [vmem:[#allocation8 + $0x4b8] sm:$0xff]
    %v4950 = vld [vmem:[#allocation8 + $0x4c0] sm:$0xff]
    %v4951 = vld [vmem:[#allocation8 + $0x4c8] sm:$0xff]
    %v4952 = vld [vmem:[#allocation8 + $0x4d0] sm:$0xff]
    %v4953 = vld [vmem:[#allocation8 + $0x4d8] sm:$0xff]
    %v4954 = vld [vmem:[#allocation8 + $0x4e0] sm:$0x1]
    %vm4955 = vcmask 793600
    %v4957 = vsel %vm4955, %v4787, 0
    %v4960 = vsel %vm4955, %v4797, 0
    %vm4962 = vcmask 1040384
    %v4964 = vsel %vm4962, %v4954, 0
    %4966 = vmatprep.subr.mxu0 0.0
    %4967 = vmatpush1.msra.mxu0 %v4798
    %4968 = vmatprep.subr.mxu0 0.0
    %4969 = vmatpush1.msra.mxu0 %v4799
    %4970 = vmatprep.subr.mxu0 0.0
    %4971 = vmatpush1.msra.mxu0 %v4800
    %4972 = vmatprep.subr.mxu0 0.0
    %4973 = vmatpush1.msra.mxu0 %v4801
    %4974 = vmatprep.subr.mxu0 0.0
    %4975 = vmatpush1.msra.mxu0 %v4802
    %4976 = vmatprep.subr.mxu0 0.0
    %4977 = vmatpush1.msra.mxu0 %v4803
    %4978 = vmatprep.subr.mxu0 0.0
    %4979 = vmatpush1.msra.mxu0 %v4804
    %4980 = vmatprep.subr.mxu0 0.0
    %4981 = vmatpush1.msra.mxu0 %v4805
    %4982 = vmatprep.subr.mxu0 0.0
    %4983 = vmatpush1.msra.mxu0 %v4806
    %4984 = vmatprep.subr.mxu0 0.0
    %4985 = vmatpush1.msra.mxu0 %v4807
    %4986 = vmatprep.subr.mxu0 0.0
    %4987 = vmatpush1.msra.mxu0 %v4808
    %4988 = vmatprep.subr.mxu0 0.0
    %4989 = vmatpush1.msra.mxu0 %v4809
    %4990 = vmatprep.subr.mxu0 0.0
    %4991 = vmatpush1.msra.mxu0 %v4810
    %4992 = vmatprep.subr.mxu0 0.0
    %4993 = vmatpush1.msra.mxu0 %v4811
    %4994 = vmatprep.subr.mxu0 0.0
    %4995 = vmatpush1.msra.mxu0 %v4812
    %4996 = vmatprep.subr.mxu0 0.0
    %4997 = vmatpush1.msra.mxu0 %v4813
    %4998 = vmatprep.subr.mxu0 0.0
    %4999 = vmatpush1.msra.mxu0 %v4814
    %5000 = vmatprep.subr.mxu0 0.0
    %5001 = vmatpush1.msra.mxu0 %v4815
    %5002 = vmatprep.subr.mxu0 0.0
    %5003 = vmatpush1.msra.mxu0 %v4816
    %5004 = vmatprep.subr.mxu0 0.0
    %5005 = vmatpush1.msra.mxu0 %v4817
    %5006 = vmatprep.subr.mxu0 0.0
    %5007 = vmatpush1.msra.mxu0 %v4818
    %5008 = vmatprep.subr.mxu0 0.0
    %5009 = vmatpush1.msra.mxu0 %v4819
    %5010 = vmatprep.subr.mxu0 0.0
    %5011 = vmatpush1.msra.mxu0 %v4820
    %5012 = vmatprep.subr.mxu0 0.0
    %5013 = vmatpush1.msra.mxu0 %v4821
    %5014 = vmatprep.subr.mxu0 0.0
    %5015 = vmatpush1.msra.mxu0 %v4822
    %5016 = vmatprep.subr.mxu0 0.0
    %5017 = vmatpush1.msra.mxu0 %v4823
    %5018 = vmatprep.subr.mxu0 0.0
    %5019 = vmatpush1.msra.mxu0 %v4824
    %5020 = vmatprep.subr.mxu0 0.0
    %5021 = vmatpush1.msra.mxu0 %v4825
    %5022 = vmatprep.subr.mxu0 0.0
    %5023 = vmatpush1.msra.mxu0 %v4826
    %5024 = vmatprep.subr.mxu0 0.0
    %5025 = vmatpush1.msra.mxu0 %v4827
    %5026 = vmatprep.subr.mxu0 0.0
    %5027 = vmatpush1.msra.mxu0 %v4828
    %5028 = vmatprep.subr.mxu0 0.0
    %5029 = vmatpush1.msra.mxu0 %v4829
    %5030 = vmatprep.mubr.f32.mxu0 %v4779
    %5031 = vmatmul.mubr.f32.gmra.mrb[0].mxu0 %v4778
    %v5032 = vpop.f32.mrb[0].mxu0
    %v5033 = vadd.f32 0.0, %v5032
    %v5034 = vpop.f32.mrb[0].mxu0
    %5035 = vmatprep.mubr.f32.mxu0 %v4789
    %5036 = vmatmul.mubr.f32.gmra.mrb[0].mxu0 %v4788
    %v5037 = vpop.f32.mrb[0].mxu0
    %v5038 = vadd.f32 0.0, %v5037
    %v5039 = vpop.f32.mrb[0].mxu0
    %5040 = vdwg.mxu0
    %5041 = vmatprep.subr.mxu0 0.0
    %5042 = vmatpush1.msra.mxu0 %v4830
    %5043 = vmatprep.subr.mxu0 0.0
    %5044 = vmatpush1.msra.mxu0 %v4831
    %5045 = vmatprep.subr.mxu0 0.0
    %5046 = vmatpush1.msra.mxu0 %v4832
    %5047 = vmatprep.subr.mxu0 0.0
    %5048 = vmatpush1.msra.mxu0 %v4833
    %5049 = vmatprep.subr.mxu0 0.0
    %5050 = vmatpush1.msra.mxu0 %v4834
    %5051 = vmatprep.subr.mxu0 0.0
    %5052 = vmatpush1.msra.mxu0 %v4835
    %5053 = vmatprep.subr.mxu0 0.0
    %5054 = vmatpush1.msra.mxu0 %v4836
    %5055 = vmatprep.subr.mxu0 0.0
    %5056 = vmatpush1.msra.mxu0 %v4837
    %5057 = vmatprep.subr.mxu0 0.0
    %5058 = vmatpush1.msra.mxu0 %v4838
    %5059 = vmatprep.subr.mxu0 0.0
    %5060 = vmatpush1.msra.mxu0 %v4839
    %5061 = vmatprep.subr.mxu0 0.0
    %5062 = vmatpush1.msra.mxu0 %v4840
    %5063 = vmatprep.subr.mxu0 0.0
    %5064 = vmatpush1.msra.mxu0 %v4841
    %5065 = vmatprep.subr.mxu0 0.0
    %5066 = vmatpush1.msra.mxu0 %v4842
    %5067 = vmatprep.subr.mxu0 0.0
    %5068 = vmatpush1.msra.mxu0 %v4843
    %5069 = vmatprep.subr.mxu0 0.0
    %5070 = vmatpush1.msra.mxu0 %v4844
    %5071 = vmatprep.subr.mxu0 0.0
    %5072 = vmatpush1.msra.mxu0 %v4845
    %5073 = vmatprep.subr.mxu0 0.0
    %5074 = vmatpush1.msra.mxu0 %v4846
    %5075 = vmatprep.subr.mxu0 0.0
    %5076 = vmatpush1.msra.mxu0 %v4847
    %5077 = vmatprep.subr.mxu0 0.0
    %5078 = vmatpush1.msra.mxu0 %v4848
    %5079 = vmatprep.subr.mxu0 0.0
    %5080 = vmatpush1.msra.mxu0 %v4849
    %5081 = vmatprep.subr.mxu0 0.0
    %5082 = vmatpush1.msra.mxu0 %v4850
    %5083 = vmatprep.subr.mxu0 0.0
    %5084 = vmatpush1.msra.mxu0 %v4851
    %5085 = vmatprep.subr.mxu0 0.0
    %5086 = vmatpush1.msra.mxu0 %v4852
    %5087 = vmatprep.subr.mxu0 0.0
    %5088 = vmatpush1.msra.mxu0 %v4853
    %5089 = vmatprep.subr.mxu0 0.0
    %5090 = vmatpush1.msra.mxu0 %v4854
    %5091 = vmatprep.subr.mxu0 0.0
    %5092 = vmatpush1.msra.mxu0 %v4855
    %5093 = vmatprep.subr.mxu0 0.0
    %5094 = vmatpush1.msra.mxu0 %v4856
    %5095 = vmatprep.subr.mxu0 0.0
    %5096 = vmatpush1.msra.mxu0 %v4857
    %5097 = vmatprep.subr.mxu0 0.0
    %5098 = vmatpush1.msra.mxu0 %v4858
    %5099 = vmatprep.subr.mxu0 0.0
    %5100 = vmatpush1.msra.mxu0 %v4859
    %5101 = vmatprep.subr.mxu0 0.0
    %5102 = vmatpush1.msra.mxu0 %v4860
    %5103 = vmatprep.subr.mxu0 0.0
    %5104 = vmatpush1.msra.mxu0 %v4861
    %5105 = vmatprep.mubr.f32.mxu0 %v4781
    %5106 = vmatmul.mubr.f32.gmra.mrb[0].mxu0 %v4780
    %v5107 = vpop.f32.mrb[0].mxu0
    %v5108 = vadd.f32 %v5033, %v5107
    %v5109 = vpop.f32.mrb[0].mxu0
    %5110 = vmatprep.mubr.f32.mxu0 %v4791
    %5111 = vmatmul.mubr.f32.gmra.mrb[0].mxu0 %v4790
    %v5112 = vpop.f32.mrb[0].mxu0
    %v5113 = vadd.f32 %v5038, %v5112
    %v5114 = vpop.f32.mrb[0].mxu0
    %5115 = vdwg.mxu0
    %5116 = vmatprep.subr.mxu0 0.0
    %5117 = vmatpush1.msra.mxu0 %v4862
    %5118 = vmatprep.subr.mxu0 0.0
    %5119 = vmatpush1.msra.mxu0 %v4863
    %5120 = vmatprep.subr.mxu0 0.0
    %5121 = vmatpush1.msra.mxu0 %v4864
    %5122 = vmatprep.subr.mxu0 0.0
    %5123 = vmatpush1.msra.mxu0 %v4865
    %5124 = vmatprep.subr.mxu0 0.0
    %5125 = vmatpush1.msra.mxu0 %v4866
    %5126 = vmatprep.subr.mxu0 0.0
    %5127 = vmatpush1.msra.mxu0 %v4867
    %5128 = vmatprep.subr.mxu0 0.0
    %5129 = vmatpush1.msra.mxu0 %v4868
    %5130 = vmatprep.subr.mxu0 0.0
    %5131 = vmatpush1.msra.mxu0 %v4869
    %5132 = vmatprep.subr.mxu0 0.0
    %5133 = vmatpush1.msra.mxu0 %v4870
    %5134 = vmatprep.subr.mxu0 0.0
    %5135 = vmatpush1.msra.mxu0 %v4871
    %5136 = vmatprep.subr.mxu0 0.0
    %5137 = vmatpush1.msra.mxu0 %v4872
    %5138 = vmatprep.subr.mxu0 0.0
    %5139 = vmatpush1.msra.mxu0 %v4873
    %5140 = vmatprep.subr.mxu0 0.0
    %5141 = vmatpush1.msra.mxu0 %v4874
    %5142 = vmatprep.subr.mxu0 0.0
    %5143 = vmatpush1.msra.mxu0 %v4875
    %5144 = vmatprep.subr.mxu0 0.0
    %5145 = vmatpush1.msra.mxu0 %v4876
    %5146 = vmatprep.subr.mxu0 0.0
    %5147 = vmatpush1.msra.mxu0 %v4877
    %5148 = vmatprep.subr.mxu0 0.0
    %5149 = vmatpush1.msra.mxu0 %v4878
    %5150 = vmatprep.subr.mxu0 0.0
    %5151 = vmatpush1.msra.mxu0 %v4879
    %5152 = vmatprep.subr.mxu0 0.0
    %5153 = vmatpush1.msra.mxu0 %v4880
    %5154 = vmatprep.subr.mxu0 0.0
    %5155 = vmatpush1.msra.mxu0 %v4881
    %5156 = vmatprep.subr.mxu0 0.0
    %5157 = vmatpush1.msra.mxu0 %v4882
    %5158 = vmatprep.subr.mxu0 0.0
    %5159 = vmatpush1.msra.mxu0 %v4883
    %5160 = vmatprep.subr.mxu0 0.0
    %5161 = vmatpush1.msra.mxu0 %v4884
    %5162 = vmatprep.subr.mxu0 0.0
    %5163 = vmatpush1.msra.mxu0 %v4885
    %5164 = vmatprep.subr.mxu0 0.0
    %5165 = vmatpush1.msra.mxu0 %v4886
    %5166 = vmatprep.subr.mxu0 0.0
    %5167 = vmatpush1.msra.mxu0 %v4887
    %5168 = vmatprep.subr.mxu0 0.0
    %5169 = vmatpush1.msra.mxu0 %v4888
    %5170 = vmatprep.subr.mxu0 0.0
    %5171 = vmatpush1.msra.mxu0 %v4889
    %5172 = vmatprep.subr.mxu0 0.0
    %5173 = vmatpush1.msra.mxu0 %v4890
    %5174 = vmatprep.subr.mxu0 0.0
    %5175 = vmatpush1.msra.mxu0 %v4891
    %5176 = vmatprep.subr.mxu0 0.0
    %5177 = vmatpush1.msra.mxu0 %v4892
    %5178 = vmatprep.subr.mxu0 0.0
    %5179 = vmatpush1.msra.mxu0 %v4893
    %5180 = vmatprep.mubr.f32.mxu0 %v4783
    %5181 = vmatmul.mubr.f32.gmra.mrb[0].mxu0 %v4782
    %v5182 = vpop.f32.mrb[0].mxu0
    %v5183 = vadd.f32 %v5108, %v5182
    %v5184 = vpop.f32.mrb[0].mxu0
    %5185 = vmatprep.mubr.f32.mxu0 %v4793
    %5186 = vmatmul.mubr.f32.gmra.mrb[0].mxu0 %v4792
    %v5187 = vpop.f32.mrb[0].mxu0
    %v5188 = vadd.f32 %v5113, %v5187
    %v5189 = vpop.f32.mrb[0].mxu0
    %5190 = vdwg.mxu0
    %5191 = vmatprep.subr.mxu0 0.0
    %5192 = vmatpush1.msra.mxu0 %v4894
    %5193 = vmatprep.subr.mxu0 0.0
    %5194 = vmatpush1.msra.mxu0 %v4895
    %5195 = vmatprep.subr.mxu0 0.0
    %5196 = vmatpush1.msra.mxu0 %v4896
    %5197 = vmatprep.subr.mxu0 0.0
    %5198 = vmatpush1.msra.mxu0 %v4897
    %5199 = vmatprep.subr.mxu0 0.0
    %5200 = vmatpush1.msra.mxu0 %v4898
    %5201 = vmatprep.subr.mxu0 0.0
    %5202 = vmatpush1.msra.mxu0 %v4899
    %5203 = vmatprep.subr.mxu0 0.0
    %5204 = vmatpush1.msra.mxu0 %v4900
    %5205 = vmatprep.subr.mxu0 0.0
    %5206 = vmatpush1.msra.mxu0 %v4901
    %5207 = vmatprep.subr.mxu0 0.0
    %5208 = vmatpush1.msra.mxu0 %v4902
    %5209 = vmatprep.subr.mxu0 0.0
    %5210 = vmatpush1.msra.mxu0 %v4903
    %5211 = vmatprep.subr.mxu0 0.0
    %5212 = vmatpush1.msra.mxu0 %v4904
    %5213 = vmatprep.subr.mxu0 0.0
    %5214 = vmatpush1.msra.mxu0 %v4905
    %5215 = vmatprep.subr.mxu0 0.0
    %5216 = vmatpush1.msra.mxu0 %v4906
    %5217 = vmatprep.subr.mxu0 0.0
    %5218 = vmatpush1.msra.mxu0 %v4907
    %5219 = vmatprep.subr.mxu0 0.0
    %5220 = vmatpush1.msra.mxu0 %v4908
    %5221 = vmatprep.subr.mxu0 0.0
    %5222 = vmatpush1.msra.mxu0 %v4909
    %5223 = vmatprep.subr.mxu0 0.0
    %5224 = vmatpush1.msra.mxu0 %v4910
    %5225 = vmatprep.subr.mxu0 0.0
    %5226 = vmatpush1.msra.mxu0 %v4911
    %5227 = vmatprep.subr.mxu0 0.0
    %5228 = vmatpush1.msra.mxu0 %v4912
    %5229 = vmatprep.subr.mxu0 0.0
    %5230 = vmatpush1.msra.mxu0 %v4913
    %5231 = vmatprep.subr.mxu0 0.0
    %5232 = vmatpush1.msra.mxu0 %v4914
    %5233 = vmatprep.subr.mxu0 0.0
    %5234 = vmatpush1.msra.mxu0 %v4915
    %5235 = vmatprep.subr.mxu0 0.0
    %5236 = vmatpush1.msra.mxu0 %v4916
    %5237 = vmatprep.subr.mxu0 0.0
    %5238 = vmatpush1.msra.mxu0 %v4917
    %5239 = vmatprep.subr.mxu0 0.0
    %5240 = vmatpush1.msra.mxu0 %v4918
    %5241 = vmatprep.subr.mxu0 0.0
    %5242 = vmatpush1.msra.mxu0 %v4919
    %5243 = vmatprep.subr.mxu0 0.0
    %5244 = vmatpush1.msra.mxu0 %v4920
    %5245 = vmatprep.subr.mxu0 0.0
    %5246 = vmatpush1.msra.mxu0 %v4921
    %5247 = vmatprep.subr.mxu0 0.0
    %5248 = vmatpush1.msra.mxu0 %v4922
    %5249 = vmatprep.subr.mxu0 0.0
    %5250 = vmatpush1.msra.mxu0 %v4923
    %5251 = vmatprep.subr.mxu0 0.0
    %5252 = vmatpush1.msra.mxu0 %v4924
    %5253 = vmatprep.subr.mxu0 0.0
    %5254 = vmatpush1.msra.mxu0 %v4925
    %5255 = vmatprep.mubr.f32.mxu0 %v4785
    %5256 = vmatmul.mubr.f32.gmra.mrb[0].mxu0 %v4784
    %v5257 = vpop.f32.mrb[0].mxu0
    %v5258 = vadd.f32 %v5183, %v5257
    %v5259 = vpop.f32.mrb[0].mxu0
    %5260 = vmatprep.mubr.f32.mxu0 %v4795
    %5261 = vmatmul.mubr.f32.gmra.mrb[0].mxu0 %v4794
    %v5262 = vpop.f32.mrb[0].mxu0
    %v5263 = vadd.f32 %v5188, %v5262
    %v5264 = vpop.f32.mrb[0].mxu0
    %5265 = vdwg.mxu0
    %5266 = vmatprep.subr.mxu0 0.0
    %5267 = vmatpush1.msra.mxu0 %v4926
    %5268 = vmatprep.subr.mxu0 0.0
    %5269 = vmatpush1.msra.mxu0 %v4927
    %5270 = vmatprep.subr.mxu0 0.0
    %5271 = vmatpush1.msra.mxu0 %v4928
    %5272 = vmatprep.subr.mxu0 0.0
    %5273 = vmatpush1.msra.mxu0 %v4929
    %5274 = vmatprep.subr.mxu0 0.0
    %5275 = vmatpush1.msra.mxu0 %v4930
    %5276 = vmatprep.subr.mxu0 0.0
    %5277 = vmatpush1.msra.mxu0 %v4931
    %5278 = vmatprep.subr.mxu0 0.0
    %5279 = vmatpush1.msra.mxu0 %v4932
    %5280 = vmatprep.subr.mxu0 0.0
    %5281 = vmatpush1.msra.mxu0 %v4933
    %5282 = vmatprep.subr.mxu0 0.0
    %5283 = vmatpush1.msra.mxu0 %v4934
    %5284 = vmatprep.subr.mxu0 0.0
    %5285 = vmatpush1.msra.mxu0 %v4935
    %5286 = vmatprep.subr.mxu0 0.0
    %5287 = vmatpush1.msra.mxu0 %v4936
    %5288 = vmatprep.subr.mxu0 0.0
    %5289 = vmatpush1.msra.mxu0 %v4937
    %5290 = vmatprep.subr.mxu0 0.0
    %5291 = vmatpush1.msra.mxu0 %v4938
    %5292 = vmatprep.subr.mxu0 0.0
    %5293 = vmatpush1.msra.mxu0 %v4939
    %5294 = vmatprep.subr.mxu0 0.0
    %5295 = vmatpush1.msra.mxu0 %v4940
    %5296 = vmatprep.subr.mxu0 0.0
    %5297 = vmatpush1.msra.mxu0 %v4941
    %5298 = vmatprep.subr.mxu0 0.0
    %5299 = vmatpush1.msra.mxu0 %v4942
    %5300 = vmatprep.subr.mxu0 0.0
    %5301 = vmatpush1.msra.mxu0 %v4943
    %5302 = vmatprep.subr.mxu0 0.0
    %5303 = vmatpush1.msra.mxu0 %v4944
    %5304 = vmatprep.subr.mxu0 0.0
    %5305 = vmatpush1.msra.mxu0 %v4945
    %5306 = vmatprep.subr.mxu0 0.0
    %5307 = vmatpush1.msra.mxu0 %v4946
    %5308 = vmatprep.subr.mxu0 0.0
    %5309 = vmatpush1.msra.mxu0 %v4947
    %5310 = vmatprep.subr.mxu0 0.0
    %5311 = vmatpush1.msra.mxu0 %v4948
    %5312 = vmatprep.subr.mxu0 0.0
    %5313 = vmatpush1.msra.mxu0 %v4949
    %5314 = vmatprep.subr.mxu0 0.0
    %5315 = vmatpush1.msra.mxu0 %v4950
    %5316 = vmatprep.subr.mxu0 0.0
    %5317 = vmatpush1.msra.mxu0 %v4951
    %5318 = vmatprep.subr.mxu0 0.0
    %5319 = vmatpush1.msra.mxu0 %v4952
    %5320 = vmatprep.subr.mxu0 0.0
    %5321 = vmatpush1.msra.mxu0 %v4953
    %5322 = vmatprep.subr.mxu0 0.0
    %5323 = vmatpush1.msra.mxu0 %v4964
    %5324 = vmatprep.subr.mxu0 0.0
    %5325 = vmatpush1.msra.mxu0 0.0
    %5326 = vmatprep.subr.mxu0 0.0
    %5327 = vmatpush1.msra.mxu0 0.0
    %5328 = vmatprep.subr.mxu0 0.0
    %5329 = vmatpush1.msra.mxu0 0.0
    %5330 = vmatprep.mubr.f32.mxu0 %v4957
    %5331 = vmatmul.mubr.f32.gmra.mrb[0].mxu0 %v4786
    %v5332 = vpop.f32.mrb[0].mxu0
    %v5333 = vadd.f32 %v5258, %v5332
    %v5334 = vpop.f32.mrb[0].mxu0
    %5335 = vmatprep.mubr.f32.mxu0 %v4960
    %5336 = vmatmul.mubr.f32.gmra.mrb[0].mxu0 %v4796
    %v5337 = vpop.f32.mrb[0].mxu0
    %v5338 = vadd.f32 %v5263, %v5337
    %v5339 = vpop.f32.mrb[0].mxu0
    %5340 = vdwg.mxu0
    %vm5341 = vcmask 15360
    %5342 = vst.msk [vmem:[#allocation7] sm:$0xff] %vm5341, %v5333
    %5343 = vst.msk [vmem:[#allocation7 + $0x8] sm:$0xff] %vm5341, %v5338
    %5346 = vrot.lane.b32.xlu0 %v5333, 126
    %v5347 = vpop.permute.xlu0 %5346
    %5348 = vrot.lane.b32.xlu0 %v5338, 126
    %v5349 = vpop.permute.xlu0 %5348
    %5352 = vst.msk [vmem:[#allocation7 + $0x10] sm:$0xff] %vm5341, %v5347
    %5353 = vst.msk [vmem:[#allocation7 + $0x18] sm:$0xff] %vm5341, %v5349
    %5354 = vrot.lane.b32.xlu0 %v5333, 124
    %v5355 = vpop.permute.xlu0 %5354
    %5356 = vrot.lane.b32.xlu0 %v5338, 124
    %v5357 = vpop.permute.xlu0 %5356
    %5360 = vst.msk [vmem:[#allocation7 + $0x20] sm:$0xff] %vm5341, %v5355
    %5361 = vst.msk [vmem:[#allocation7 + $0x28] sm:$0xff] %vm5341, %v5357
    %5362 = vrot.lane.b32.xlu0 %v5333, 122
    %v5363 = vpop.permute.xlu0 %5362
    %5364 = vrot.lane.b32.xlu0 %v5338, 122
    %v5365 = vpop.permute.xlu0 %5364
    %5368 = vst.msk [vmem:[#allocation7 + $0x30] sm:$0xff] %vm5341, %v5363
    %5369 = vst.msk [vmem:[#allocation7 + $0x38] sm:$0xff] %vm5341, %v5365
    %5370 = vrot.lane.b32.xlu0 %v5333, 120
    %v5371 = vpop.permute.xlu0 %5370
    %5372 = vrot.lane.b32.xlu0 %v5338, 120
    %v5373 = vpop.permute.xlu0 %5372
    %5376 = vst.msk [vmem:[#allocation7 + $0x40] sm:$0xff] %vm5341, %v5371
    %5377 = vst.msk [vmem:[#allocation7 + $0x48] sm:$0xff] %vm5341, %v5373
    %5378 = vrot.lane.b32.xlu0 %v5333, 118
    %v5379 = vpop.permute.xlu0 %5378
    %5380 = vrot.lane.b32.xlu0 %v5338, 118
    %v5381 = vpop.permute.xlu0 %5380
    %5384 = vst.msk [vmem:[#allocation7 + $0x50] sm:$0xff] %vm5341, %v5379
    %5385 = vst.msk [vmem:[#allocation7 + $0x58] sm:$0xff] %vm5341, %v5381
    %5386 = vrot.lane.b32.xlu0 %v5333, 116
    %v5387 = vpop.permute.xlu0 %5386
    %5388 = vrot.lane.b32.xlu0 %v5338, 116
    %v5389 = vpop.permute.xlu0 %5388
    %5392 = vst.msk [vmem:[#allocation7 + $0x60] sm:$0xff] %vm5341, %v5387
    %5393 = vst.msk [vmem:[#allocation7 + $0x68] sm:$0xff] %vm5341, %v5389
    %5394 = vrot.lane.b32.xlu0 %v5333, 114
    %v5395 = vpop.permute.xlu0 %5394
    %5396 = vrot.lane.b32.xlu0 %v5338, 114
    %v5397 = vpop.permute.xlu0 %5396
    %5400 = vst.msk [vmem:[#allocation7 + $0x70] sm:$0xff] %vm5341, %v5395
    %5401 = vst.msk [vmem:[#allocation7 + $0x78] sm:$0xff] %vm5341, %v5397
    %5402 = vrot.lane.b32.xlu0 %v5333, 112
    %v5403 = vpop.permute.xlu0 %5402
    %5404 = vrot.lane.b32.xlu0 %v5338, 112
    %v5405 = vpop.permute.xlu0 %5404
    %5408 = vst.msk [vmem:[#allocation7 + $0x80] sm:$0xff] %vm5341, %v5403
    %5409 = vst.msk [vmem:[#allocation7 + $0x88] sm:$0xff] %vm5341, %v5405
    %5410 = vrot.lane.b32.xlu0 %v5333, 110
    %v5411 = vpop.permute.xlu0 %5410
    %5412 = vrot.lane.b32.xlu0 %v5338, 110
    %v5413 = vpop.permute.xlu0 %5412
    %5416 = vst.msk [vmem:[#allocation7 + $0x90] sm:$0xff] %vm5341, %v5411
    %5417 = vst.msk [vmem:[#allocation7 + $0x98] sm:$0xff] %vm5341, %v5413
    %5418 = vrot.lane.b32.xlu0 %v5333, 108
    %v5419 = vpop.permute.xlu0 %5418
    %5420 = vrot.lane.b32.xlu0 %v5338, 108
    %v5421 = vpop.permute.xlu0 %5420
    %5424 = vst.msk [vmem:[#allocation7 + $0xa0] sm:$0xff] %vm5341, %v5419
    %5425 = vst.msk [vmem:[#allocation7 + $0xa8] sm:$0xff] %vm5341, %v5421
    %5426 = vrot.lane.b32.xlu0 %v5333, 106
    %v5427 = vpop.permute.xlu0 %5426
    %5428 = vrot.lane.b32.xlu0 %v5338, 106
    %v5429 = vpop.permute.xlu0 %5428
    %5432 = vst.msk [vmem:[#allocation7 + $0xb0] sm:$0xff] %vm5341, %v5427
    %5433 = vst.msk [vmem:[#allocation7 + $0xb8] sm:$0xff] %vm5341, %v5429
    %5434 = vrot.lane.b32.xlu0 %v5333, 104
    %v5435 = vpop.permute.xlu0 %5434
    %5436 = vrot.lane.b32.xlu0 %v5338, 104
    %v5437 = vpop.permute.xlu0 %5436
    %5440 = vst.msk [vmem:[#allocation7 + $0xc0] sm:$0xff] %vm5341, %v5435
    %5441 = vst.msk [vmem:[#allocation7 + $0xc8] sm:$0xff] %vm5341, %v5437
    %5442 = vrot.lane.b32.xlu0 %v5333, 102
    %v5443 = vpop.permute.xlu0 %5442
    %5444 = vrot.lane.b32.xlu0 %v5338, 102
    %v5445 = vpop.permute.xlu0 %5444
    %5448 = vst.msk [vmem:[#allocation7 + $0xd0] sm:$0xff] %vm5341, %v5443
    %5449 = vst.msk [vmem:[#allocation7 + $0xd8] sm:$0xff] %vm5341, %v5445
    %5450 = vrot.lane.b32.xlu0 %v5333, 100
    %v5451 = vpop.permute.xlu0 %5450
    %5452 = vrot.lane.b32.xlu0 %v5338, 100
    %v5453 = vpop.permute.xlu0 %5452
    %5456 = vst.msk [vmem:[#allocation7 + $0xe0] sm:$0xff] %vm5341, %v5451
    %5457 = vst.msk [vmem:[#allocation7 + $0xe8] sm:$0xff] %vm5341, %v5453
    %5458 = vrot.lane.b32.xlu0 %v5333, 98
    %v5459 = vpop.permute.xlu0 %5458
    %5460 = vrot.lane.b32.xlu0 %v5338, 98
    %v5461 = vpop.permute.xlu0 %5460
    %5464 = vst.msk [vmem:[#allocation7 + $0xf0] sm:$0xff] %vm5341, %v5459
    %5465 = vst.msk [vmem:[#allocation7 + $0xf8] sm:$0xff] %vm5341, %v5461
    %5466 = vrot.lane.b32.xlu0 %v5333, 96
    %v5467 = vpop.permute.xlu0 %5466
    %5468 = vrot.lane.b32.xlu0 %v5338, 96
    %v5469 = vpop.permute.xlu0 %5468
    %5472 = vst.msk [vmem:[#allocation7 + $0x100] sm:$0xff] %vm5341, %v5467
    %5473 = vst.msk [vmem:[#allocation7 + $0x108] sm:$0xff] %vm5341, %v5469
    %5474 = vrot.lane.b32.xlu0 %v5333, 94
    %v5475 = vpop.permute.xlu0 %5474
    %5476 = vrot.lane.b32.xlu0 %v5338, 94
    %v5477 = vpop.permute.xlu0 %5476
    %5480 = vst.msk [vmem:[#allocation7 + $0x110] sm:$0xff] %vm5341, %v5475
    %5481 = vst.msk [vmem:[#allocation7 + $0x118] sm:$0xff] %vm5341, %v5477
    %5482 = vrot.lane.b32.xlu0 %v5333, 92
    %v5483 = vpop.permute.xlu0 %5482
    %5484 = vrot.lane.b32.xlu0 %v5338, 92
    %v5485 = vpop.permute.xlu0 %5484
    %5488 = vst.msk [vmem:[#allocation7 + $0x120] sm:$0xff] %vm5341, %v5483
    %5489 = vst.msk [vmem:[#allocation7 + $0x128] sm:$0xff] %vm5341, %v5485
    %5490 = vrot.lane.b32.xlu0 %v5333, 90
    %v5491 = vpop.permute.xlu0 %5490
    %5492 = vrot.lane.b32.xlu0 %v5338, 90
    %v5493 = vpop.permute.xlu0 %5492
    %5496 = vst.msk [vmem:[#allocation7 + $0x130] sm:$0xff] %vm5341, %v5491
    %5497 = vst.msk [vmem:[#allocation7 + $0x138] sm:$0xff] %vm5341, %v5493
    %5498 = vrot.lane.b32.xlu0 %v5333, 88
    %v5499 = vpop.permute.xlu0 %5498
    %5500 = vrot.lane.b32.xlu0 %v5338, 88
    %v5501 = vpop.permute.xlu0 %5500
    %5504 = vst.msk [vmem:[#allocation7 + $0x140] sm:$0xff] %vm5341, %v5499
    %5505 = vst.msk [vmem:[#allocation7 + $0x148] sm:$0xff] %vm5341, %v5501
    %5506 = vrot.lane.b32.xlu0 %v5333, 86
    %v5507 = vpop.permute.xlu0 %5506
    %5508 = vrot.lane.b32.xlu0 %v5338, 86
    %v5509 = vpop.permute.xlu0 %5508
    %5512 = vst.msk [vmem:[#allocation7 + $0x150] sm:$0xff] %vm5341, %v5507
    %5513 = vst.msk [vmem:[#allocation7 + $0x158] sm:$0xff] %vm5341, %v5509
    %5514 = vrot.lane.b32.xlu0 %v5333, 84
    %v5515 = vpop.permute.xlu0 %5514
    %5516 = vrot.lane.b32.xlu0 %v5338, 84
    %v5517 = vpop.permute.xlu0 %5516
    %5520 = vst.msk [vmem:[#allocation7 + $0x160] sm:$0xff] %vm5341, %v5515
    %5521 = vst.msk [vmem:[#allocation7 + $0x168] sm:$0xff] %vm5341, %v5517
    %5522 = vrot.lane.b32.xlu0 %v5333, 82
    %v5523 = vpop.permute.xlu0 %5522
    %5524 = vrot.lane.b32.xlu0 %v5338, 82
    %v5525 = vpop.permute.xlu0 %5524
    %5528 = vst.msk [vmem:[#allocation7 + $0x170] sm:$0xff] %vm5341, %v5523
    %5529 = vst.msk [vmem:[#allocation7 + $0x178] sm:$0xff] %vm5341, %v5525
    %5530 = vrot.lane.b32.xlu0 %v5333, 80
    %v5531 = vpop.permute.xlu0 %5530
    %5532 = vrot.lane.b32.xlu0 %v5338, 80
    %v5533 = vpop.permute.xlu0 %5532
    %5536 = vst.msk [vmem:[#allocation7 + $0x180] sm:$0xff] %vm5341, %v5531
    %5537 = vst.msk [vmem:[#allocation7 + $0x188] sm:$0xff] %vm5341, %v5533
    %v5538 = vld [vmem:[%s6] sm:$0xff]
    %v5539 = vld [vmem:[%s6 + $0x8] sm:$0xff]
    %v5540 = vld [vmem:[%s6 + $0x10] sm:$0xff]
    %v5541 = vld [vmem:[%s6 + $0x18] sm:$0xff]
    %v5542 = vld [vmem:[%s6 + $0x20] sm:$0xff]
    %v5543 = vld [vmem:[%s6 + $0x28] sm:$0xff]
    %v5544 = vld [vmem:[%s6 + $0x30] sm:$0xff]
    %v5545 = vld [vmem:[%s6 + $0x38] sm:$0xff]
    %v5546 = vld [vmem:[%s6 + $0x40] sm:$0xff]
    %v5547 = vld [vmem:[%s6 + $0x48] sm:$0xff]
    %v5548 = vld [vmem:[%s6 + $0x50] sm:$0xff]
    %v5549 = vld [vmem:[%s6 + $0x58] sm:$0xff]
    %v5550 = vld [vmem:[%s6 + $0x60] sm:$0xff]
    %v5551 = vld [vmem:[%s6 + $0x68] sm:$0xff]
    %v5552 = vld [vmem:[%s6 + $0x70] sm:$0xff]
    %v5553 = vld [vmem:[%s6 + $0x78] sm:$0xff]
    %v5554 = vld [vmem:[#allocation7] sm:$0xff]
    %v5555 = vld [vmem:[#allocation7 + $0x8] sm:$0xff]
    %v5556 = vld [vmem:[#allocation7 + $0x10] sm:$0xff]
    %v5557 = vld [vmem:[#allocation7 + $0x18] sm:$0xff]
    %v5558 = vld [vmem:[#allocation7 + $0x20] sm:$0xff]
    %v5559 = vld [vmem:[#allocation7 + $0x28] sm:$0xff]
    %v5560 = vld [vmem:[#allocation7 + $0x30] sm:$0xff]
    %v5561 = vld [vmem:[#allocation7 + $0x38] sm:$0xff]
    %v5562 = vld [vmem:[#allocation7 + $0x40] sm:$0xff]
    %v5563 = vld [vmem:[#allocation7 + $0x48] sm:$0xff]
    %v5564 = vld [vmem:[#allocation7 + $0x50] sm:$0xff]
    %v5565 = vld [vmem:[#allocation7 + $0x58] sm:$0xff]
    %v5566 = vld [vmem:[#allocation7 + $0x60] sm:$0xff]
    %v5567 = vld [vmem:[#allocation7 + $0x68] sm:$0xff]
    %v5568 = vld [vmem:[#allocation7 + $0x70] sm:$0xff]
    %v5569 = vld [vmem:[#allocation7 + $0x78] sm:$0xff]
    %v5570 = vld [vmem:[#allocation7 + $0x80] sm:$0xff]
    %v5571 = vld [vmem:[#allocation7 + $0x88] sm:$0xff]
    %v5572 = vld [vmem:[#allocation7 + $0x90] sm:$0xff]
    %v5573 = vld [vmem:[#allocation7 + $0x98] sm:$0xff]
    %v5574 = vld [vmem:[#allocation7 + $0xa0] sm:$0xff]
    %v5575 = vld [vmem:[#allocation7 + $0xa8] sm:$0xff]
    %v5576 = vld [vmem:[#allocation7 + $0xb0] sm:$0xff]
    %v5577 = vld [vmem:[#allocation7 + $0xb8] sm:$0xff]
    %v5578 = vld [vmem:[#allocation7 + $0xc0] sm:$0xff]
    %v5579 = vld [vmem:[#allocation7 + $0xc8] sm:$0xff]
    %v5580 = vld [vmem:[#allocation7 + $0xd0] sm:$0xff]
    %v5581 = vld [vmem:[#allocation7 + $0xd8] sm:$0xff]
    %v5582 = vld [vmem:[#allocation7 + $0xe0] sm:$0xff]
    %v5583 = vld [vmem:[#allocation7 + $0xe8] sm:$0xff]
    %v5584 = vld [vmem:[#allocation7 + $0xf0] sm:$0xff]
    %v5585 = vld [vmem:[#allocation7 + $0xf8] sm:$0xff]
    %v5586 = vld [vmem:[#allocation7 + $0x100] sm:$0xff]
    %v5587 = vld [vmem:[#allocation7 + $0x108] sm:$0xff]
    %v5588 = vld [vmem:[#allocation7 + $0x110] sm:$0xff]
    %v5589 = vld [vmem:[#allocation7 + $0x118] sm:$0xff]
    %v5590 = vld [vmem:[#allocation7 + $0x120] sm:$0xff]
    %v5591 = vld [vmem:[#allocation7 + $0x128] sm:$0xff]
    %v5592 = vld [vmem:[#allocation7 + $0x130] sm:$0xff]
    %v5593 = vld [vmem:[#allocation7 + $0x138] sm:$0xff]
    %v5594 = vld [vmem:[#allocation7 + $0x140] sm:$0xff]
    %v5595 = vld [vmem:[#allocation7 + $0x148] sm:$0xff]
    %v5596 = vld [vmem:[#allocation7 + $0x150] sm:$0xff]
    %v5597 = vld [vmem:[#allocation7 + $0x158] sm:$0xff]
    %v5598 = vld [vmem:[#allocation7 + $0x160] sm:$0xff]
    %v5599 = vld [vmem:[#allocation7 + $0x168] sm:$0xff]
    %v5600 = vld [vmem:[#allocation7 + $0x170] sm:$0xff]
    %v5601 = vld [vmem:[#allocation7 + $0x178] sm:$0xff]
    %v5602 = vld [vmem:[#allocation7 + $0x180] sm:$0xff]
    %v5603 = vld [vmem:[#allocation7 + $0x188] sm:$0xff]
    %v5604 = vld [vmem:[%s7] sm:$0xff]
    %v5605 = vld [vmem:[%s7 + $0x8] sm:$0xff]
    %v5606 = vld [vmem:[%s7 + $0x10] sm:$0xff]
    %v5607 = vld [vmem:[%s7 + $0x18] sm:$0xff]
    %5609 = vset.pattern.permute.xlu0 0
    %5610 = vperm.xlu0 %5609, %v5604
    %v5611 = vpop.permute.xlu0 %5610
    %5614 = vset.pattern.permute.xlu0 0
    %5615 = vperm.xlu0 %5614, %v5605
    %v5616 = vpop.permute.xlu0 %5615
    %5619 = vset.pattern.permute.xlu0 0
    %5620 = vperm.xlu0 %5619, %v5606
    %v5621 = vpop.permute.xlu0 %5620
    %5624 = vset.pattern.permute.xlu0 0
    %5625 = vperm.xlu0 %5624, %v5607
    %v5626 = vpop.permute.xlu0 %5625
    %vm5628 = vcmask 130048
    %v5630 = vsel %vm5628, %v5541, 0
    %v5633 = vsel %vm5628, %v5545, 0
    %v5636 = vsel %vm5628, %v5549, 0
    %v5639 = vsel %vm5628, %v5553, 0
    %5641 = vmatprep.subr.mxu0 0.0
    %5642 = vmatpush1.msra.mxu0 %v5554
    %5643 = vmatprep.subr.mxu0 0.0
    %5644 = vmatpush1.msra.mxu0 %v5555
    %5645 = vmatprep.subr.mxu0 0.0
    %5646 = vmatpush1.msra.mxu0 %v5556
    %5647 = vmatprep.subr.mxu0 0.0
    %5648 = vmatpush1.msra.mxu0 %v5557
    %5649 = vmatprep.subr.mxu0 0.0
    %5650 = vmatpush1.msra.mxu0 %v5558
    %5651 = vmatprep.subr.mxu0 0.0
    %5652 = vmatpush1.msra.mxu0 %v5559
    %5653 = vmatprep.subr.mxu0 0.0
    %5654 = vmatpush1.msra.mxu0 %v5560
    %5655 = vmatprep.subr.mxu0 0.0
    %5656 = vmatpush1.msra.mxu0 %v5561
    %5657 = vmatprep.subr.mxu0 0.0
    %5658 = vmatpush1.msra.mxu0 %v5562
    %5659 = vmatprep.subr.mxu0 0.0
    %5660 = vmatpush1.msra.mxu0 %v5563
    %5661 = vmatprep.subr.mxu0 0.0
    %5662 = vmatpush1.msra.mxu0 %v5564
    %5663 = vmatprep.subr.mxu0 0.0
    %5664 = vmatpush1.msra.mxu0 %v5565
    %5665 = vmatprep.subr.mxu0 0.0
    %5666 = vmatpush1.msra.mxu0 %v5566
    %5667 = vmatprep.subr.mxu0 0.0
    %5668 = vmatpush1.msra.mxu0 %v5567
    %5669 = vmatprep.subr.mxu0 0.0
    %5670 = vmatpush1.msra.mxu0 %v5568
    %5671 = vmatprep.subr.mxu0 0.0
    %5672 = vmatpush1.msra.mxu0 %v5569
    %5673 = vmatprep.subr.mxu0 0.0
    %5674 = vmatpush1.msra.mxu0 %v5570
    %5675 = vmatprep.subr.mxu0 0.0
    %5676 = vmatpush1.msra.mxu0 %v5571
    %5677 = vmatprep.subr.mxu0 0.0
    %5678 = vmatpush1.msra.mxu0 %v5572
    %5679 = vmatprep.subr.mxu0 0.0
    %5680 = vmatpush1.msra.mxu0 %v5573
    %5681 = vmatprep.subr.mxu0 0.0
    %5682 = vmatpush1.msra.mxu0 %v5574
    %5683 = vmatprep.subr.mxu0 0.0
    %5684 = vmatpush1.msra.mxu0 %v5575
    %5685 = vmatprep.subr.mxu0 0.0
    %5686 = vmatpush1.msra.mxu0 %v5576
    %5687 = vmatprep.subr.mxu0 0.0
    %5688 = vmatpush1.msra.mxu0 %v5577
    %5689 = vmatprep.subr.mxu0 0.0
    %5690 = vmatpush1.msra.mxu0 %v5578
    %5691 = vmatprep.subr.mxu0 0.0
    %5692 = vmatpush1.msra.mxu0 %v5579
    %5693 = vmatprep.subr.mxu0 0.0
    %5694 = vmatpush1.msra.mxu0 %v5580
    %5695 = vmatprep.subr.mxu0 0.0
    %5696 = vmatpush1.msra.mxu0 %v5581
    %5697 = vmatprep.subr.mxu0 0.0
    %5698 = vmatpush1.msra.mxu0 %v5582
    %5699 = vmatprep.subr.mxu0 0.0
    %5700 = vmatpush1.msra.mxu0 %v5583
    %5701 = vmatprep.subr.mxu0 0.0
    %5702 = vmatpush1.msra.mxu0 %v5584
    %5703 = vmatprep.subr.mxu0 0.0
    %5704 = vmatpush1.msra.mxu0 %v5585
    %5705 = vmatprep.mubr.f32.mxu0 %v5539
    %5706 = vmatmul.mubr.f32.gmra.mrb[0].mxu0 %v5538
    %v5707 = vpop.f32.mrb[0].mxu0
    %v5708 = vadd.f32 %v5611, %v5707
    %v5709 = vpop.f32.mrb[0].mxu0
    %5710 = vmatprep.mubr.f32.mxu0 %v5543
    %5711 = vmatmul.mubr.f32.gmra.mrb[0].mxu0 %v5542
    %v5712 = vpop.f32.mrb[0].mxu0
    %v5713 = vadd.f32 %v5616, %v5712
    %v5714 = vpop.f32.mrb[0].mxu0
    %5715 = vmatprep.mubr.f32.mxu0 %v5547
    %5716 = vmatmul.mubr.f32.gmra.mrb[0].mxu0 %v5546
    %v5717 = vpop.f32.mrb[0].mxu0
    %v5718 = vadd.f32 %v5621, %v5717
    %v5719 = vpop.f32.mrb[0].mxu0
    %5720 = vmatprep.mubr.f32.mxu0 %v5551
    %5721 = vmatmul.mubr.f32.gmra.mrb[0].mxu0 %v5550
    %v5722 = vpop.f32.mrb[0].mxu0
    %v5723 = vadd.f32 %v5626, %v5722
    %v5724 = vpop.f32.mrb[0].mxu0
    %5725 = vdwg.mxu0
    %5726 = vmatprep.subr.mxu0 0.0
    %5727 = vmatpush1.msra.mxu0 %v5586
    %5728 = vmatprep.subr.mxu0 0.0
    %5729 = vmatpush1.msra.mxu0 %v5587
    %5730 = vmatprep.subr.mxu0 0.0
    %5731 = vmatpush1.msra.mxu0 %v5588
    %5732 = vmatprep.subr.mxu0 0.0
    %5733 = vmatpush1.msra.mxu0 %v5589
    %5734 = vmatprep.subr.mxu0 0.0
    %5735 = vmatpush1.msra.mxu0 %v5590
    %5736 = vmatprep.subr.mxu0 0.0
    %5737 = vmatpush1.msra.mxu0 %v5591
    %5738 = vmatprep.subr.mxu0 0.0
    %5739 = vmatpush1.msra.mxu0 %v5592
    %5740 = vmatprep.subr.mxu0 0.0
    %5741 = vmatpush1.msra.mxu0 %v5593
    %5742 = vmatprep.subr.mxu0 0.0
    %5743 = vmatpush1.msra.mxu0 %v5594
    %5744 = vmatprep.subr.mxu0 0.0
    %5745 = vmatpush1.msra.mxu0 %v5595
    %5746 = vmatprep.subr.mxu0 0.0
    %5747 = vmatpush1.msra.mxu0 %v5596
    %5748 = vmatprep.subr.mxu0 0.0
    %5749 = vmatpush1.msra.mxu0 %v5597
    %5750 = vmatprep.subr.mxu0 0.0
    %5751 = vmatpush1.msra.mxu0 %v5598
    %5752 = vmatprep.subr.mxu0 0.0
    %5753 = vmatpush1.msra.mxu0 %v5599
    %5754 = vmatprep.subr.mxu0 0.0
    %5755 = vmatpush1.msra.mxu0 %v5600
    %5756 = vmatprep.subr.mxu0 0.0
    %5757 = vmatpush1.msra.mxu0 %v5601
    %5758 = vmatprep.subr.mxu0 0.0
    %5759 = vmatpush1.msra.mxu0 %v5602
    %5760 = vmatprep.subr.mxu0 0.0
    %5761 = vmatpush1.msra.mxu0 %v5603
    %5762 = vmatprep.subr.mxu0 0.0
    %5763 = vmatpush1.msra.mxu0 0.0
    %5764 = vmatprep.subr.mxu0 0.0
    %5765 = vmatpush1.msra.mxu0 0.0
    %5766 = vmatprep.subr.mxu0 0.0
    %5767 = vmatpush1.msra.mxu0 0.0
    %5768 = vmatprep.subr.mxu0 0.0
    %5769 = vmatpush1.msra.mxu0 0.0
    %5770 = vmatprep.subr.mxu0 0.0
    %5771 = vmatpush1.msra.mxu0 0.0
    %5772 = vmatprep.subr.mxu0 0.0
    %5773 = vmatpush1.msra.mxu0 0.0
    %5774 = vmatprep.subr.mxu0 0.0
    %5775 = vmatpush1.msra.mxu0 0.0
    %5776 = vmatprep.subr.mxu0 0.0
    %5777 = vmatpush1.msra.mxu0 0.0
    %5778 = vmatprep.subr.mxu0 0.0
    %5779 = vmatpush1.msra.mxu0 0.0
    %5780 = vmatprep.subr.mxu0 0.0
    %5781 = vmatpush1.msra.mxu0 0.0
    %5782 = vmatprep.subr.mxu0 0.0
    %5783 = vmatpush1.msra.mxu0 0.0
    %5784 = vmatprep.subr.mxu0 0.0
    %5785 = vmatpush1.msra.mxu0 0.0
    %5786 = vmatprep.subr.mxu0 0.0
    %5787 = vmatpush1.msra.mxu0 0.0
    %5788 = vmatprep.subr.mxu0 0.0
    %5789 = vmatpush1.msra.mxu0 0.0
    %5790 = vmatprep.mubr.f32.mxu0 %v5630
    %5791 = vmatmul.mubr.f32.gmra.mrb[0].mxu0 %v5540
    %v5792 = vpop.f32.mrb[0].mxu0
    %v5793 = vadd.f32 %v5708, %v5792
    %v5794 = vpop.f32.mrb[0].mxu0
    %5795 = vmatprep.mubr.f32.mxu0 %v5633
    %5796 = vmatmul.mubr.f32.gmra.mrb[0].mxu0 %v5544
    %v5797 = vpop.f32.mrb[0].mxu0
    %v5798 = vadd.f32 %v5713, %v5797
    %v5799 = vpop.f32.mrb[0].mxu0
    %5800 = vmatprep.mubr.f32.mxu0 %v5636
    %5801 = vmatmul.mubr.f32.gmra.mrb[0].mxu0 %v5548
    %v5802 = vpop.f32.mrb[0].mxu0
    %v5803 = vadd.f32 %v5718, %v5802
    %v5804 = vpop.f32.mrb[0].mxu0
    %5805 = vmatprep.mubr.f32.mxu0 %v5639
    %5806 = vmatmul.mubr.f32.gmra.mrb[0].mxu0 %v5552
    %v5807 = vpop.f32.mrb[0].mxu0
    %v5808 = vadd.f32 %v5723, %v5807
    %v5809 = vpop.f32.mrb[0].mxu0
    %5810 = vdwg.mxu0
    %v5811 = vmax.f32 %v5793, 0.0
    %v5812 = vmax.f32 %v5798, 0.0
    %v5813 = vmax.f32 %v5803, 0.0
    %v5814 = vmax.f32 %v5808, 0.0
    %v5815 = vld [vmem:[%s8] sm:$0xff]
    %v5816 = vld [vmem:[%s8 + $0x8] sm:$0xff]
    %v5817 = vld [vmem:[%s8 + $0x10] sm:$0xff]
    %v5818 = vld [vmem:[%s8 + $0x18] sm:$0xff]
    %v5819 = vld [vmem:[%s1] sm:$0xff]
    %v5820 = vld [vmem:[%s1 + $0x8] sm:$0xff]
    %v5821 = vld [vmem:[%s9] sm:$0xff]
    %v5822 = vld [vmem:[%s9 + $0x8] sm:$0xff]
    %v5823 = vld [vmem:[%s9 + $0x10] sm:$0xff]
    %v5824 = vld [vmem:[%s9 + $0x18] sm:$0xff]
    %5826 = vset.pattern.permute.xlu0 0
    %5827 = vperm.xlu0 %5826, %v5821
    %v5828 = vpop.permute.xlu0 %5827
    %5831 = vset.pattern.permute.xlu0 0
    %5832 = vperm.xlu0 %5831, %v5822
    %v5833 = vpop.permute.xlu0 %5832
    %5836 = vset.pattern.permute.xlu0 0
    %5837 = vperm.xlu0 %5836, %v5823
    %v5838 = vpop.permute.xlu0 %5837
    %5841 = vset.pattern.permute.xlu0 0
    %5842 = vperm.xlu0 %5841, %v5824
    %v5843 = vpop.permute.xlu0 %5842
    %v5846 = vsel %vm5628, %v5815, 0
    %v5849 = vsel %vm5628, %v5816, 0
    %v5852 = vsel %vm5628, %v5817, 0
    %v5855 = vsel %vm5628, %v5818, 0
    %5857 = vmatprep.subr.mxu0 0.0
    %5858 = vmatpush1.msra.mxu0 %v5819
    %5859 = vmatprep.subr.mxu0 0.0
    %5860 = vmatpush1.msra.mxu0 %v5820
    %5861 = vmatprep.subr.mxu0 0.0
    %5862 = vmatpush1.msra.mxu0 0.0
    %5863 = vmatprep.subr.mxu0 0.0
    %5864 = vmatpush1.msra.mxu0 0.0
    %5865 = vmatprep.subr.mxu0 0.0
    %5866 = vmatpush1.msra.mxu0 0.0
    %5867 = vmatprep.subr.mxu0 0.0
    %5868 = vmatpush1.msra.mxu0 0.0
    %5869 = vmatprep.subr.mxu0 0.0
    %5870 = vmatpush1.msra.mxu0 0.0
    %5871 = vmatprep.subr.mxu0 0.0
    %5872 = vmatpush1.msra.mxu0 0.0
    %5873 = vmatprep.subr.mxu0 0.0
    %5874 = vmatpush1.msra.mxu0 0.0
    %5875 = vmatprep.subr.mxu0 0.0
    %5876 = vmatpush1.msra.mxu0 0.0
    %5877 = vmatprep.subr.mxu0 0.0
    %5878 = vmatpush1.msra.mxu0 0.0
    %5879 = vmatprep.subr.mxu0 0.0
    %5880 = vmatpush1.msra.mxu0 0.0
    %5881 = vmatprep.subr.mxu0 0.0
    %5882 = vmatpush1.msra.mxu0 0.0
    %5883 = vmatprep.subr.mxu0 0.0
    %5884 = vmatpush1.msra.mxu0 0.0
    %5885 = vmatprep.subr.mxu0 0.0
    %5886 = vmatpush1.msra.mxu0 0.0
    %5887 = vmatprep.subr.mxu0 0.0
    %5888 = vmatpush1.msra.mxu0 0.0
    %5889 = vmatprep.subr.mxu0 0.0
    %5890 = vmatpush1.msra.mxu0 0.0
    %5891 = vmatprep.subr.mxu0 0.0
    %5892 = vmatpush1.msra.mxu0 0.0
    %5893 = vmatprep.subr.mxu0 0.0
    %5894 = vmatpush1.msra.mxu0 0.0
    %5895 = vmatprep.subr.mxu0 0.0
    %5896 = vmatpush1.msra.mxu0 0.0
    %5897 = vmatprep.subr.mxu0 0.0
    %5898 = vmatpush1.msra.mxu0 0.0
    %5899 = vmatprep.subr.mxu0 0.0
    %5900 = vmatpush1.msra.mxu0 0.0
    %5901 = vmatprep.subr.mxu0 0.0
    %5902 = vmatpush1.msra.mxu0 0.0
    %5903 = vmatprep.subr.mxu0 0.0
    %5904 = vmatpush1.msra.mxu0 0.0
    %5905 = vmatprep.subr.mxu0 0.0
    %5906 = vmatpush1.msra.mxu0 0.0
    %5907 = vmatprep.subr.mxu0 0.0
    %5908 = vmatpush1.msra.mxu0 0.0
    %5909 = vmatprep.subr.mxu0 0.0
    %5910 = vmatpush1.msra.mxu0 0.0
    %5911 = vmatprep.subr.mxu0 0.0
    %5912 = vmatpush1.msra.mxu0 0.0
    %5913 = vmatprep.subr.mxu0 0.0
    %5914 = vmatpush1.msra.mxu0 0.0
    %5915 = vmatprep.subr.mxu0 0.0
    %5916 = vmatpush1.msra.mxu0 0.0
    %5917 = vmatprep.subr.mxu0 0.0
    %5918 = vmatpush1.msra.mxu0 0.0
    %5919 = vmatprep.subr.mxu0 0.0
    %5920 = vmatpush1.msra.mxu0 0.0
    %5921 = vmatprep.mubr.f32.mxu0 0.0
    %5922 = vmatmul.mubr.f32.gmra.mrb[0].mxu0 %v5846
    %v5923 = vpop.f32.mrb[0].mxu0
    %v5924 = vadd.f32 %v5828, %v5923
    %v5925 = vpop.f32.mrb[0].mxu0
    %5926 = vmatprep.mubr.f32.mxu0 0.0
    %5927 = vmatmul.mubr.f32.gmra.mrb[0].mxu0 %v5849
    %v5928 = vpop.f32.mrb[0].mxu0
    %v5929 = vadd.f32 %v5833, %v5928
    %v5930 = vpop.f32.mrb[0].mxu0
    %5931 = vmatprep.mubr.f32.mxu0 0.0
    %5932 = vmatmul.mubr.f32.gmra.mrb[0].mxu0 %v5852
    %v5933 = vpop.f32.mrb[0].mxu0
    %v5934 = vadd.f32 %v5838, %v5933
    %v5935 = vpop.f32.mrb[0].mxu0
    %5936 = vmatprep.mubr.f32.mxu0 0.0
    %5937 = vmatmul.mubr.f32.gmra.mrb[0].mxu0 %v5855
    %v5938 = vpop.f32.mrb[0].mxu0
    %v5939 = vadd.f32 %v5843, %v5938
    %v5940 = vpop.f32.mrb[0].mxu0
    %5941 = vdwg.mxu0
    %v5942 = vmax.f32 %v5924, 0.0
    %v5943 = vmax.f32 %v5929, 0.0
    %v5944 = vmax.f32 %v5934, 0.0
    %v5945 = vmax.f32 %v5939, 0.0
    %v5946 = vld [vmem:[%s10] sm:$0xff]
    %v5947 = vld [vmem:[%s10 + $0x8] sm:$0x1]
    %v5948 = vld [vmem:[%s11] sm:$0xff]
    %v5949 = vld [vmem:[%s11 + $0x8] sm:$0x1]
    %5951 = vset.pattern.permute.xlu0 0
    %5952 = vperm.xlu0 %5951, %v5948
    %v5953 = vpop.permute.xlu0 %5952
    %5956 = vset.pattern.permute.xlu0 0
    %5957 = vperm.xlu0 %5956, %v5949
    %v5958 = vpop.permute.xlu0 %5957
    %vm5960 = vcmask 523264
    %v5962 = vsel %vm5960, %v5946, 0
    %v5965 = vsel %vm5960, %v5947, 0
    %5967 = vmatprep.subr.mxu0 0.0
    %5968 = vmatpush1.msra.mxu0 %v5811
    %5969 = vmatprep.subr.mxu0 0.0
    %5970 = vmatpush1.msra.mxu0 %v5812
    %5971 = vmatprep.subr.mxu0 0.0
    %5972 = vmatpush1.msra.mxu0 %v5813
    %5973 = vmatprep.subr.mxu0 0.0
    %5974 = vmatpush1.msra.mxu0 %v5814
    %5975 = vmatprep.subr.mxu0 0.0
    %5976 = vmatpush1.msra.mxu0 %v5942
    %5977 = vmatprep.subr.mxu0 0.0
    %5978 = vmatpush1.msra.mxu0 %v5943
    %5979 = vmatprep.subr.mxu0 0.0
    %5980 = vmatpush1.msra.mxu0 %v5944
    %5981 = vmatprep.subr.mxu0 0.0
    %5982 = vmatpush1.msra.mxu0 %v5945
    %5983 = vmatprep.subr.mxu0 0.0
    %5984 = vmatpush1.msra.mxu0 0.0
    %5985 = vmatprep.subr.mxu0 0.0
    %5986 = vmatpush1.msra.mxu0 0.0
    %5987 = vmatprep.subr.mxu0 0.0
    %5988 = vmatpush1.msra.mxu0 0.0
    %5989 = vmatprep.subr.mxu0 0.0
    %5990 = vmatpush1.msra.mxu0 0.0
    %5991 = vmatprep.subr.mxu0 0.0
    %5992 = vmatpush1.msra.mxu0 0.0
    %5993 = vmatprep.subr.mxu0 0.0
    %5994 = vmatpush1.msra.mxu0 0.0
    %5995 = vmatprep.subr.mxu0 0.0
    %5996 = vmatpush1.msra.mxu0 0.0
    %5997 = vmatprep.subr.mxu0 0.0
    %5998 = vmatpush1.msra.mxu0 0.0
    %5999 = vmatprep.subr.mxu0 0.0
    %6000 = vmatpush1.msra.mxu0 0.0
    %6001 = vmatprep.subr.mxu0 0.0
    %6002 = vmatpush1.msra.mxu0 0.0
    %6003 = vmatprep.subr.mxu0 0.0
    %6004 = vmatpush1.msra.mxu0 0.0
    %6005 = vmatprep.subr.mxu0 0.0
    %6006 = vmatpush1.msra.mxu0 0.0
    %6007 = vmatprep.subr.mxu0 0.0
    %6008 = vmatpush1.msra.mxu0 0.0
    %6009 = vmatprep.subr.mxu0 0.0
    %6010 = vmatpush1.msra.mxu0 0.0
    %6011 = vmatprep.subr.mxu0 0.0
    %6012 = vmatpush1.msra.mxu0 0.0
    %6013 = vmatprep.subr.mxu0 0.0
    %6014 = vmatpush1.msra.mxu0 0.0
    %6015 = vmatprep.subr.mxu0 0.0
    %6016 = vmatpush1.msra.mxu0 0.0
    %6017 = vmatprep.subr.mxu0 0.0
    %6018 = vmatpush1.msra.mxu0 0.0
    %6019 = vmatprep.subr.mxu0 0.0
    %6020 = vmatpush1.msra.mxu0 0.0
    %6021 = vmatprep.subr.mxu0 0.0
    %6022 = vmatpush1.msra.mxu0 0.0
    %6023 = vmatprep.subr.mxu0 0.0
    %6024 = vmatpush1.msra.mxu0 0.0
    %6025 = vmatprep.subr.mxu0 0.0
    %6026 = vmatpush1.msra.mxu0 0.0
    %6027 = vmatprep.subr.mxu0 0.0
    %6028 = vmatpush1.msra.mxu0 0.0
    %6029 = vmatprep.subr.mxu0 0.0
    %6030 = vmatpush1.msra.mxu0 0.0
    %6031 = vmatprep.mubr.f32.mxu0 0.0
    %6032 = vmatmul.mubr.f32.gmra.mrb[0].mxu0 %v5962
    %v6033 = vpop.f32.mrb[0].mxu0
    %v6034 = vadd.f32 %v5953, %v6033
    %v6035 = vpop.f32.mrb[0].mxu0
    %6036 = vmatprep.mubr.f32.mxu0 0.0
    %6037 = vmatmul.mubr.f32.gmra.mrb[0].mxu0 %v5965
    %v6038 = vpop.f32.mrb[0].mxu0
    %v6039 = vadd.f32 %v5958, %v6038
    %v6040 = vpop.f32.mrb[0].mxu0
    %6041 = vdwg.mxu0
    %6042 = vst.msk [vmem:[%s13] sm:$0xff] %vm5341, %v6034
    %vm6043 = vcmask 8192
    %6044 = vst.msk [vmem:[%s13 + $0x8] sm:$0x1] %vm6043, %v6039
    // Predicated region
    $region58: #{actor_critic_forward.1} parent=1 // pred_check
      _
    $region59: #{actor_critic_forward.1} parent=1 // pred_check_branch
      %6046 = sbr.rel (0) target = $region61
    $region60: #{actor_critic_forward.1} parent=1 // pred_region
      _
    $region61: #{actor_critic_forward.1} parent=1 // pred_fallthru
      _
    // Predicated region
    $region62: #{actor_critic_forward.1} parent=1 // pred_check
      _
    $region63: #{actor_critic_forward.1} parent=1 // pred_check_branch
      %6048 = sbr.rel (0) target = $region65
    $region64: #{actor_critic_forward.1} parent=1 // pred_region
      _
    $region65: #{actor_critic_forward.1} parent=1 // pred_fallthru
      _
    %6049 = vsyncpa [#allocation9], 1

</llo_original>
